<compile_context>
chip_gen: v6e
topology: v6e:2x2x1
jax: 0.10.0
libtpu: 0.0.40
codegen_flags: <defaults>
</compile_context>

<pallas_src>
import math
import jax
import jax.numpy as jnp
from jax.experimental import pallas as pl
from jax.experimental.pallas import tpu as pltpu

DIM = 1024


def _disc_kernel(x_ref, w1_ref, b1_ref, w2_ref, b2_ref, w3r_ref, b3_ref, o_ref):
    # Layer 1: Linear(in_dim -> DIM) + ReLU.  bf16 MXU matmul, f32 accumulate.
    h1 = jnp.dot(x_ref[...], w1_ref[...], preferred_element_type=jnp.float32)
    h1 = jnp.maximum(h1 + b1_ref[...], 0.0)
    # Dropout(0.2) -> identity (eval mode)

    # Layer 2: Linear(DIM -> DIM) + ReLU.
    h2 = jnp.dot(h1.astype(jnp.bfloat16), w2_ref[...],
                 preferred_element_type=jnp.float32)
    h2 = jnp.maximum(h2 + b2_ref[...], 0.0)
    # Dropout(0.2) -> identity (eval mode)

    # Layer 3: Linear(DIM -> 1) as VPU multiply + cross-lane (XLU) reduction:
    # an N=1 MXU matmul would waste 127/256 of the output lanes and contend
    # with the layer-2 matmul for the MXU.
    w3row = w3r_ref[...].astype(jnp.float32)                  # (1, DIM)
    logit = jnp.sum(h2 * w3row, axis=-1) + b3_ref[0, 0]       # (tb,)

    # Lane-dense store: (1, tb) block -> unmasked vector stores.
    o_ref[...] = logit.reshape(1, -1).astype(o_ref.dtype)


def discriminator_forward(feat, params, *, tb=None):
    """feat: [B, in_dim] float32.  params: dict of w1,b1,w2,b2,w3,b3 (f32, [in,out])."""
    B, in_dim = feat.shape
    if tb is None:
        # Multiple of 128 so the lane-dense output block is unmasked.
        tb = 128 if B <= 128 else 256
    assert tb % 128 == 0

    # bf16 operands for the MXU; biases stay f32 (added to the f32 accumulators).
    x = feat.astype(jnp.bfloat16)
    w1 = params["w1"].astype(jnp.bfloat16)          # [in_dim, DIM]
    w2 = params["w2"].astype(jnp.bfloat16)          # [DIM, DIM]
    w3r = params["w3"].T.astype(jnp.bfloat16)       # [1, DIM] row vector
    b1 = params["b1"].astype(jnp.float32)           # [1, DIM]
    b2 = params["b2"].astype(jnp.float32)           # [1, DIM]
    b3 = params["b3"].astype(jnp.float32)           # [1, 1]  (SMEM scalar)

    # Pad batch up to a multiple of the batch tile.
    Bp = pl.cdiv(B, tb) * tb
    if Bp != B:
        x = jnp.pad(x, ((0, Bp - B), (0, 0)))

    grid = (Bp // tb,)

    out = pl.pallas_call(
        _disc_kernel,
        out_shape=jax.ShapeDtypeStruct((1, Bp), jnp.float32),
        grid_spec=pltpu.PrefetchScalarGridSpec(
            num_scalar_prefetch=0,
            grid=grid,
            in_specs=[
                pl.BlockSpec((tb, in_dim), lambda i: (i, 0)),        # x tile
                pl.BlockSpec((in_dim, DIM), lambda i: (0, 0)),       # w1 (resident)
                pl.BlockSpec((1, DIM), lambda i: (0, 0)),            # b1
                pl.BlockSpec((DIM, DIM), lambda i: (0, 0)),          # w2 (resident)
                pl.BlockSpec((1, DIM), lambda i: (0, 0)),            # b2
                pl.BlockSpec((1, DIM), lambda i: (0, 0)),            # w3 row
                pl.BlockSpec(memory_space=pltpu.MemorySpace.SMEM),   # b3 scalar
            ],
            out_specs=pl.BlockSpec((1, tb), lambda i: (0, i)),       # lane-dense
        ),
        compiler_params=pltpu.CompilerParams(
            dimension_semantics=("parallel",),
        ),
    )(x, w1, b1, w2, b2, w3r, b3)

    return out[0, :B].reshape(B, 1)


def init_discriminator_params(key, in_dim):
    """Mirror the PyTorch module: xavier_normal_ weights, zero biases.
    Weights stored as [in, out] (transpose of nn.Linear's [out, in])."""
    k1, k2, k3 = jax.random.split(key, 3)

    def xavier_normal(k, fan_in, fan_out):
        std = math.sqrt(2.0 / (fan_in + fan_out))
        w = std * jax.random.normal(k, (fan_out, fan_in), dtype=jnp.float32)
        return w.T  # [in, out]

    return {
        "w1": xavier_normal(k1, in_dim, DIM),
        "b1": jnp.zeros((1, DIM), jnp.float32),
        "w2": xavier_normal(k2, DIM, DIM),
        "b2": jnp.zeros((1, DIM), jnp.float32),
        "w3": xavier_normal(k3, DIM, 1),
        "b3": jnp.zeros((1, 1), jnp.float32),
    }


def _reference_forward(feat, p):
    # Reference mirrors the kernel's numerics: bf16-quantized operands for the
    # matmuls, f32 accumulation, f32 h2 for the final reduction.
    hi = jax.lax.Precision.HIGHEST
    q = lambda a: a.astype(jnp.bfloat16).astype(jnp.float32)
    h1 = jnp.maximum(jnp.dot(q(feat), q(p["w1"]), precision=hi) + p["b1"], 0.0)
    h2 = jnp.maximum(jnp.dot(q(h1), q(p["w2"]), precision=hi) + p["b2"], 0.0)
    return jnp.dot(h2, q(p["w3"]), precision=hi) + p["b3"]


if __name__ == "__main__":
    key = jax.random.PRNGKey(0)
    k_x, k_p = jax.random.split(key)

    B, in_dim = 8, 32
    feat = jax.random.normal(k_x, (B, in_dim), dtype=jnp.float32)
    params = init_discriminator_params(k_p, in_dim)

    logits = discriminator_forward(feat, params)
    logits = jax.block_until_ready(logits)

    ref = _reference_forward(feat, params)
    assert logits.shape == (B, 1)
    assert jnp.allclose(logits, ref, atol=5e-3, rtol=5e-3), "mismatch vs reference"

    print("KERNEL_OK")
</pallas_src>

<mosaic_0001>
module attributes {stable_mosaic.version = 11 : i64} {
  func.func @_disc_kernel(%arg0: i32, %arg1: memref<128x32xbf16, #tpu.memory_space<vmem>>, %arg2: memref<32x1024xbf16, #tpu.memory_space<vmem>>, %arg3: memref<1x1024xf32, #tpu.memory_space<vmem>>, %arg4: memref<1024x1024xbf16, #tpu.memory_space<vmem>>, %arg5: memref<1x1024xf32, #tpu.memory_space<vmem>>, %arg6: memref<1x1024xbf16, #tpu.memory_space<vmem>>, %arg7: memref<1x1xf32, #tpu.memory_space<smem>>, %arg8: memref<1x128xf32, #tpu.memory_space<vmem>>) attributes {dimension_semantics = [#tpu.dimension_semantics<parallel>], iteration_bounds = array<i64: 1>, scalar_prefetch = 0 : i64, scratch_operands = 0 : i64, tpu.core_type = #tpu.core_type<tc>, window_params = [{transform_indices = @transform_0, window_bounds = array<i64: 128, 32>}, {pipeline_mode = #tpu.pipeline_mode<synchronous>, transform_indices = @transform_1, window_bounds = array<i64: 32, 1024>}, {pipeline_mode = #tpu.pipeline_mode<synchronous>, transform_indices = @transform_2, window_bounds = array<i64: 1, 1024>}, {pipeline_mode = #tpu.pipeline_mode<synchronous>, transform_indices = @transform_3, window_bounds = array<i64: 1024, 1024>}, {pipeline_mode = #tpu.pipeline_mode<synchronous>, transform_indices = @transform_4, window_bounds = array<i64: 1, 1024>}, {pipeline_mode = #tpu.pipeline_mode<synchronous>, transform_indices = @transform_5, window_bounds = array<i64: 1, 1024>}, {transform_indices = @transform_6, window_bounds = array<i64: 1, 1>}, {transform_indices = @transform_7, window_bounds = array<i64: 1, 128>}]} {
    %c0 = arith.constant 0 : index
    %c0_0 = arith.constant 0 : index
    %0 = vector.load %arg1[%c0, %c0_0] : memref<128x32xbf16, #tpu.memory_space<vmem>>, vector<128x32xbf16>
    %c0_1 = arith.constant 0 : index
    %c0_2 = arith.constant 0 : index
    %1 = vector.load %arg2[%c0_1, %c0_2] : memref<32x1024xbf16, #tpu.memory_space<vmem>>, vector<32x1024xbf16>
    %cst = arith.constant dense<0.000000e+00> : vector<128x1024xf32>
    %2 = tpu.matmul %0, %1, %cst {dimension_numbers = #tpu.dot_dimension_numbers<[1], [0], [0], [1], [0, 0, 1, 1], [], []>} : vector<128x32xbf16>, vector<32x1024xbf16>, vector<128x1024xf32> -> vector<128x1024xf32>
    %c0_3 = arith.constant 0 : index
    %c0_4 = arith.constant 0 : index
    %3 = vector.load %arg3[%c0_3, %c0_4] : memref<1x1024xf32, #tpu.memory_space<vmem>>, vector<1x1024xf32>
    %4 = vector.broadcast %3 : vector<1x1024xf32> to vector<128x1024xf32>
    %5 = arith.addf %2, %4 : vector<128x1024xf32>
    %cst_5 = arith.constant 0.000000e+00 : f32
    %6 = vector.broadcast %cst_5 : f32 to vector<128x1024xf32>
    %7 = arith.maximumf %5, %6 : vector<128x1024xf32>
    %8 = arith.truncf %7 : vector<128x1024xf32> to vector<128x1024xbf16>
    %c0_6 = arith.constant 0 : index
    %c0_7 = arith.constant 0 : index
    %9 = vector.load %arg4[%c0_6, %c0_7] : memref<1024x1024xbf16, #tpu.memory_space<vmem>>, vector<1024x1024xbf16>
    %cst_8 = arith.constant dense<0.000000e+00> : vector<128x1024xf32>
    %10 = tpu.matmul %8, %9, %cst_8 {dimension_numbers = #tpu.dot_dimension_numbers<[1], [0], [0], [1], [0, 0, 1, 1], [], []>} : vector<128x1024xbf16>, vector<1024x1024xbf16>, vector<128x1024xf32> -> vector<128x1024xf32>
    %c0_9 = arith.constant 0 : index
    %c0_10 = arith.constant 0 : index
    %11 = vector.load %arg5[%c0_9, %c0_10] : memref<1x1024xf32, #tpu.memory_space<vmem>>, vector<1x1024xf32>
    %12 = vector.broadcast %11 : vector<1x1024xf32> to vector<128x1024xf32>
    %13 = arith.addf %10, %12 : vector<128x1024xf32>
    %cst_11 = arith.constant 0.000000e+00 : f32
    %14 = vector.broadcast %cst_11 : f32 to vector<128x1024xf32>
    %15 = arith.maximumf %13, %14 : vector<128x1024xf32>
    %c0_12 = arith.constant 0 : index
    %c0_13 = arith.constant 0 : index
    %16 = vector.load %arg6[%c0_12, %c0_13] : memref<1x1024xbf16, #tpu.memory_space<vmem>>, vector<1x1024xbf16>
    %17 = arith.extf %16 : vector<1x1024xbf16> to vector<1x1024xf32>
    %18 = vector.broadcast %17 : vector<1x1024xf32> to vector<128x1024xf32>
    %19 = arith.mulf %15, %18 : vector<128x1024xf32>
    %cst_14 = arith.constant dense<0.000000e+00> : vector<128xf32>
    %20 = vector.multi_reduction <add>, %19, %cst_14 [1] : vector<128x1024xf32> to vector<128xf32>
    %c0_15 = arith.constant 0 : index
    %c0_16 = arith.constant 0 : index
    %21 = memref.load %arg7[%c0_15, %c0_16] : memref<1x1xf32, #tpu.memory_space<smem>>
    %22 = vector.broadcast %21 : f32 to vector<128xf32>
    %23 = arith.addf %20, %22 : vector<128xf32>
    %24 = vector.shape_cast %23 : vector<128xf32> to vector<1x128xf32>
    %c0_17 = arith.constant 0 : index
    %c0_18 = arith.constant 0 : index
    %25 = vector.load %arg8[%c0_17, %c0_18] : memref<1x128xf32, #tpu.memory_space<vmem>>, vector<1x128xf32>
    tpu.vector_store %arg8[%c0_17, %c0_18], %24 {strides = array<i32>} : memref<1x128xf32, #tpu.memory_space<vmem>>, vector<1x128xf32>,
    return
  }
  func.func @transform_0(%arg0: i32) -> (i32, i32) {
    %c0_i32 = arith.constant 0 : i32
    %c0_i32_0 = arith.constant 0 : i32
    return %arg0, %c0_i32 : i32, i32
  }
  func.func @transform_1(%arg0: i32) -> (i32, i32) {
    %c0_i32 = arith.constant 0 : i32
    %c0_i32_0 = arith.constant 0 : i32
    %c0_i32_1 = arith.constant 0 : i32
    return %c0_i32, %c0_i32_0 : i32, i32
  }
  func.func @transform_2(%arg0: i32) -> (i32, i32) {
    %c0_i32 = arith.constant 0 : i32
    %c0_i32_0 = arith.constant 0 : i32
    %c0_i32_1 = arith.constant 0 : i32
    return %c0_i32, %c0_i32_0 : i32, i32
  }
  func.func @transform_3(%arg0: i32) -> (i32, i32) {
    %c0_i32 = arith.constant 0 : i32
    %c0_i32_0 = arith.constant 0 : i32
    %c0_i32_1 = arith.constant 0 : i32
    return %c0_i32, %c0_i32_0 : i32, i32
  }
  func.func @transform_4(%arg0: i32) -> (i32, i32) {
    %c0_i32 = arith.constant 0 : i32
    %c0_i32_0 = arith.constant 0 : i32
    %c0_i32_1 = arith.constant 0 : i32
    return %c0_i32, %c0_i32_0 : i32, i32
  }
  func.func @transform_5(%arg0: i32) -> (i32, i32) {
    %c0_i32 = arith.constant 0 : i32
    %c0_i32_0 = arith.constant 0 : i32
    %c0_i32_1 = arith.constant 0 : i32
    return %c0_i32, %c0_i32_0 : i32, i32
  }
  func.func @transform_6(%arg0: i32) -> (i32, i32) {
    %c0_i32 = arith.constant 0 : i32
    %c0_i32_0 = arith.constant 0 : i32
    %c0_i32_1 = arith.constant 0 : i32
    return %c0_i32, %c0_i32_0 : i32, i32
  }
  func.func @transform_7(%arg0: i32) -> (i32, i32) {
    %c0_i32 = arith.constant 0 : i32
    %c0_i32_0 = arith.constant 0 : i32
    return %c0_i32, %arg0 : i32, i32
  }
}

</mosaic_0001>

<llo_original>
// kernel: tpu_custom_call.1
$region0: #{tpu_custom_call.1}
  #allocation0 [shape = 'u32[]', space=smem, size = 0x4, offset = 0x4, fixed_abs, tag = 'smem constant byte address 0x4 - core index']
  #allocation1 [shape = 'u32[144,128]{1,0:T(1,128)}', space=vmem, size = 0x12000, scoped, tag = 'internal scratch']
  #allocation2 [shape = 'f32[1,1]{1,0:T(1,128)S(6)}', space=smem, size = 0x200, scoped, tag = 'scoped memory for tpu_custom_call.1']
  %s0 = inlined_call_operand.vmem [shape: bf16[128,32], index: 0, kind: input, shape index: {}]
  %s1 = inlined_call_operand.hbm [shape: bf16[32,1024], index: 1, kind: input, shape index: {}]
  %s2 = inlined_call_operand.hbm [shape: f32[1,1024], index: 2, kind: input, shape index: {}]
  %s3 = inlined_call_operand.hbm [shape: bf16[1024,1024], index: 3, kind: input, shape index: {}]
  %s4 = inlined_call_operand.hbm [shape: f32[1,1024], index: 4, kind: input, shape index: {}]
  %s5 = inlined_call_operand.hbm [shape: bf16[1,1024], index: 5, kind: input, shape index: {}]
  %s6 = inlined_call_operand.<no memory space> [shape: f32[1,1], index: 6, kind: input, shape index: {}]
  %s7 = inlined_call_operand.hbm [shape: f32[1,128], index: 7, kind: output, shape index: {}]
  %s8 = sld [smem:[#allocation0]]
  $region58: #{tpu_custom_call.1} parent=0
    _
  %s10 = ssub.s32 1, %s8
  %s11 = scalar_select 0, %s10, %s8
  %12 = sst [smem:[#allocation2]] %s6
  $region1: #{tpu_custom_call.1} parent=0
    #allocation3 [shape = 'u8[65536]{0}', space=vmem, size = 0x10000, scoped, tag = 'input window, operand 1, single buffered']
    #allocation4 [shape = 's32[1]{0}', space=sflag, size = 0x4, scoped, tag = 'scoped memory for tpu_custom_call.1']
    #allocation5 [shape = 's32[1]{0}', space=sflag, size = 0x4, scoped, tag = 'scoped memory for tpu_custom_call.1']
    #allocation6 [shape = 'u8[4096]{0}', space=vmem, size = 0x1000, scoped, tag = 'input window, operand 2, single buffered']
    #allocation7 [shape = 's32[1]{0}', space=sflag, size = 0x4, scoped, tag = 'scoped memory for tpu_custom_call.1']
    #allocation8 [shape = 'u8[2097152]{0}', space=vmem, size = 0x200000, scoped, tag = 'input window, operand 3, single buffered']
    #allocation9 [shape = 'u8[4096]{0}', space=vmem, size = 0x1000, scoped, tag = 'input window, operand 4, single buffered']
    #allocation10 [shape = 's32[1]{0}', space=sflag, size = 0x4, scoped, tag = 'scoped memory for tpu_custom_call.1']
    #allocation11 [shape = 'u8[4096]{0}', space=vmem, size = 0x1000, scoped, tag = 'input window, operand 5, single buffered']
    #allocation12 [shape = 'u8[512]{0}', space=vmem, size = 0x400, scoped, tag = 'output window, operand 0, single buffered']
    %13 = vsyncpa [#allocation4], 0
    %14 = vsyncpa [#allocation7], 0
    %15 = vsyncpa [#allocation10], 0
    %16 = vsyncpa [#allocation5], 0
    // Predicated region
    $region2: #{tpu_custom_call.1} parent=1 // pred_check
      _
    $region3: #{tpu_custom_call.1} parent=1 // pred_check_branch
      %18 = sbr.rel (0) target = $region5
    $region4: #{tpu_custom_call.1} parent=1 // pred_region
      _
    $region5: #{tpu_custom_call.1} parent=1 // pred_fallthru
      _
    // Predicated region
    $region6: #{tpu_custom_call.1} parent=1 // pred_check
      _
    $region7: #{tpu_custom_call.1} parent=1 // pred_check_branch
      %20 = sbr.rel (0) target = $region9
    $region8: #{tpu_custom_call.1} parent=1 // pred_region
      %s22 = ssub.s32 2048, 2048
      %23 = vsyncadd [#allocation4], %s22
      %s24 = sshll.u32 [#allocation3], 4
      %s25 = int_to_ptr.vmem [resolvable:$true] %s24
      %30 = dma.hbm_to_vmem [thread:$0]  %s1, 2048, %s25, [#allocation4], 512, 512, 32
    $region9: #{tpu_custom_call.1} parent=1 // pred_fallthru
      _
    // Predicated region
    $region10: #{tpu_custom_call.1} parent=1 // pred_check
      _
    $region11: #{tpu_custom_call.1} parent=1 // pred_check_branch
      %32 = sbr.rel (0) target = $region13
    $region12: #{tpu_custom_call.1} parent=1 // pred_region
      %s34 = ssub.s32 128, 128
      %35 = vsyncadd [#allocation7], %s34
      %s37 = sshll.u32 [#allocation6], 4
      %s38 = int_to_ptr.vmem [resolvable:$true] %s37
      %40 = dma.hbm_to_vmem [thread:$0]  %s2, 128, %s38, [#allocation7]
    $region13: #{tpu_custom_call.1} parent=1 // pred_fallthru
      _
    // Predicated region
    $region14: #{tpu_custom_call.1} parent=1 // pred_check
      _
    $region15: #{tpu_custom_call.1} parent=1 // pred_check_branch
      %42 = sbr.rel (0) target = $region17
    $region16: #{tpu_custom_call.1} parent=1 // pred_region
      %s44 = ssub.s32 65536, 65536
      %45 = vsyncadd [#allocation7], %s44
      %s46 = sshll.u32 [#allocation8], 4
      %s47 = int_to_ptr.vmem [resolvable:$true] %s46
      %52 = dma.hbm_to_vmem [thread:$0]  %s3, 65536, %s47, [#allocation7], 512, 512, 32
    $region17: #{tpu_custom_call.1} parent=1 // pred_fallthru
      _
    // Predicated region
    $region18: #{tpu_custom_call.1} parent=1 // pred_check
      _
    $region19: #{tpu_custom_call.1} parent=1 // pred_check_branch
      %54 = sbr.rel (0) target = $region21
    $region20: #{tpu_custom_call.1} parent=1 // pred_region
      %s56 = ssub.s32 128, 128
      %57 = vsyncadd [#allocation10], %s56
      %s59 = sshll.u32 [#allocation9], 4
      %s60 = int_to_ptr.vmem [resolvable:$true] %s59
      %62 = dma.hbm_to_vmem [thread:$0]  %s4, 128, %s60, [#allocation10]
    $region21: #{tpu_custom_call.1} parent=1 // pred_fallthru
      _
    // Predicated region
    $region22: #{tpu_custom_call.1} parent=1 // pred_check
      _
    $region23: #{tpu_custom_call.1} parent=1 // pred_check_branch
      %64 = sbr.rel (0) target = $region25
    $region24: #{tpu_custom_call.1} parent=1 // pred_region
      %s66 = ssub.s32 128, 128
      %67 = vsyncadd [#allocation10], %s66
      %s69 = sshll.u32 [#allocation11], 4
      %s70 = int_to_ptr.vmem [resolvable:$true] %s69
      %72 = dma.hbm_to_vmem [thread:$0]  %s5, 128, %s70, [#allocation10]
    $region25: #{tpu_custom_call.1} parent=1 // pred_fallthru
      _
    // Predicated region
    $region26: #{tpu_custom_call.1} parent=1 // pred_check
      _
    $region27: #{tpu_custom_call.1} parent=1 // pred_check_branch
      %74 = sbr.rel (0) target = $region29
    $region28: #{tpu_custom_call.1} parent=1 // pred_region
      _
    $region29: #{tpu_custom_call.1} parent=1 // pred_fallthru
      _
    // Predicated region
    $region30: #{tpu_custom_call.1} parent=1 // pred_check
      _
    $region31: #{tpu_custom_call.1} parent=1 // pred_check_branch
      %76 = sbr.rel (0) target = $region33
    $region32: #{tpu_custom_call.1} parent=1 // pred_region
      %77 = dma.done [#allocation4], 2048
    $region33: #{tpu_custom_call.1} parent=1 // pred_fallthru
      _
    // Predicated region
    $region34: #{tpu_custom_call.1} parent=1 // pred_check
      _
    $region35: #{tpu_custom_call.1} parent=1 // pred_check_branch
      %79 = sbr.rel (0) target = $region37
    $region36: #{tpu_custom_call.1} parent=1 // pred_region
      %80 = dma.done [#allocation7], 128
    $region37: #{tpu_custom_call.1} parent=1 // pred_fallthru
      _
    // Predicated region
    $region38: #{tpu_custom_call.1} parent=1 // pred_check
      _
    $region39: #{tpu_custom_call.1} parent=1 // pred_check_branch
      %82 = sbr.rel (0) target = $region41
    $region40: #{tpu_custom_call.1} parent=1 // pred_region
      %83 = dma.done [#allocation7], 65536
    $region41: #{tpu_custom_call.1} parent=1 // pred_fallthru
      _
    // Predicated region
    $region42: #{tpu_custom_call.1} parent=1 // pred_check
      _
    $region43: #{tpu_custom_call.1} parent=1 // pred_check_branch
      %85 = sbr.rel (0) target = $region45
    $region44: #{tpu_custom_call.1} parent=1 // pred_region
      %86 = dma.done [#allocation10], 128
    $region45: #{tpu_custom_call.1} parent=1 // pred_fallthru
      _
    // Predicated region
    $region46: #{tpu_custom_call.1} parent=1 // pred_check
      _
    $region47: #{tpu_custom_call.1} parent=1 // pred_check_branch
      %88 = sbr.rel (0) target = $region49
    $region48: #{tpu_custom_call.1} parent=1 // pred_region
      %89 = dma.done [#allocation10], 128
    $region49: #{tpu_custom_call.1} parent=1 // pred_fallthru
      _
    %v91 = vld [vmem:[%s0] sm:$0xf]
    %v92 = vld [vmem:[%s0 + $0x4] sm:$0xf]
    %v93 = vld [vmem:[%s0 + $0x8] sm:$0xf]
    %v94 = vld [vmem:[%s0 + $0xc] sm:$0xf]
    %v95 = vld [vmem:[%s0 + $0x10] sm:$0xf]
    %v96 = vld [vmem:[%s0 + $0x14] sm:$0xf]
    %v97 = vld [vmem:[%s0 + $0x18] sm:$0xf]
    %v98 = vld [vmem:[%s0 + $0x1c] sm:$0xf]
    %v99 = vld [vmem:[%s0 + $0x20] sm:$0xf]
    %v100 = vld [vmem:[%s0 + $0x24] sm:$0xf]
    %v101 = vld [vmem:[%s0 + $0x28] sm:$0xf]
    %v102 = vld [vmem:[%s0 + $0x2c] sm:$0xf]
    %v103 = vld [vmem:[%s0 + $0x30] sm:$0xf]
    %v104 = vld [vmem:[%s0 + $0x34] sm:$0xf]
    %v105 = vld [vmem:[%s0 + $0x38] sm:$0xf]
    %v106 = vld [vmem:[%s0 + $0x3c] sm:$0xf]
    %v107 = vld [vmem:[#allocation3] sm:$0xff]
    %v108 = vld [vmem:[#allocation3 + $0x8] sm:$0xff]
    %v109 = vld [vmem:[#allocation3 + $0x10] sm:$0xff]
    %v110 = vld [vmem:[#allocation3 + $0x18] sm:$0xff]
    %v111 = vld [vmem:[#allocation3 + $0x20] sm:$0xff]
    %v112 = vld [vmem:[#allocation3 + $0x28] sm:$0xff]
    %v113 = vld [vmem:[#allocation3 + $0x30] sm:$0xff]
    %v114 = vld [vmem:[#allocation3 + $0x38] sm:$0xff]
    %v115 = vld [vmem:[#allocation3 + $0x40] sm:$0xff]
    %v116 = vld [vmem:[#allocation3 + $0x48] sm:$0xff]
    %v117 = vld [vmem:[#allocation3 + $0x50] sm:$0xff]
    %v118 = vld [vmem:[#allocation3 + $0x58] sm:$0xff]
    %v119 = vld [vmem:[#allocation3 + $0x60] sm:$0xff]
    %v120 = vld [vmem:[#allocation3 + $0x68] sm:$0xff]
    %v121 = vld [vmem:[#allocation3 + $0x70] sm:$0xff]
    %v122 = vld [vmem:[#allocation3 + $0x78] sm:$0xff]
    %v123 = vld [vmem:[#allocation6] sm:$0xff]
    %v125 = vlaneseq
    %v126 = vshrl.u32 %v125, 7
    %v127 = vsub.s32 0, %v126
    %v128 = vrot.slane %v123, %v127
    %v129 = vlaneseq
    %v130 = vshrl.u32 %v129, 7
    %v131 = vsub.s32 1, %v130
    %v132 = vrot.slane %v123, %v131
    %v133 = vlaneseq
    %v134 = vshrl.u32 %v133, 7
    %v135 = vsub.s32 2, %v134
    %v136 = vrot.slane %v123, %v135
    %v137 = vlaneseq
    %v138 = vshrl.u32 %v137, 7
    %v139 = vsub.s32 3, %v138
    %v140 = vrot.slane %v123, %v139
    %v141 = vlaneseq
    %v142 = vshrl.u32 %v141, 7
    %v143 = vsub.s32 4, %v142
    %v144 = vrot.slane %v123, %v143
    %v145 = vlaneseq
    %v146 = vshrl.u32 %v145, 7
    %v147 = vsub.s32 5, %v146
    %v148 = vrot.slane %v123, %v147
    %v149 = vlaneseq
    %v150 = vshrl.u32 %v149, 7
    %v151 = vsub.s32 6, %v150
    %v152 = vrot.slane %v123, %v151
    %v153 = vlaneseq
    %v154 = vshrl.u32 %v153, 7
    %v155 = vsub.s32 7, %v154
    %v156 = vrot.slane %v123, %v155
    %v181 = vunpack.c.l.b16 %v91
    %v182 = vunpack.c.l.b16 %v92
    %v183 = vunpack.c.l.b16 %v93
    %v184 = vunpack.c.l.b16 %v94
    %v185 = vunpack.c.l.b16 %v95
    %v186 = vunpack.c.l.b16 %v96
    %v187 = vunpack.c.l.b16 %v97
    %v188 = vunpack.c.l.b16 %v98
    %v189 = vunpack.c.l.b16 %v99
    %v190 = vunpack.c.l.b16 %v100
    %v191 = vunpack.c.l.b16 %v101
    %v192 = vunpack.c.l.b16 %v102
    %v193 = vunpack.c.l.b16 %v103
    %v194 = vunpack.c.l.b16 %v104
    %v195 = vunpack.c.l.b16 %v105
    %v196 = vunpack.c.l.b16 %v106
    %v197 = vpack.c.b16 %v182, %v181
    %v198 = vpack.c.b16 %v184, %v183
    %v199 = vpack.c.b16 %v186, %v185
    %v200 = vpack.c.b16 %v188, %v187
    %v201 = vpack.c.b16 %v190, %v189
    %v202 = vpack.c.b16 %v192, %v191
    %v203 = vpack.c.b16 %v194, %v193
    %v204 = vpack.c.b16 %v196, %v195
    %v221 = vunpack.c.l.b16 %v107
    %v222 = vunpack.c.h.b16 %v107
    %v223 = vunpack.c.l.b16 %v108
    %v224 = vunpack.c.h.b16 %v108
    %v225 = vunpack.c.l.b16 %v109
    %v226 = vunpack.c.h.b16 %v109
    %v227 = vunpack.c.l.b16 %v110
    %v228 = vunpack.c.h.b16 %v110
    %v229 = vunpack.c.l.b16 %v111
    %v230 = vunpack.c.h.b16 %v111
    %v231 = vunpack.c.l.b16 %v112
    %v232 = vunpack.c.h.b16 %v112
    %v233 = vunpack.c.l.b16 %v113
    %v234 = vunpack.c.h.b16 %v113
    %v235 = vunpack.c.l.b16 %v114
    %v236 = vunpack.c.h.b16 %v114
    %v237 = vunpack.c.l.b16 %v115
    %v238 = vunpack.c.h.b16 %v115
    %v239 = vunpack.c.l.b16 %v116
    %v240 = vunpack.c.h.b16 %v116
    %v241 = vunpack.c.l.b16 %v117
    %v242 = vunpack.c.h.b16 %v117
    %v243 = vunpack.c.l.b16 %v118
    %v244 = vunpack.c.h.b16 %v118
    %v245 = vunpack.c.l.b16 %v119
    %v246 = vunpack.c.h.b16 %v119
    %v247 = vunpack.c.l.b16 %v120
    %v248 = vunpack.c.h.b16 %v120
    %v249 = vunpack.c.l.b16 %v121
    %v250 = vunpack.c.h.b16 %v121
    %v251 = vunpack.c.l.b16 %v122
    %v252 = vunpack.c.h.b16 %v122
    %v253 = vpack.c.b16 %v229, %v221
    %v254 = vpack.c.b16 %v230, %v222
    %v255 = vpack.c.b16 %v231, %v223
    %v256 = vpack.c.b16 %v232, %v224
    %v257 = vpack.c.b16 %v233, %v225
    %v258 = vpack.c.b16 %v234, %v226
    %v259 = vpack.c.b16 %v235, %v227
    %v260 = vpack.c.b16 %v236, %v228
    %v261 = vpack.c.b16 %v245, %v237
    %v262 = vpack.c.b16 %v246, %v238
    %v263 = vpack.c.b16 %v247, %v239
    %v264 = vpack.c.b16 %v248, %v240
    %v265 = vpack.c.b16 %v249, %v241
    %v266 = vpack.c.b16 %v250, %v242
    %v267 = vpack.c.b16 %v251, %v243
    %v268 = vpack.c.b16 %v252, %v244
    %vm285 = vcmask 261120
    %v287 = vsel %vm285, %v197, 0
    %v290 = vsel %vm285, %v198, 0
    %v293 = vsel %vm285, %v199, 0
    %v296 = vsel %vm285, %v200, 0
    %v299 = vsel %vm285, %v201, 0
    %v302 = vsel %vm285, %v202, 0
    %v305 = vsel %vm285, %v203, 0
    %v308 = vsel %vm285, %v204, 0
    %310 = vmatprep.subr.bf16.mxu0 0
    %311 = vmatpush1.bf16.msra.mxu0 0
    %312 = vmatprep.subr.bf16.mxu0 0
    %313 = vmatpush1.bf16.msra.mxu0 0
    %314 = vmatprep.subr.bf16.mxu0 0
    %315 = vmatpush1.bf16.msra.mxu0 0
    %316 = vmatprep.subr.bf16.mxu0 0
    %317 = vmatpush1.bf16.msra.mxu0 0
    %318 = vmatprep.subr.bf16.mxu0 0
    %319 = vmatpush1.bf16.msra.mxu0 0
    %320 = vmatprep.subr.bf16.mxu0 0
    %321 = vmatpush1.bf16.msra.mxu0 0
    %322 = vmatprep.subr.bf16.mxu0 %v262
    %323 = vmatpush1.bf16.msra.mxu0 %v261
    %324 = vmatprep.subr.bf16.mxu0 %v254
    %325 = vmatpush1.bf16.msra.mxu0 %v253
    %326 = vmatprep.subr.bf16.mxu0 0
    %327 = vmatpush2.bf16.msra.mxu0 0
    %328 = vmatprep.subr.bf16.mxu0 0
    %329 = vmatpush2.bf16.msra.mxu0 0
    %330 = vmatprep.subr.bf16.mxu0 0
    %331 = vmatpush2.bf16.msra.mxu0 0
    %332 = vmatprep.subr.bf16.mxu0 0
    %333 = vmatpush2.bf16.msra.mxu0 0
    %334 = vmatprep.subr.bf16.mxu0 0
    %335 = vmatpush2.bf16.msra.mxu0 0
    %336 = vmatprep.subr.bf16.mxu0 0
    %337 = vmatpush2.bf16.msra.mxu0 0
    %338 = vmatprep.subr.bf16.mxu0 0
    %339 = vmatpush2.bf16.msra.mxu0 0
    %340 = vmatprep.subr.bf16.mxu0 0
    %341 = vmatpush2.bf16.msra.mxu0 0
    %342 = vmatprep.mubr.bf16.mxu0 0
    %343 = vmatmul.mubr.bf16.gmra.mxu0 %v287
    %v344 = vpop.f32.mrf.mxu0
    %v345 = vadd.f32 %v128, %v344
    %v346 = vpop.f32.mrf.mxu0
    %v347 = vadd.f32 %v132, %v346
    %v348 = vpop.f32.mrf.mxu0
    %v349 = vadd.f32 %v128, %v348
    %v350 = vpop.f32.mrf.mxu0
    %v351 = vadd.f32 %v132, %v350
    %352 = vmatprep.mubr.bf16.mxu0 0
    %353 = vmatmul.mubr.bf16.gmra.mxu0 %v290
    %v354 = vpop.f32.mrf.mxu0
    %v355 = vadd.f32 %v128, %v354
    %v356 = vpop.f32.mrf.mxu0
    %v357 = vadd.f32 %v132, %v356
    %v358 = vpop.f32.mrf.mxu0
    %v359 = vadd.f32 %v128, %v358
    %v360 = vpop.f32.mrf.mxu0
    %v361 = vadd.f32 %v132, %v360
    %362 = vmatprep.mubr.bf16.mxu0 0
    %363 = vmatmul.mubr.bf16.gmra.mxu0 %v293
    %v364 = vpop.f32.mrf.mxu0
    %v365 = vadd.f32 %v128, %v364
    %v366 = vpop.f32.mrf.mxu0
    %v367 = vadd.f32 %v132, %v366
    %v368 = vpop.f32.mrf.mxu0
    %v369 = vadd.f32 %v128, %v368
    %v370 = vpop.f32.mrf.mxu0
    %v371 = vadd.f32 %v132, %v370
    %372 = vmatprep.mubr.bf16.mxu0 0
    %373 = vmatmul.mubr.bf16.gmra.mxu0 %v296
    %v374 = vpop.f32.mrf.mxu0
    %v375 = vadd.f32 %v128, %v374
    %v376 = vpop.f32.mrf.mxu0
    %v377 = vadd.f32 %v132, %v376
    %v378 = vpop.f32.mrf.mxu0
    %v379 = vadd.f32 %v128, %v378
    %v380 = vpop.f32.mrf.mxu0
    %v381 = vadd.f32 %v132, %v380
    %382 = vmatprep.mubr.bf16.mxu0 0
    %383 = vmatmul.mubr.bf16.gmra.mxu0 %v299
    %v384 = vpop.f32.mrf.mxu0
    %v385 = vadd.f32 %v128, %v384
    %v386 = vpop.f32.mrf.mxu0
    %v387 = vadd.f32 %v132, %v386
    %v388 = vpop.f32.mrf.mxu0
    %v389 = vadd.f32 %v128, %v388
    %v390 = vpop.f32.mrf.mxu0
    %v391 = vadd.f32 %v132, %v390
    %392 = vmatprep.mubr.bf16.mxu0 0
    %393 = vmatmul.mubr.bf16.gmra.mxu0 %v302
    %v394 = vpop.f32.mrf.mxu0
    %v395 = vadd.f32 %v128, %v394
    %v396 = vpop.f32.mrf.mxu0
    %v397 = vadd.f32 %v132, %v396
    %v398 = vpop.f32.mrf.mxu0
    %v399 = vadd.f32 %v128, %v398
    %v400 = vpop.f32.mrf.mxu0
    %v401 = vadd.f32 %v132, %v400
    %402 = vmatprep.mubr.bf16.mxu0 0
    %403 = vmatmul.mubr.bf16.gmra.mxu0 %v305
    %v404 = vpop.f32.mrf.mxu0
    %v405 = vadd.f32 %v128, %v404
    %v406 = vpop.f32.mrf.mxu0
    %v407 = vadd.f32 %v132, %v406
    %v408 = vpop.f32.mrf.mxu0
    %v409 = vadd.f32 %v128, %v408
    %v410 = vpop.f32.mrf.mxu0
    %v411 = vadd.f32 %v132, %v410
    %412 = vmatprep.mubr.bf16.mxu0 0
    %413 = vmatmul.mubr.bf16.gmra.mxu0 %v308
    %v414 = vpop.f32.mrf.mxu0
    %v415 = vadd.f32 %v128, %v414
    %v416 = vpop.f32.mrf.mxu0
    %v417 = vadd.f32 %v132, %v416
    %v418 = vpop.f32.mrf.mxu0
    %v419 = vadd.f32 %v128, %v418
    %v420 = vpop.f32.mrf.mxu0
    %v421 = vadd.f32 %v132, %v420
    %422 = vdwg.mxu0
    %423 = vmatprep.subr.bf16.mxu0 0
    %424 = vmatpush1.bf16.msra.mxu0 0
    %425 = vmatprep.subr.bf16.mxu0 0
    %426 = vmatpush1.bf16.msra.mxu0 0
    %427 = vmatprep.subr.bf16.mxu0 0
    %428 = vmatpush1.bf16.msra.mxu0 0
    %429 = vmatprep.subr.bf16.mxu0 0
    %430 = vmatpush1.bf16.msra.mxu0 0
    %431 = vmatprep.subr.bf16.mxu0 0
    %432 = vmatpush1.bf16.msra.mxu0 0
    %433 = vmatprep.subr.bf16.mxu0 0
    %434 = vmatpush1.bf16.msra.mxu0 0
    %435 = vmatprep.subr.bf16.mxu0 %v264
    %436 = vmatpush1.bf16.msra.mxu0 %v263
    %437 = vmatprep.subr.bf16.mxu0 %v256
    %438 = vmatpush1.bf16.msra.mxu0 %v255
    %439 = vmatprep.subr.bf16.mxu0 0
    %440 = vmatpush2.bf16.msra.mxu0 0
    %441 = vmatprep.subr.bf16.mxu0 0
    %442 = vmatpush2.bf16.msra.mxu0 0
    %443 = vmatprep.subr.bf16.mxu0 0
    %444 = vmatpush2.bf16.msra.mxu0 0
    %445 = vmatprep.subr.bf16.mxu0 0
    %446 = vmatpush2.bf16.msra.mxu0 0
    %447 = vmatprep.subr.bf16.mxu0 0
    %448 = vmatpush2.bf16.msra.mxu0 0
    %449 = vmatprep.subr.bf16.mxu0 0
    %450 = vmatpush2.bf16.msra.mxu0 0
    %451 = vmatprep.subr.bf16.mxu0 0
    %452 = vmatpush2.bf16.msra.mxu0 0
    %453 = vmatprep.subr.bf16.mxu0 0
    %454 = vmatpush2.bf16.msra.mxu0 0
    %455 = vmatprep.mubr.bf16.mxu0 0
    %456 = vmatmul.mubr.bf16.gmra.mxu0 %v287
    %v457 = vpop.f32.mrf.mxu0
    %v458 = vadd.f32 %v136, %v457
    %v459 = vpop.f32.mrf.mxu0
    %v460 = vadd.f32 %v140, %v459
    %v461 = vpop.f32.mrf.mxu0
    %v462 = vadd.f32 %v136, %v461
    %v463 = vpop.f32.mrf.mxu0
    %v464 = vadd.f32 %v140, %v463
    %465 = vmatprep.mubr.bf16.mxu0 0
    %466 = vmatmul.mubr.bf16.gmra.mxu0 %v290
    %v467 = vpop.f32.mrf.mxu0
    %v468 = vadd.f32 %v136, %v467
    %v469 = vpop.f32.mrf.mxu0
    %v470 = vadd.f32 %v140, %v469
    %v471 = vpop.f32.mrf.mxu0
    %v472 = vadd.f32 %v136, %v471
    %v473 = vpop.f32.mrf.mxu0
    %v474 = vadd.f32 %v140, %v473
    %475 = vmatprep.mubr.bf16.mxu0 0
    %476 = vmatmul.mubr.bf16.gmra.mxu0 %v293
    %v477 = vpop.f32.mrf.mxu0
    %v478 = vadd.f32 %v136, %v477
    %v479 = vpop.f32.mrf.mxu0
    %v480 = vadd.f32 %v140, %v479
    %v481 = vpop.f32.mrf.mxu0
    %v482 = vadd.f32 %v136, %v481
    %v483 = vpop.f32.mrf.mxu0
    %v484 = vadd.f32 %v140, %v483
    %485 = vmatprep.mubr.bf16.mxu0 0
    %486 = vmatmul.mubr.bf16.gmra.mxu0 %v296
    %v487 = vpop.f32.mrf.mxu0
    %v488 = vadd.f32 %v136, %v487
    %v489 = vpop.f32.mrf.mxu0
    %v490 = vadd.f32 %v140, %v489
    %v491 = vpop.f32.mrf.mxu0
    %v492 = vadd.f32 %v136, %v491
    %v493 = vpop.f32.mrf.mxu0
    %v494 = vadd.f32 %v140, %v493
    %495 = vmatprep.mubr.bf16.mxu0 0
    %496 = vmatmul.mubr.bf16.gmra.mxu0 %v299
    %v497 = vpop.f32.mrf.mxu0
    %v498 = vadd.f32 %v136, %v497
    %v499 = vpop.f32.mrf.mxu0
    %v500 = vadd.f32 %v140, %v499
    %v501 = vpop.f32.mrf.mxu0
    %v502 = vadd.f32 %v136, %v501
    %v503 = vpop.f32.mrf.mxu0
    %v504 = vadd.f32 %v140, %v503
    %505 = vmatprep.mubr.bf16.mxu0 0
    %506 = vmatmul.mubr.bf16.gmra.mxu0 %v302
    %v507 = vpop.f32.mrf.mxu0
    %v508 = vadd.f32 %v136, %v507
    %v509 = vpop.f32.mrf.mxu0
    %v510 = vadd.f32 %v140, %v509
    %v511 = vpop.f32.mrf.mxu0
    %v512 = vadd.f32 %v136, %v511
    %v513 = vpop.f32.mrf.mxu0
    %v514 = vadd.f32 %v140, %v513
    %515 = vmatprep.mubr.bf16.mxu0 0
    %516 = vmatmul.mubr.bf16.gmra.mxu0 %v305
    %v517 = vpop.f32.mrf.mxu0
    %v518 = vadd.f32 %v136, %v517
    %v519 = vpop.f32.mrf.mxu0
    %v520 = vadd.f32 %v140, %v519
    %v521 = vpop.f32.mrf.mxu0
    %v522 = vadd.f32 %v136, %v521
    %v523 = vpop.f32.mrf.mxu0
    %v524 = vadd.f32 %v140, %v523
    %525 = vmatprep.mubr.bf16.mxu0 0
    %526 = vmatmul.mubr.bf16.gmra.mxu0 %v308
    %v527 = vpop.f32.mrf.mxu0
    %v528 = vadd.f32 %v136, %v527
    %v529 = vpop.f32.mrf.mxu0
    %v530 = vadd.f32 %v140, %v529
    %v531 = vpop.f32.mrf.mxu0
    %v532 = vadd.f32 %v136, %v531
    %v533 = vpop.f32.mrf.mxu0
    %v534 = vadd.f32 %v140, %v533
    %535 = vdwg.mxu0
    %536 = vmatprep.subr.bf16.mxu0 0
    %537 = vmatpush1.bf16.msra.mxu0 0
    %538 = vmatprep.subr.bf16.mxu0 0
    %539 = vmatpush1.bf16.msra.mxu0 0
    %540 = vmatprep.subr.bf16.mxu0 0
    %541 = vmatpush1.bf16.msra.mxu0 0
    %542 = vmatprep.subr.bf16.mxu0 0
    %543 = vmatpush1.bf16.msra.mxu0 0
    %544 = vmatprep.subr.bf16.mxu0 0
    %545 = vmatpush1.bf16.msra.mxu0 0
    %546 = vmatprep.subr.bf16.mxu0 0
    %547 = vmatpush1.bf16.msra.mxu0 0
    %548 = vmatprep.subr.bf16.mxu0 %v266
    %549 = vmatpush1.bf16.msra.mxu0 %v265
    %550 = vmatprep.subr.bf16.mxu0 %v258
    %551 = vmatpush1.bf16.msra.mxu0 %v257
    %552 = vmatprep.subr.bf16.mxu0 0
    %553 = vmatpush2.bf16.msra.mxu0 0
    %554 = vmatprep.subr.bf16.mxu0 0
    %555 = vmatpush2.bf16.msra.mxu0 0
    %556 = vmatprep.subr.bf16.mxu0 0
    %557 = vmatpush2.bf16.msra.mxu0 0
    %558 = vmatprep.subr.bf16.mxu0 0
    %559 = vmatpush2.bf16.msra.mxu0 0
    %560 = vmatprep.subr.bf16.mxu0 0
    %561 = vmatpush2.bf16.msra.mxu0 0
    %562 = vmatprep.subr.bf16.mxu0 0
    %563 = vmatpush2.bf16.msra.mxu0 0
    %564 = vmatprep.subr.bf16.mxu0 0
    %565 = vmatpush2.bf16.msra.mxu0 0
    %566 = vmatprep.subr.bf16.mxu0 0
    %567 = vmatpush2.bf16.msra.mxu0 0
    %568 = vmatprep.mubr.bf16.mxu0 0
    %569 = vmatmul.mubr.bf16.gmra.mxu0 %v287
    %v570 = vpop.f32.mrf.mxu0
    %v571 = vadd.f32 %v144, %v570
    %v572 = vpop.f32.mrf.mxu0
    %v573 = vadd.f32 %v148, %v572
    %v574 = vpop.f32.mrf.mxu0
    %v575 = vadd.f32 %v144, %v574
    %v576 = vpop.f32.mrf.mxu0
    %v577 = vadd.f32 %v148, %v576
    %578 = vmatprep.mubr.bf16.mxu0 0
    %579 = vmatmul.mubr.bf16.gmra.mxu0 %v290
    %v580 = vpop.f32.mrf.mxu0
    %v581 = vadd.f32 %v144, %v580
    %v582 = vpop.f32.mrf.mxu0
    %v583 = vadd.f32 %v148, %v582
    %v584 = vpop.f32.mrf.mxu0
    %v585 = vadd.f32 %v144, %v584
    %v586 = vpop.f32.mrf.mxu0
    %v587 = vadd.f32 %v148, %v586
    %588 = vmatprep.mubr.bf16.mxu0 0
    %589 = vmatmul.mubr.bf16.gmra.mxu0 %v293
    %v590 = vpop.f32.mrf.mxu0
    %v591 = vadd.f32 %v144, %v590
    %v592 = vpop.f32.mrf.mxu0
    %v593 = vadd.f32 %v148, %v592
    %v594 = vpop.f32.mrf.mxu0
    %v595 = vadd.f32 %v144, %v594
    %v596 = vpop.f32.mrf.mxu0
    %v597 = vadd.f32 %v148, %v596
    %598 = vmatprep.mubr.bf16.mxu0 0
    %599 = vmatmul.mubr.bf16.gmra.mxu0 %v296
    %v600 = vpop.f32.mrf.mxu0
    %v601 = vadd.f32 %v144, %v600
    %v602 = vpop.f32.mrf.mxu0
    %v603 = vadd.f32 %v148, %v602
    %v604 = vpop.f32.mrf.mxu0
    %v605 = vadd.f32 %v144, %v604
    %v606 = vpop.f32.mrf.mxu0
    %v607 = vadd.f32 %v148, %v606
    %608 = vmatprep.mubr.bf16.mxu0 0
    %609 = vmatmul.mubr.bf16.gmra.mxu0 %v299
    %v610 = vpop.f32.mrf.mxu0
    %v611 = vadd.f32 %v144, %v610
    %v612 = vpop.f32.mrf.mxu0
    %v613 = vadd.f32 %v148, %v612
    %v614 = vpop.f32.mrf.mxu0
    %v615 = vadd.f32 %v144, %v614
    %v616 = vpop.f32.mrf.mxu0
    %v617 = vadd.f32 %v148, %v616
    %618 = vmatprep.mubr.bf16.mxu0 0
    %619 = vmatmul.mubr.bf16.gmra.mxu0 %v302
    %v620 = vpop.f32.mrf.mxu0
    %v621 = vadd.f32 %v144, %v620
    %v622 = vpop.f32.mrf.mxu0
    %v623 = vadd.f32 %v148, %v622
    %v624 = vpop.f32.mrf.mxu0
    %v625 = vadd.f32 %v144, %v624
    %v626 = vpop.f32.mrf.mxu0
    %v627 = vadd.f32 %v148, %v626
    %628 = vmatprep.mubr.bf16.mxu0 0
    %629 = vmatmul.mubr.bf16.gmra.mxu0 %v305
    %v630 = vpop.f32.mrf.mxu0
    %v631 = vadd.f32 %v144, %v630
    %v632 = vpop.f32.mrf.mxu0
    %v633 = vadd.f32 %v148, %v632
    %v634 = vpop.f32.mrf.mxu0
    %v635 = vadd.f32 %v144, %v634
    %v636 = vpop.f32.mrf.mxu0
    %v637 = vadd.f32 %v148, %v636
    %638 = vmatprep.mubr.bf16.mxu0 0
    %639 = vmatmul.mubr.bf16.gmra.mxu0 %v308
    %v640 = vpop.f32.mrf.mxu0
    %v641 = vadd.f32 %v144, %v640
    %v642 = vpop.f32.mrf.mxu0
    %v643 = vadd.f32 %v148, %v642
    %v644 = vpop.f32.mrf.mxu0
    %v645 = vadd.f32 %v144, %v644
    %v646 = vpop.f32.mrf.mxu0
    %v647 = vadd.f32 %v148, %v646
    %648 = vdwg.mxu0
    %649 = vmatprep.subr.bf16.mxu0 0
    %650 = vmatpush1.bf16.msra.mxu0 0
    %651 = vmatprep.subr.bf16.mxu0 0
    %652 = vmatpush1.bf16.msra.mxu0 0
    %653 = vmatprep.subr.bf16.mxu0 0
    %654 = vmatpush1.bf16.msra.mxu0 0
    %655 = vmatprep.subr.bf16.mxu0 0
    %656 = vmatpush1.bf16.msra.mxu0 0
    %657 = vmatprep.subr.bf16.mxu0 0
    %658 = vmatpush1.bf16.msra.mxu0 0
    %659 = vmatprep.subr.bf16.mxu0 0
    %660 = vmatpush1.bf16.msra.mxu0 0
    %661 = vmatprep.subr.bf16.mxu0 %v268
    %662 = vmatpush1.bf16.msra.mxu0 %v267
    %663 = vmatprep.subr.bf16.mxu0 %v260
    %664 = vmatpush1.bf16.msra.mxu0 %v259
    %665 = vmatprep.subr.bf16.mxu0 0
    %666 = vmatpush2.bf16.msra.mxu0 0
    %667 = vmatprep.subr.bf16.mxu0 0
    %668 = vmatpush2.bf16.msra.mxu0 0
    %669 = vmatprep.subr.bf16.mxu0 0
    %670 = vmatpush2.bf16.msra.mxu0 0
    %671 = vmatprep.subr.bf16.mxu0 0
    %672 = vmatpush2.bf16.msra.mxu0 0
    %673 = vmatprep.subr.bf16.mxu0 0
    %674 = vmatpush2.bf16.msra.mxu0 0
    %675 = vmatprep.subr.bf16.mxu0 0
    %676 = vmatpush2.bf16.msra.mxu0 0
    %677 = vmatprep.subr.bf16.mxu0 0
    %678 = vmatpush2.bf16.msra.mxu0 0
    %679 = vmatprep.subr.bf16.mxu0 0
    %680 = vmatpush2.bf16.msra.mxu0 0
    %681 = vmatprep.mubr.bf16.mxu0 0
    %682 = vmatmul.mubr.bf16.gmra.mxu0 %v287
    %v683 = vpop.f32.mrf.mxu0
    %v684 = vadd.f32 %v152, %v683
    %v685 = vpop.f32.mrf.mxu0
    %v686 = vadd.f32 %v156, %v685
    %v687 = vpop.f32.mrf.mxu0
    %v688 = vadd.f32 %v152, %v687
    %v689 = vpop.f32.mrf.mxu0
    %v690 = vadd.f32 %v156, %v689
    %691 = vmatprep.mubr.bf16.mxu0 0
    %692 = vmatmul.mubr.bf16.gmra.mxu0 %v290
    %v693 = vpop.f32.mrf.mxu0
    %v694 = vadd.f32 %v152, %v693
    %v695 = vpop.f32.mrf.mxu0
    %v696 = vadd.f32 %v156, %v695
    %v697 = vpop.f32.mrf.mxu0
    %v698 = vadd.f32 %v152, %v697
    %v699 = vpop.f32.mrf.mxu0
    %v700 = vadd.f32 %v156, %v699
    %701 = vmatprep.mubr.bf16.mxu0 0
    %702 = vmatmul.mubr.bf16.gmra.mxu0 %v293
    %v703 = vpop.f32.mrf.mxu0
    %v704 = vadd.f32 %v152, %v703
    %v705 = vpop.f32.mrf.mxu0
    %v706 = vadd.f32 %v156, %v705
    %v707 = vpop.f32.mrf.mxu0
    %v708 = vadd.f32 %v152, %v707
    %v709 = vpop.f32.mrf.mxu0
    %v710 = vadd.f32 %v156, %v709
    %711 = vmatprep.mubr.bf16.mxu0 0
    %712 = vmatmul.mubr.bf16.gmra.mxu0 %v296
    %v713 = vpop.f32.mrf.mxu0
    %v714 = vadd.f32 %v152, %v713
    %v715 = vpop.f32.mrf.mxu0
    %v716 = vadd.f32 %v156, %v715
    %v717 = vpop.f32.mrf.mxu0
    %v718 = vadd.f32 %v152, %v717
    %v719 = vpop.f32.mrf.mxu0
    %v720 = vadd.f32 %v156, %v719
    %721 = vmatprep.mubr.bf16.mxu0 0
    %722 = vmatmul.mubr.bf16.gmra.mxu0 %v299
    %v723 = vpop.f32.mrf.mxu0
    %v724 = vadd.f32 %v152, %v723
    %v725 = vpop.f32.mrf.mxu0
    %v726 = vadd.f32 %v156, %v725
    %v727 = vpop.f32.mrf.mxu0
    %v728 = vadd.f32 %v152, %v727
    %v729 = vpop.f32.mrf.mxu0
    %v730 = vadd.f32 %v156, %v729
    %731 = vmatprep.mubr.bf16.mxu0 0
    %732 = vmatmul.mubr.bf16.gmra.mxu0 %v302
    %v733 = vpop.f32.mrf.mxu0
    %v734 = vadd.f32 %v152, %v733
    %v735 = vpop.f32.mrf.mxu0
    %v736 = vadd.f32 %v156, %v735
    %v737 = vpop.f32.mrf.mxu0
    %v738 = vadd.f32 %v152, %v737
    %v739 = vpop.f32.mrf.mxu0
    %v740 = vadd.f32 %v156, %v739
    %741 = vmatprep.mubr.bf16.mxu0 0
    %742 = vmatmul.mubr.bf16.gmra.mxu0 %v305
    %v743 = vpop.f32.mrf.mxu0
    %v744 = vadd.f32 %v152, %v743
    %v745 = vpop.f32.mrf.mxu0
    %v746 = vadd.f32 %v156, %v745
    %v747 = vpop.f32.mrf.mxu0
    %v748 = vadd.f32 %v152, %v747
    %v749 = vpop.f32.mrf.mxu0
    %v750 = vadd.f32 %v156, %v749
    %751 = vmatprep.mubr.bf16.mxu0 0
    %752 = vmatmul.mubr.bf16.gmra.mxu0 %v308
    %v753 = vpop.f32.mrf.mxu0
    %v754 = vadd.f32 %v152, %v753
    %v755 = vpop.f32.mrf.mxu0
    %v756 = vadd.f32 %v156, %v755
    %v757 = vpop.f32.mrf.mxu0
    %v758 = vadd.f32 %v152, %v757
    %v759 = vpop.f32.mrf.mxu0
    %v760 = vadd.f32 %v156, %v759
    %761 = vdwg.mxu0
    %v762 = vmax.f32 %v345, 0.0
    %v763 = vmax.f32 %v347, 0.0
    %v764 = vmax.f32 %v458, 0.0
    %v765 = vmax.f32 %v460, 0.0
    %v766 = vmax.f32 %v571, 0.0
    %v767 = vmax.f32 %v573, 0.0
    %v768 = vmax.f32 %v684, 0.0
    %v769 = vmax.f32 %v686, 0.0
    %v770 = vmax.f32 %v349, 0.0
    %v771 = vmax.f32 %v351, 0.0
    %v772 = vmax.f32 %v462, 0.0
    %v773 = vmax.f32 %v464, 0.0
    %v774 = vmax.f32 %v575, 0.0
    %v775 = vmax.f32 %v577, 0.0
    %v776 = vmax.f32 %v688, 0.0
    %v777 = vmax.f32 %v690, 0.0
    %v778 = vmax.f32 %v355, 0.0
    %v779 = vmax.f32 %v357, 0.0
    %v780 = vmax.f32 %v468, 0.0
    %v781 = vmax.f32 %v470, 0.0
    %v782 = vmax.f32 %v581, 0.0
    %v783 = vmax.f32 %v583, 0.0
    %v784 = vmax.f32 %v694, 0.0
    %v785 = vmax.f32 %v696, 0.0
    %v786 = vmax.f32 %v359, 0.0
    %v787 = vmax.f32 %v361, 0.0
    %v788 = vmax.f32 %v472, 0.0
    %v789 = vmax.f32 %v474, 0.0
    %v790 = vmax.f32 %v585, 0.0
    %v791 = vmax.f32 %v587, 0.0
    %v792 = vmax.f32 %v698, 0.0
    %v793 = vmax.f32 %v700, 0.0
    %v794 = vmax.f32 %v365, 0.0
    %v795 = vmax.f32 %v367, 0.0
    %v796 = vmax.f32 %v478, 0.0
    %v797 = vmax.f32 %v480, 0.0
    %v798 = vmax.f32 %v591, 0.0
    %v799 = vmax.f32 %v593, 0.0
    %v800 = vmax.f32 %v704, 0.0
    %v801 = vmax.f32 %v706, 0.0
    %v802 = vmax.f32 %v369, 0.0
    %v803 = vmax.f32 %v371, 0.0
    %v804 = vmax.f32 %v482, 0.0
    %v805 = vmax.f32 %v484, 0.0
    %v806 = vmax.f32 %v595, 0.0
    %v807 = vmax.f32 %v597, 0.0
    %v808 = vmax.f32 %v708, 0.0
    %v809 = vmax.f32 %v710, 0.0
    %v810 = vmax.f32 %v375, 0.0
    %v811 = vmax.f32 %v377, 0.0
    %v812 = vmax.f32 %v488, 0.0
    %v813 = vmax.f32 %v490, 0.0
    %v814 = vmax.f32 %v601, 0.0
    %v815 = vmax.f32 %v603, 0.0
    %v816 = vmax.f32 %v714, 0.0
    %v817 = vmax.f32 %v716, 0.0
    %v818 = vmax.f32 %v379, 0.0
    %v819 = vmax.f32 %v381, 0.0
    %v820 = vmax.f32 %v492, 0.0
    %v821 = vmax.f32 %v494, 0.0
    %v822 = vmax.f32 %v605, 0.0
    %v823 = vmax.f32 %v607, 0.0
    %v824 = vmax.f32 %v718, 0.0
    %v825 = vmax.f32 %v720, 0.0
    %v826 = vmax.f32 %v385, 0.0
    %v827 = vmax.f32 %v387, 0.0
    %v828 = vmax.f32 %v498, 0.0
    %v829 = vmax.f32 %v500, 0.0
    %v830 = vmax.f32 %v611, 0.0
    %v831 = vmax.f32 %v613, 0.0
    %v832 = vmax.f32 %v724, 0.0
    %v833 = vmax.f32 %v726, 0.0
    %v834 = vmax.f32 %v389, 0.0
    %v835 = vmax.f32 %v391, 0.0
    %v836 = vmax.f32 %v502, 0.0
    %v837 = vmax.f32 %v504, 0.0
    %v838 = vmax.f32 %v615, 0.0
    %v839 = vmax.f32 %v617, 0.0
    %v840 = vmax.f32 %v728, 0.0
    %v841 = vmax.f32 %v730, 0.0
    %v842 = vmax.f32 %v395, 0.0
    %v843 = vmax.f32 %v397, 0.0
    %v844 = vmax.f32 %v508, 0.0
    %v845 = vmax.f32 %v510, 0.0
    %v846 = vmax.f32 %v621, 0.0
    %v847 = vmax.f32 %v623, 0.0
    %v848 = vmax.f32 %v734, 0.0
    %v849 = vmax.f32 %v736, 0.0
    %v850 = vmax.f32 %v399, 0.0
    %v851 = vmax.f32 %v401, 0.0
    %v852 = vmax.f32 %v512, 0.0
    %v853 = vmax.f32 %v514, 0.0
    %v854 = vmax.f32 %v625, 0.0
    %v855 = vmax.f32 %v627, 0.0
    %v856 = vmax.f32 %v738, 0.0
    %v857 = vmax.f32 %v740, 0.0
    %v858 = vmax.f32 %v405, 0.0
    %v859 = vmax.f32 %v407, 0.0
    %v860 = vmax.f32 %v518, 0.0
    %v861 = vmax.f32 %v520, 0.0
    %v862 = vmax.f32 %v631, 0.0
    %v863 = vmax.f32 %v633, 0.0
    %v864 = vmax.f32 %v744, 0.0
    %v865 = vmax.f32 %v746, 0.0
    %v866 = vmax.f32 %v409, 0.0
    %v867 = vmax.f32 %v411, 0.0
    %v868 = vmax.f32 %v522, 0.0
    %v869 = vmax.f32 %v524, 0.0
    %v870 = vmax.f32 %v635, 0.0
    %v871 = vmax.f32 %v637, 0.0
    %v872 = vmax.f32 %v748, 0.0
    %v873 = vmax.f32 %v750, 0.0
    %v874 = vmax.f32 %v415, 0.0
    %v875 = vmax.f32 %v417, 0.0
    %v876 = vmax.f32 %v528, 0.0
    %v877 = vmax.f32 %v530, 0.0
    %v878 = vmax.f32 %v641, 0.0
    %v879 = vmax.f32 %v643, 0.0
    %v880 = vmax.f32 %v754, 0.0
    %v881 = vmax.f32 %v756, 0.0
    %v882 = vmax.f32 %v419, 0.0
    %v883 = vmax.f32 %v421, 0.0
    %v884 = vmax.f32 %v532, 0.0
    %v885 = vmax.f32 %v534, 0.0
    %v886 = vmax.f32 %v645, 0.0
    %v887 = vmax.f32 %v647, 0.0
    %v888 = vmax.f32 %v758, 0.0
    %v889 = vmax.f32 %v760, 0.0
    %v890 = vpack.c.bf16 %v770, %v762
    %v891 = vpack.c.bf16 %v771, %v763
    %v892 = vpack.c.bf16 %v772, %v764
    %v893 = vpack.c.bf16 %v773, %v765
    %v894 = vpack.c.bf16 %v774, %v766
    %v895 = vpack.c.bf16 %v775, %v767
    %v896 = vpack.c.bf16 %v776, %v768
    %v897 = vpack.c.bf16 %v777, %v769
    %v898 = vpack.c.bf16 %v786, %v778
    %v899 = vpack.c.bf16 %v787, %v779
    %v900 = vpack.c.bf16 %v788, %v780
    %v901 = vpack.c.bf16 %v789, %v781
    %v902 = vpack.c.bf16 %v790, %v782
    %v903 = vpack.c.bf16 %v791, %v783
    %v904 = vpack.c.bf16 %v792, %v784
    %v905 = vpack.c.bf16 %v793, %v785
    %v906 = vpack.c.bf16 %v802, %v794
    %v907 = vpack.c.bf16 %v803, %v795
    %v908 = vpack.c.bf16 %v804, %v796
    %v909 = vpack.c.bf16 %v805, %v797
    %v910 = vpack.c.bf16 %v806, %v798
    %v911 = vpack.c.bf16 %v807, %v799
    %v912 = vpack.c.bf16 %v808, %v800
    %v913 = vpack.c.bf16 %v809, %v801
    %v914 = vpack.c.bf16 %v818, %v810
    %v915 = vpack.c.bf16 %v819, %v811
    %v916 = vpack.c.bf16 %v820, %v812
    %v917 = vpack.c.bf16 %v821, %v813
    %v918 = vpack.c.bf16 %v822, %v814
    %v919 = vpack.c.bf16 %v823, %v815
    %v920 = vpack.c.bf16 %v824, %v816
    %v921 = vpack.c.bf16 %v825, %v817
    %v922 = vpack.c.bf16 %v834, %v826
    %v923 = vpack.c.bf16 %v835, %v827
    %v924 = vpack.c.bf16 %v836, %v828
    %v925 = vpack.c.bf16 %v837, %v829
    %v926 = vpack.c.bf16 %v838, %v830
    %v927 = vpack.c.bf16 %v839, %v831
    %v928 = vpack.c.bf16 %v840, %v832
    %v929 = vpack.c.bf16 %v841, %v833
    %v930 = vpack.c.bf16 %v850, %v842
    %v931 = vpack.c.bf16 %v851, %v843
    %v932 = vpack.c.bf16 %v852, %v844
    %v933 = vpack.c.bf16 %v853, %v845
    %v934 = vpack.c.bf16 %v854, %v846
    %v935 = vpack.c.bf16 %v855, %v847
    %v936 = vpack.c.bf16 %v856, %v848
    %v937 = vpack.c.bf16 %v857, %v849
    %v938 = vpack.c.bf16 %v866, %v858
    %v939 = vpack.c.bf16 %v867, %v859
    %v940 = vpack.c.bf16 %v868, %v860
    %v941 = vpack.c.bf16 %v869, %v861
    %v942 = vpack.c.bf16 %v870, %v862
    %v943 = vpack.c.bf16 %v871, %v863
    %v944 = vpack.c.bf16 %v872, %v864
    %v945 = vpack.c.bf16 %v873, %v865
    %v946 = vpack.c.bf16 %v882, %v874
    %v947 = vpack.c.bf16 %v883, %v875
    %v948 = vpack.c.bf16 %v884, %v876
    %v949 = vpack.c.bf16 %v885, %v877
    %v950 = vpack.c.bf16 %v886, %v878
    %v951 = vpack.c.bf16 %v887, %v879
    %v952 = vpack.c.bf16 %v888, %v880
    %v953 = vpack.c.bf16 %v889, %v881
    %v954 = vld [vmem:[#allocation8] sm:$0xff]
    %v955 = vld [vmem:[#allocation8 + $0x8] sm:$0xff]
    %v956 = vld [vmem:[#allocation8 + $0x10] sm:$0xff]
    %v957 = vld [vmem:[#allocation8 + $0x18] sm:$0xff]
    %v958 = vld [vmem:[#allocation8 + $0x20] sm:$0xff]
    %v959 = vld [vmem:[#allocation8 + $0x28] sm:$0xff]
    %v960 = vld [vmem:[#allocation8 + $0x30] sm:$0xff]
    %v961 = vld [vmem:[#allocation8 + $0x38] sm:$0xff]
    %v962 = vld [vmem:[#allocation8 + $0x40] sm:$0xff]
    %v963 = vld [vmem:[#allocation8 + $0x48] sm:$0xff]
    %v964 = vld [vmem:[#allocation8 + $0x50] sm:$0xff]
    %v965 = vld [vmem:[#allocation8 + $0x58] sm:$0xff]
    %v966 = vld [vmem:[#allocation8 + $0x60] sm:$0xff]
    %v967 = vld [vmem:[#allocation8 + $0x68] sm:$0xff]
    %v968 = vld [vmem:[#allocation8 + $0x70] sm:$0xff]
    %v969 = vld [vmem:[#allocation8 + $0x78] sm:$0xff]
    %v970 = vld [vmem:[#allocation8 + $0x80] sm:$0xff]
    %v971 = vld [vmem:[#allocation8 + $0x88] sm:$0xff]
    %v972 = vld [vmem:[#allocation8 + $0x90] sm:$0xff]
    %v973 = vld [vmem:[#allocation8 + $0x98] sm:$0xff]
    %v974 = vld [vmem:[#allocation8 + $0xa0] sm:$0xff]
    %v975 = vld [vmem:[#allocation8 + $0xa8] sm:$0xff]
    %v976 = vld [vmem:[#allocation8 + $0xb0] sm:$0xff]
    %v977 = vld [vmem:[#allocation8 + $0xb8] sm:$0xff]
    %v978 = vld [vmem:[#allocation8 + $0xc0] sm:$0xff]
    %v979 = vld [vmem:[#allocation8 + $0xc8] sm:$0xff]
    %v980 = vld [vmem:[#allocation8 + $0xd0] sm:$0xff]
    %v981 = vld [vmem:[#allocation8 + $0xd8] sm:$0xff]
    %v982 = vld [vmem:[#allocation8 + $0xe0] sm:$0xff]
    %v983 = vld [vmem:[#allocation8 + $0xe8] sm:$0xff]
    %v984 = vld [vmem:[#allocation8 + $0xf0] sm:$0xff]
    %v985 = vld [vmem:[#allocation8 + $0xf8] sm:$0xff]
    %v986 = vld [vmem:[#allocation8 + $0x100] sm:$0xff]
    %v987 = vld [vmem:[#allocation8 + $0x108] sm:$0xff]
    %v988 = vld [vmem:[#allocation8 + $0x110] sm:$0xff]
    %v989 = vld [vmem:[#allocation8 + $0x118] sm:$0xff]
    %v990 = vld [vmem:[#allocation8 + $0x120] sm:$0xff]
    %v991 = vld [vmem:[#allocation8 + $0x128] sm:$0xff]
    %v992 = vld [vmem:[#allocation8 + $0x130] sm:$0xff]
    %v993 = vld [vmem:[#allocation8 + $0x138] sm:$0xff]
    %v994 = vld [vmem:[#allocation8 + $0x140] sm:$0xff]
    %v995 = vld [vmem:[#allocation8 + $0x148] sm:$0xff]
    %v996 = vld [vmem:[#allocation8 + $0x150] sm:$0xff]
    %v997 = vld [vmem:[#allocation8 + $0x158] sm:$0xff]
    %v998 = vld [vmem:[#allocation8 + $0x160] sm:$0xff]
    %v999 = vld [vmem:[#allocation8 + $0x168] sm:$0xff]
    %v1000 = vld [vmem:[#allocation8 + $0x170] sm:$0xff]
    %v1001 = vld [vmem:[#allocation8 + $0x178] sm:$0xff]
    %v1002 = vld [vmem:[#allocation8 + $0x180] sm:$0xff]
    %v1003 = vld [vmem:[#allocation8 + $0x188] sm:$0xff]
    %v1004 = vld [vmem:[#allocation8 + $0x190] sm:$0xff]
    %v1005 = vld [vmem:[#allocation8 + $0x198] sm:$0xff]
    %v1006 = vld [vmem:[#allocation8 + $0x1a0] sm:$0xff]
    %v1007 = vld [vmem:[#allocation8 + $0x1a8] sm:$0xff]
    %v1008 = vld [vmem:[#allocation8 + $0x1b0] sm:$0xff]
    %v1009 = vld [vmem:[#allocation8 + $0x1b8] sm:$0xff]
    %v1010 = vld [vmem:[#allocation8 + $0x1c0] sm:$0xff]
    %v1011 = vld [vmem:[#allocation8 + $0x1c8] sm:$0xff]
    %v1012 = vld [vmem:[#allocation8 + $0x1d0] sm:$0xff]
    %v1013 = vld [vmem:[#allocation8 + $0x1d8] sm:$0xff]
    %v1014 = vld [vmem:[#allocation8 + $0x1e0] sm:$0xff]
    %v1015 = vld [vmem:[#allocation8 + $0x1e8] sm:$0xff]
    %v1016 = vld [vmem:[#allocation8 + $0x1f0] sm:$0xff]
    %v1017 = vld [vmem:[#allocation8 + $0x1f8] sm:$0xff]
    %v1018 = vld [vmem:[#allocation8 + $0x200] sm:$0xff]
    %v1019 = vld [vmem:[#allocation8 + $0x208] sm:$0xff]
    %v1020 = vld [vmem:[#allocation8 + $0x210] sm:$0xff]
    %v1021 = vld [vmem:[#allocation8 + $0x218] sm:$0xff]
    %v1022 = vld [vmem:[#allocation8 + $0x220] sm:$0xff]
    %v1023 = vld [vmem:[#allocation8 + $0x228] sm:$0xff]
    %v1024 = vld [vmem:[#allocation8 + $0x230] sm:$0xff]
    %v1025 = vld [vmem:[#allocation8 + $0x238] sm:$0xff]
    %v1026 = vld [vmem:[#allocation8 + $0x240] sm:$0xff]
    %v1027 = vld [vmem:[#allocation8 + $0x248] sm:$0xff]
    %v1028 = vld [vmem:[#allocation8 + $0x250] sm:$0xff]
    %v1029 = vld [vmem:[#allocation8 + $0x258] sm:$0xff]
    %v1030 = vld [vmem:[#allocation8 + $0x260] sm:$0xff]
    %v1031 = vld [vmem:[#allocation8 + $0x268] sm:$0xff]
    %v1032 = vld [vmem:[#allocation8 + $0x270] sm:$0xff]
    %v1033 = vld [vmem:[#allocation8 + $0x278] sm:$0xff]
    %v1034 = vld [vmem:[#allocation8 + $0x280] sm:$0xff]
    %v1035 = vld [vmem:[#allocation8 + $0x288] sm:$0xff]
    %v1036 = vld [vmem:[#allocation8 + $0x290] sm:$0xff]
    %v1037 = vld [vmem:[#allocation8 + $0x298] sm:$0xff]
    %v1038 = vld [vmem:[#allocation8 + $0x2a0] sm:$0xff]
    %v1039 = vld [vmem:[#allocation8 + $0x2a8] sm:$0xff]
    %v1040 = vld [vmem:[#allocation8 + $0x2b0] sm:$0xff]
    %v1041 = vld [vmem:[#allocation8 + $0x2b8] sm:$0xff]
    %v1042 = vld [vmem:[#allocation8 + $0x2c0] sm:$0xff]
    %v1043 = vld [vmem:[#allocation8 + $0x2c8] sm:$0xff]
    %v1044 = vld [vmem:[#allocation8 + $0x2d0] sm:$0xff]
    %v1045 = vld [vmem:[#allocation8 + $0x2d8] sm:$0xff]
    %v1046 = vld [vmem:[#allocation8 + $0x2e0] sm:$0xff]
    %v1047 = vld [vmem:[#allocation8 + $0x2e8] sm:$0xff]
    %v1048 = vld [vmem:[#allocation8 + $0x2f0] sm:$0xff]
    %v1049 = vld [vmem:[#allocation8 + $0x2f8] sm:$0xff]
    %v1050 = vld [vmem:[#allocation8 + $0x300] sm:$0xff]
    %v1051 = vld [vmem:[#allocation8 + $0x308] sm:$0xff]
    %v1052 = vld [vmem:[#allocation8 + $0x310] sm:$0xff]
    %v1053 = vld [vmem:[#allocation8 + $0x318] sm:$0xff]
    %v1054 = vld [vmem:[#allocation8 + $0x320] sm:$0xff]
    %v1055 = vld [vmem:[#allocation8 + $0x328] sm:$0xff]
    %v1056 = vld [vmem:[#allocation8 + $0x330] sm:$0xff]
    %v1057 = vld [vmem:[#allocation8 + $0x338] sm:$0xff]
    %v1058 = vld [vmem:[#allocation8 + $0x340] sm:$0xff]
    %v1059 = vld [vmem:[#allocation8 + $0x348] sm:$0xff]
    %v1060 = vld [vmem:[#allocation8 + $0x350] sm:$0xff]
    %v1061 = vld [vmem:[#allocation8 + $0x358] sm:$0xff]
    %v1062 = vld [vmem:[#allocation8 + $0x360] sm:$0xff]
    %v1063 = vld [vmem:[#allocation8 + $0x368] sm:$0xff]
    %v1064 = vld [vmem:[#allocation8 + $0x370] sm:$0xff]
    %v1065 = vld [vmem:[#allocation8 + $0x378] sm:$0xff]
    %v1066 = vld [vmem:[#allocation8 + $0x380] sm:$0xff]
    %v1067 = vld [vmem:[#allocation8 + $0x388] sm:$0xff]
    %v1068 = vld [vmem:[#allocation8 + $0x390] sm:$0xff]
    %v1069 = vld [vmem:[#allocation8 + $0x398] sm:$0xff]
    %v1070 = vld [vmem:[#allocation8 + $0x3a0] sm:$0xff]
    %v1071 = vld [vmem:[#allocation8 + $0x3a8] sm:$0xff]
    %v1072 = vld [vmem:[#allocation8 + $0x3b0] sm:$0xff]
    %v1073 = vld [vmem:[#allocation8 + $0x3b8] sm:$0xff]
    %v1074 = vld [vmem:[#allocation8 + $0x3c0] sm:$0xff]
    %v1075 = vld [vmem:[#allocation8 + $0x3c8] sm:$0xff]
    %v1076 = vld [vmem:[#allocation8 + $0x3d0] sm:$0xff]
    %v1077 = vld [vmem:[#allocation8 + $0x3d8] sm:$0xff]
    %v1078 = vld [vmem:[#allocation8 + $0x3e0] sm:$0xff]
    %v1079 = vld [vmem:[#allocation8 + $0x3e8] sm:$0xff]
    %v1080 = vld [vmem:[#allocation8 + $0x3f0] sm:$0xff]
    %v1081 = vld [vmem:[#allocation8 + $0x3f8] sm:$0xff]
    %v1082 = vld [vmem:[#allocation8 + $0x400] sm:$0xff]
    %v1083 = vld [vmem:[#allocation8 + $0x408] sm:$0xff]
    %v1084 = vld [vmem:[#allocation8 + $0x410] sm:$0xff]
    %v1085 = vld [vmem:[#allocation8 + $0x418] sm:$0xff]
    %v1086 = vld [vmem:[#allocation8 + $0x420] sm:$0xff]
    %v1087 = vld [vmem:[#allocation8 + $0x428] sm:$0xff]
    %v1088 = vld [vmem:[#allocation8 + $0x430] sm:$0xff]
    %v1089 = vld [vmem:[#allocation8 + $0x438] sm:$0xff]
    %v1090 = vld [vmem:[#allocation8 + $0x440] sm:$0xff]
    %v1091 = vld [vmem:[#allocation8 + $0x448] sm:$0xff]
    %v1092 = vld [vmem:[#allocation8 + $0x450] sm:$0xff]
    %v1093 = vld [vmem:[#allocation8 + $0x458] sm:$0xff]
    %v1094 = vld [vmem:[#allocation8 + $0x460] sm:$0xff]
    %v1095 = vld [vmem:[#allocation8 + $0x468] sm:$0xff]
    %v1096 = vld [vmem:[#allocation8 + $0x470] sm:$0xff]
    %v1097 = vld [vmem:[#allocation8 + $0x478] sm:$0xff]
    %v1098 = vld [vmem:[#allocation8 + $0x480] sm:$0xff]
    %v1099 = vld [vmem:[#allocation8 + $0x488] sm:$0xff]
    %v1100 = vld [vmem:[#allocation8 + $0x490] sm:$0xff]
    %v1101 = vld [vmem:[#allocation8 + $0x498] sm:$0xff]
    %v1102 = vld [vmem:[#allocation8 + $0x4a0] sm:$0xff]
    %v1103 = vld [vmem:[#allocation8 + $0x4a8] sm:$0xff]
    %v1104 = vld [vmem:[#allocation8 + $0x4b0] sm:$0xff]
    %v1105 = vld [vmem:[#allocation8 + $0x4b8] sm:$0xff]
    %v1106 = vld [vmem:[#allocation8 + $0x4c0] sm:$0xff]
    %v1107 = vld [vmem:[#allocation8 + $0x4c8] sm:$0xff]
    %v1108 = vld [vmem:[#allocation8 + $0x4d0] sm:$0xff]
    %v1109 = vld [vmem:[#allocation8 + $0x4d8] sm:$0xff]
    %v1110 = vld [vmem:[#allocation8 + $0x4e0] sm:$0xff]
    %v1111 = vld [vmem:[#allocation8 + $0x4e8] sm:$0xff]
    %v1112 = vld [vmem:[#allocation8 + $0x4f0] sm:$0xff]
    %v1113 = vld [vmem:[#allocation8 + $0x4f8] sm:$0xff]
    %v1114 = vld [vmem:[#allocation8 + $0x500] sm:$0xff]
    %v1115 = vld [vmem:[#allocation8 + $0x508] sm:$0xff]
    %v1116 = vld [vmem:[#allocation8 + $0x510] sm:$0xff]
    %v1117 = vld [vmem:[#allocation8 + $0x518] sm:$0xff]
    %v1118 = vld [vmem:[#allocation8 + $0x520] sm:$0xff]
    %v1119 = vld [vmem:[#allocation8 + $0x528] sm:$0xff]
    %v1120 = vld [vmem:[#allocation8 + $0x530] sm:$0xff]
    %v1121 = vld [vmem:[#allocation8 + $0x538] sm:$0xff]
    %v1122 = vld [vmem:[#allocation8 + $0x540] sm:$0xff]
    %v1123 = vld [vmem:[#allocation8 + $0x548] sm:$0xff]
    %v1124 = vld [vmem:[#allocation8 + $0x550] sm:$0xff]
    %v1125 = vld [vmem:[#allocation8 + $0x558] sm:$0xff]
    %v1126 = vld [vmem:[#allocation8 + $0x560] sm:$0xff]
    %v1127 = vld [vmem:[#allocation8 + $0x568] sm:$0xff]
    %v1128 = vld [vmem:[#allocation8 + $0x570] sm:$0xff]
    %v1129 = vld [vmem:[#allocation8 + $0x578] sm:$0xff]
    %v1130 = vld [vmem:[#allocation8 + $0x580] sm:$0xff]
    %v1131 = vld [vmem:[#allocation8 + $0x588] sm:$0xff]
    %v1132 = vld [vmem:[#allocation8 + $0x590] sm:$0xff]
    %v1133 = vld [vmem:[#allocation8 + $0x598] sm:$0xff]
    %v1134 = vld [vmem:[#allocation8 + $0x5a0] sm:$0xff]
    %v1135 = vld [vmem:[#allocation8 + $0x5a8] sm:$0xff]
    %v1136 = vld [vmem:[#allocation8 + $0x5b0] sm:$0xff]
    %v1137 = vld [vmem:[#allocation8 + $0x5b8] sm:$0xff]
    %v1138 = vld [vmem:[#allocation8 + $0x5c0] sm:$0xff]
    %v1139 = vld [vmem:[#allocation8 + $0x5c8] sm:$0xff]
    %v1140 = vld [vmem:[#allocation8 + $0x5d0] sm:$0xff]
    %v1141 = vld [vmem:[#allocation8 + $0x5d8] sm:$0xff]
    %v1142 = vld [vmem:[#allocation8 + $0x5e0] sm:$0xff]
    %v1143 = vld [vmem:[#allocation8 + $0x5e8] sm:$0xff]
    %v1144 = vld [vmem:[#allocation8 + $0x5f0] sm:$0xff]
    %v1145 = vld [vmem:[#allocation8 + $0x5f8] sm:$0xff]
    %v1146 = vld [vmem:[#allocation8 + $0x600] sm:$0xff]
    %v1147 = vld [vmem:[#allocation8 + $0x608] sm:$0xff]
    %v1148 = vld [vmem:[#allocation8 + $0x610] sm:$0xff]
    %v1149 = vld [vmem:[#allocation8 + $0x618] sm:$0xff]
    %v1150 = vld [vmem:[#allocation8 + $0x620] sm:$0xff]
    %v1151 = vld [vmem:[#allocation8 + $0x628] sm:$0xff]
    %v1152 = vld [vmem:[#allocation8 + $0x630] sm:$0xff]
    %v1153 = vld [vmem:[#allocation8 + $0x638] sm:$0xff]
    %v1154 = vld [vmem:[#allocation8 + $0x640] sm:$0xff]
    %v1155 = vld [vmem:[#allocation8 + $0x648] sm:$0xff]
    %v1156 = vld [vmem:[#allocation8 + $0x650] sm:$0xff]
    %v1157 = vld [vmem:[#allocation8 + $0x658] sm:$0xff]
    %v1158 = vld [vmem:[#allocation8 + $0x660] sm:$0xff]
    %v1159 = vld [vmem:[#allocation8 + $0x668] sm:$0xff]
    %v1160 = vld [vmem:[#allocation8 + $0x670] sm:$0xff]
    %v1161 = vld [vmem:[#allocation8 + $0x678] sm:$0xff]
    %v1162 = vld [vmem:[#allocation8 + $0x680] sm:$0xff]
    %v1163 = vld [vmem:[#allocation8 + $0x688] sm:$0xff]
    %v1164 = vld [vmem:[#allocation8 + $0x690] sm:$0xff]
    %v1165 = vld [vmem:[#allocation8 + $0x698] sm:$0xff]
    %v1166 = vld [vmem:[#allocation8 + $0x6a0] sm:$0xff]
    %v1167 = vld [vmem:[#allocation8 + $0x6a8] sm:$0xff]
    %v1168 = vld [vmem:[#allocation8 + $0x6b0] sm:$0xff]
    %v1169 = vld [vmem:[#allocation8 + $0x6b8] sm:$0xff]
    %v1170 = vld [vmem:[#allocation8 + $0x6c0] sm:$0xff]
    %v1171 = vld [vmem:[#allocation8 + $0x6c8] sm:$0xff]
    %v1172 = vld [vmem:[#allocation8 + $0x6d0] sm:$0xff]
    %v1173 = vld [vmem:[#allocation8 + $0x6d8] sm:$0xff]
    %v1174 = vld [vmem:[#allocation8 + $0x6e0] sm:$0xff]
    %v1175 = vld [vmem:[#allocation8 + $0x6e8] sm:$0xff]
    %v1176 = vld [vmem:[#allocation8 + $0x6f0] sm:$0xff]
    %v1177 = vld [vmem:[#allocation8 + $0x6f8] sm:$0xff]
    %v1178 = vld [vmem:[#allocation8 + $0x700] sm:$0xff]
    %v1179 = vld [vmem:[#allocation8 + $0x708] sm:$0xff]
    %v1180 = vld [vmem:[#allocation8 + $0x710] sm:$0xff]
    %v1181 = vld [vmem:[#allocation8 + $0x718] sm:$0xff]
    %v1182 = vld [vmem:[#allocation8 + $0x720] sm:$0xff]
    %v1183 = vld [vmem:[#allocation8 + $0x728] sm:$0xff]
    %v1184 = vld [vmem:[#allocation8 + $0x730] sm:$0xff]
    %v1185 = vld [vmem:[#allocation8 + $0x738] sm:$0xff]
    %v1186 = vld [vmem:[#allocation8 + $0x740] sm:$0xff]
    %v1187 = vld [vmem:[#allocation8 + $0x748] sm:$0xff]
    %v1188 = vld [vmem:[#allocation8 + $0x750] sm:$0xff]
    %v1189 = vld [vmem:[#allocation8 + $0x758] sm:$0xff]
    %v1190 = vld [vmem:[#allocation8 + $0x760] sm:$0xff]
    %v1191 = vld [vmem:[#allocation8 + $0x768] sm:$0xff]
    %v1192 = vld [vmem:[#allocation8 + $0x770] sm:$0xff]
    %v1193 = vld [vmem:[#allocation8 + $0x778] sm:$0xff]
    %v1194 = vld [vmem:[#allocation8 + $0x780] sm:$0xff]
    %v1195 = vld [vmem:[#allocation8 + $0x788] sm:$0xff]
    %v1196 = vld [vmem:[#allocation8 + $0x790] sm:$0xff]
    %v1197 = vld [vmem:[#allocation8 + $0x798] sm:$0xff]
    %v1198 = vld [vmem:[#allocation8 + $0x7a0] sm:$0xff]
    %v1199 = vld [vmem:[#allocation8 + $0x7a8] sm:$0xff]
    %v1200 = vld [vmem:[#allocation8 + $0x7b0] sm:$0xff]
    %v1201 = vld [vmem:[#allocation8 + $0x7b8] sm:$0xff]
    %v1202 = vld [vmem:[#allocation8 + $0x7c0] sm:$0xff]
    %v1203 = vld [vmem:[#allocation8 + $0x7c8] sm:$0xff]
    %v1204 = vld [vmem:[#allocation8 + $0x7d0] sm:$0xff]
    %v1205 = vld [vmem:[#allocation8 + $0x7d8] sm:$0xff]
    %v1206 = vld [vmem:[#allocation8 + $0x7e0] sm:$0xff]
    %v1207 = vld [vmem:[#allocation8 + $0x7e8] sm:$0xff]
    %v1208 = vld [vmem:[#allocation8 + $0x7f0] sm:$0xff]
    %v1209 = vld [vmem:[#allocation8 + $0x7f8] sm:$0xff]
    %v1210 = vld [vmem:[#allocation8 + $0x800] sm:$0xff]
    %v1211 = vld [vmem:[#allocation8 + $0x808] sm:$0xff]
    %v1212 = vld [vmem:[#allocation8 + $0x810] sm:$0xff]
    %v1213 = vld [vmem:[#allocation8 + $0x818] sm:$0xff]
    %v1214 = vld [vmem:[#allocation8 + $0x820] sm:$0xff]
    %v1215 = vld [vmem:[#allocation8 + $0x828] sm:$0xff]
    %v1216 = vld [vmem:[#allocation8 + $0x830] sm:$0xff]
    %v1217 = vld [vmem:[#allocation8 + $0x838] sm:$0xff]
    %v1218 = vld [vmem:[#allocation8 + $0x840] sm:$0xff]
    %v1219 = vld [vmem:[#allocation8 + $0x848] sm:$0xff]
    %v1220 = vld [vmem:[#allocation8 + $0x850] sm:$0xff]
    %v1221 = vld [vmem:[#allocation8 + $0x858] sm:$0xff]
    %v1222 = vld [vmem:[#allocation8 + $0x860] sm:$0xff]
    %v1223 = vld [vmem:[#allocation8 + $0x868] sm:$0xff]
    %v1224 = vld [vmem:[#allocation8 + $0x870] sm:$0xff]
    %v1225 = vld [vmem:[#allocation8 + $0x878] sm:$0xff]
    %v1226 = vld [vmem:[#allocation8 + $0x880] sm:$0xff]
    %v1227 = vld [vmem:[#allocation8 + $0x888] sm:$0xff]
    %v1228 = vld [vmem:[#allocation8 + $0x890] sm:$0xff]
    %v1229 = vld [vmem:[#allocation8 + $0x898] sm:$0xff]
    %v1230 = vld [vmem:[#allocation8 + $0x8a0] sm:$0xff]
    %v1231 = vld [vmem:[#allocation8 + $0x8a8] sm:$0xff]
    %v1232 = vld [vmem:[#allocation8 + $0x8b0] sm:$0xff]
    %v1233 = vld [vmem:[#allocation8 + $0x8b8] sm:$0xff]
    %v1234 = vld [vmem:[#allocation8 + $0x8c0] sm:$0xff]
    %v1235 = vld [vmem:[#allocation8 + $0x8c8] sm:$0xff]
    %v1236 = vld [vmem:[#allocation8 + $0x8d0] sm:$0xff]
    %v1237 = vld [vmem:[#allocation8 + $0x8d8] sm:$0xff]
    %v1238 = vld [vmem:[#allocation8 + $0x8e0] sm:$0xff]
    %v1239 = vld [vmem:[#allocation8 + $0x8e8] sm:$0xff]
    %v1240 = vld [vmem:[#allocation8 + $0x8f0] sm:$0xff]
    %v1241 = vld [vmem:[#allocation8 + $0x8f8] sm:$0xff]
    %v1242 = vld [vmem:[#allocation8 + $0x900] sm:$0xff]
    %v1243 = vld [vmem:[#allocation8 + $0x908] sm:$0xff]
    %v1244 = vld [vmem:[#allocation8 + $0x910] sm:$0xff]
    %v1245 = vld [vmem:[#allocation8 + $0x918] sm:$0xff]
    %v1246 = vld [vmem:[#allocation8 + $0x920] sm:$0xff]
    %v1247 = vld [vmem:[#allocation8 + $0x928] sm:$0xff]
    %v1248 = vld [vmem:[#allocation8 + $0x930] sm:$0xff]
    %v1249 = vld [vmem:[#allocation8 + $0x938] sm:$0xff]
    %v1250 = vld [vmem:[#allocation8 + $0x940] sm:$0xff]
    %v1251 = vld [vmem:[#allocation8 + $0x948] sm:$0xff]
    %v1252 = vld [vmem:[#allocation8 + $0x950] sm:$0xff]
    %v1253 = vld [vmem:[#allocation8 + $0x958] sm:$0xff]
    %v1254 = vld [vmem:[#allocation8 + $0x960] sm:$0xff]
    %v1255 = vld [vmem:[#allocation8 + $0x968] sm:$0xff]
    %v1256 = vld [vmem:[#allocation8 + $0x970] sm:$0xff]
    %v1257 = vld [vmem:[#allocation8 + $0x978] sm:$0xff]
    %v1258 = vld [vmem:[#allocation8 + $0x980] sm:$0xff]
    %v1259 = vld [vmem:[#allocation8 + $0x988] sm:$0xff]
    %v1260 = vld [vmem:[#allocation8 + $0x990] sm:$0xff]
    %v1261 = vld [vmem:[#allocation8 + $0x998] sm:$0xff]
    %v1262 = vld [vmem:[#allocation8 + $0x9a0] sm:$0xff]
    %v1263 = vld [vmem:[#allocation8 + $0x9a8] sm:$0xff]
    %v1264 = vld [vmem:[#allocation8 + $0x9b0] sm:$0xff]
    %v1265 = vld [vmem:[#allocation8 + $0x9b8] sm:$0xff]
    %v1266 = vld [vmem:[#allocation8 + $0x9c0] sm:$0xff]
    %v1267 = vld [vmem:[#allocation8 + $0x9c8] sm:$0xff]
    %v1268 = vld [vmem:[#allocation8 + $0x9d0] sm:$0xff]
    %v1269 = vld [vmem:[#allocation8 + $0x9d8] sm:$0xff]
    %v1270 = vld [vmem:[#allocation8 + $0x9e0] sm:$0xff]
    %v1271 = vld [vmem:[#allocation8 + $0x9e8] sm:$0xff]
    %v1272 = vld [vmem:[#allocation8 + $0x9f0] sm:$0xff]
    %v1273 = vld [vmem:[#allocation8 + $0x9f8] sm:$0xff]
    %v1274 = vld [vmem:[#allocation8 + $0xa00] sm:$0xff]
    %v1275 = vld [vmem:[#allocation8 + $0xa08] sm:$0xff]
    %v1276 = vld [vmem:[#allocation8 + $0xa10] sm:$0xff]
    %v1277 = vld [vmem:[#allocation8 + $0xa18] sm:$0xff]
    %v1278 = vld [vmem:[#allocation8 + $0xa20] sm:$0xff]
    %v1279 = vld [vmem:[#allocation8 + $0xa28] sm:$0xff]
    %v1280 = vld [vmem:[#allocation8 + $0xa30] sm:$0xff]
    %v1281 = vld [vmem:[#allocation8 + $0xa38] sm:$0xff]
    %v1282 = vld [vmem:[#allocation8 + $0xa40] sm:$0xff]
    %v1283 = vld [vmem:[#allocation8 + $0xa48] sm:$0xff]
    %v1284 = vld [vmem:[#allocation8 + $0xa50] sm:$0xff]
    %v1285 = vld [vmem:[#allocation8 + $0xa58] sm:$0xff]
    %v1286 = vld [vmem:[#allocation8 + $0xa60] sm:$0xff]
    %v1287 = vld [vmem:[#allocation8 + $0xa68] sm:$0xff]
    %v1288 = vld [vmem:[#allocation8 + $0xa70] sm:$0xff]
    %v1289 = vld [vmem:[#allocation8 + $0xa78] sm:$0xff]
    %v1290 = vld [vmem:[#allocation8 + $0xa80] sm:$0xff]
    %v1291 = vld [vmem:[#allocation8 + $0xa88] sm:$0xff]
    %v1292 = vld [vmem:[#allocation8 + $0xa90] sm:$0xff]
    %v1293 = vld [vmem:[#allocation8 + $0xa98] sm:$0xff]
    %v1294 = vld [vmem:[#allocation8 + $0xaa0] sm:$0xff]
    %v1295 = vld [vmem:[#allocation8 + $0xaa8] sm:$0xff]
    %v1296 = vld [vmem:[#allocation8 + $0xab0] sm:$0xff]
    %v1297 = vld [vmem:[#allocation8 + $0xab8] sm:$0xff]
    %v1298 = vld [vmem:[#allocation8 + $0xac0] sm:$0xff]
    %v1299 = vld [vmem:[#allocation8 + $0xac8] sm:$0xff]
    %v1300 = vld [vmem:[#allocation8 + $0xad0] sm:$0xff]
    %v1301 = vld [vmem:[#allocation8 + $0xad8] sm:$0xff]
    %v1302 = vld [vmem:[#allocation8 + $0xae0] sm:$0xff]
    %v1303 = vld [vmem:[#allocation8 + $0xae8] sm:$0xff]
    %v1304 = vld [vmem:[#allocation8 + $0xaf0] sm:$0xff]
    %v1305 = vld [vmem:[#allocation8 + $0xaf8] sm:$0xff]
    %v1306 = vld [vmem:[#allocation8 + $0xb00] sm:$0xff]
    %v1307 = vld [vmem:[#allocation8 + $0xb08] sm:$0xff]
    %v1308 = vld [vmem:[#allocation8 + $0xb10] sm:$0xff]
    %v1309 = vld [vmem:[#allocation8 + $0xb18] sm:$0xff]
    %v1310 = vld [vmem:[#allocation8 + $0xb20] sm:$0xff]
    %v1311 = vld [vmem:[#allocation8 + $0xb28] sm:$0xff]
    %v1312 = vld [vmem:[#allocation8 + $0xb30] sm:$0xff]
    %v1313 = vld [vmem:[#allocation8 + $0xb38] sm:$0xff]
    %v1314 = vld [vmem:[#allocation8 + $0xb40] sm:$0xff]
    %v1315 = vld [vmem:[#allocation8 + $0xb48] sm:$0xff]
    %v1316 = vld [vmem:[#allocation8 + $0xb50] sm:$0xff]
    %v1317 = vld [vmem:[#allocation8 + $0xb58] sm:$0xff]
    %v1318 = vld [vmem:[#allocation8 + $0xb60] sm:$0xff]
    %v1319 = vld [vmem:[#allocation8 + $0xb68] sm:$0xff]
    %v1320 = vld [vmem:[#allocation8 + $0xb70] sm:$0xff]
    %v1321 = vld [vmem:[#allocation8 + $0xb78] sm:$0xff]
    %v1322 = vld [vmem:[#allocation8 + $0xb80] sm:$0xff]
    %v1323 = vld [vmem:[#allocation8 + $0xb88] sm:$0xff]
    %v1324 = vld [vmem:[#allocation8 + $0xb90] sm:$0xff]
    %v1325 = vld [vmem:[#allocation8 + $0xb98] sm:$0xff]
    %v1326 = vld [vmem:[#allocation8 + $0xba0] sm:$0xff]
    %v1327 = vld [vmem:[#allocation8 + $0xba8] sm:$0xff]
    %v1328 = vld [vmem:[#allocation8 + $0xbb0] sm:$0xff]
    %v1329 = vld [vmem:[#allocation8 + $0xbb8] sm:$0xff]
    %v1330 = vld [vmem:[#allocation8 + $0xbc0] sm:$0xff]
    %v1331 = vld [vmem:[#allocation8 + $0xbc8] sm:$0xff]
    %v1332 = vld [vmem:[#allocation8 + $0xbd0] sm:$0xff]
    %v1333 = vld [vmem:[#allocation8 + $0xbd8] sm:$0xff]
    %v1334 = vld [vmem:[#allocation8 + $0xbe0] sm:$0xff]
    %v1335 = vld [vmem:[#allocation8 + $0xbe8] sm:$0xff]
    %v1336 = vld [vmem:[#allocation8 + $0xbf0] sm:$0xff]
    %v1337 = vld [vmem:[#allocation8 + $0xbf8] sm:$0xff]
    %v1338 = vld [vmem:[#allocation8 + $0xc00] sm:$0xff]
    %v1339 = vld [vmem:[#allocation8 + $0xc08] sm:$0xff]
    %v1340 = vld [vmem:[#allocation8 + $0xc10] sm:$0xff]
    %v1341 = vld [vmem:[#allocation8 + $0xc18] sm:$0xff]
    %v1342 = vld [vmem:[#allocation8 + $0xc20] sm:$0xff]
    %v1343 = vld [vmem:[#allocation8 + $0xc28] sm:$0xff]
    %v1344 = vld [vmem:[#allocation8 + $0xc30] sm:$0xff]
    %v1345 = vld [vmem:[#allocation8 + $0xc38] sm:$0xff]
    %v1346 = vld [vmem:[#allocation8 + $0xc40] sm:$0xff]
    %v1347 = vld [vmem:[#allocation8 + $0xc48] sm:$0xff]
    %v1348 = vld [vmem:[#allocation8 + $0xc50] sm:$0xff]
    %v1349 = vld [vmem:[#allocation8 + $0xc58] sm:$0xff]
    %v1350 = vld [vmem:[#allocation8 + $0xc60] sm:$0xff]
    %v1351 = vld [vmem:[#allocation8 + $0xc68] sm:$0xff]
    %v1352 = vld [vmem:[#allocation8 + $0xc70] sm:$0xff]
    %v1353 = vld [vmem:[#allocation8 + $0xc78] sm:$0xff]
    %v1354 = vld [vmem:[#allocation8 + $0xc80] sm:$0xff]
    %v1355 = vld [vmem:[#allocation8 + $0xc88] sm:$0xff]
    %v1356 = vld [vmem:[#allocation8 + $0xc90] sm:$0xff]
    %v1357 = vld [vmem:[#allocation8 + $0xc98] sm:$0xff]
    %v1358 = vld [vmem:[#allocation8 + $0xca0] sm:$0xff]
    %v1359 = vld [vmem:[#allocation8 + $0xca8] sm:$0xff]
    %v1360 = vld [vmem:[#allocation8 + $0xcb0] sm:$0xff]
    %v1361 = vld [vmem:[#allocation8 + $0xcb8] sm:$0xff]
    %v1362 = vld [vmem:[#allocation8 + $0xcc0] sm:$0xff]
    %v1363 = vld [vmem:[#allocation8 + $0xcc8] sm:$0xff]
    %v1364 = vld [vmem:[#allocation8 + $0xcd0] sm:$0xff]
    %v1365 = vld [vmem:[#allocation8 + $0xcd8] sm:$0xff]
    %v1366 = vld [vmem:[#allocation8 + $0xce0] sm:$0xff]
    %v1367 = vld [vmem:[#allocation8 + $0xce8] sm:$0xff]
    %v1368 = vld [vmem:[#allocation8 + $0xcf0] sm:$0xff]
    %v1369 = vld [vmem:[#allocation8 + $0xcf8] sm:$0xff]
    %v1370 = vld [vmem:[#allocation8 + $0xd00] sm:$0xff]
    %v1371 = vld [vmem:[#allocation8 + $0xd08] sm:$0xff]
    %v1372 = vld [vmem:[#allocation8 + $0xd10] sm:$0xff]
    %v1373 = vld [vmem:[#allocation8 + $0xd18] sm:$0xff]
    %v1374 = vld [vmem:[#allocation8 + $0xd20] sm:$0xff]
    %v1375 = vld [vmem:[#allocation8 + $0xd28] sm:$0xff]
    %v1376 = vld [vmem:[#allocation8 + $0xd30] sm:$0xff]
    %v1377 = vld [vmem:[#allocation8 + $0xd38] sm:$0xff]
    %v1378 = vld [vmem:[#allocation8 + $0xd40] sm:$0xff]
    %v1379 = vld [vmem:[#allocation8 + $0xd48] sm:$0xff]
    %v1380 = vld [vmem:[#allocation8 + $0xd50] sm:$0xff]
    %v1381 = vld [vmem:[#allocation8 + $0xd58] sm:$0xff]
    %v1382 = vld [vmem:[#allocation8 + $0xd60] sm:$0xff]
    %v1383 = vld [vmem:[#allocation8 + $0xd68] sm:$0xff]
    %v1384 = vld [vmem:[#allocation8 + $0xd70] sm:$0xff]
    %v1385 = vld [vmem:[#allocation8 + $0xd78] sm:$0xff]
    %v1386 = vld [vmem:[#allocation8 + $0xd80] sm:$0xff]
    %v1387 = vld [vmem:[#allocation8 + $0xd88] sm:$0xff]
    %v1388 = vld [vmem:[#allocation8 + $0xd90] sm:$0xff]
    %v1389 = vld [vmem:[#allocation8 + $0xd98] sm:$0xff]
    %v1390 = vld [vmem:[#allocation8 + $0xda0] sm:$0xff]
    %v1391 = vld [vmem:[#allocation8 + $0xda8] sm:$0xff]
    %v1392 = vld [vmem:[#allocation8 + $0xdb0] sm:$0xff]
    %v1393 = vld [vmem:[#allocation8 + $0xdb8] sm:$0xff]
    %v1394 = vld [vmem:[#allocation8 + $0xdc0] sm:$0xff]
    %v1395 = vld [vmem:[#allocation8 + $0xdc8] sm:$0xff]
    %v1396 = vld [vmem:[#allocation8 + $0xdd0] sm:$0xff]
    %v1397 = vld [vmem:[#allocation8 + $0xdd8] sm:$0xff]
    %v1398 = vld [vmem:[#allocation8 + $0xde0] sm:$0xff]
    %v1399 = vld [vmem:[#allocation8 + $0xde8] sm:$0xff]
    %v1400 = vld [vmem:[#allocation8 + $0xdf0] sm:$0xff]
    %v1401 = vld [vmem:[#allocation8 + $0xdf8] sm:$0xff]
    %v1402 = vld [vmem:[#allocation8 + $0xe00] sm:$0xff]
    %v1403 = vld [vmem:[#allocation8 + $0xe08] sm:$0xff]
    %v1404 = vld [vmem:[#allocation8 + $0xe10] sm:$0xff]
    %v1405 = vld [vmem:[#allocation8 + $0xe18] sm:$0xff]
    %v1406 = vld [vmem:[#allocation8 + $0xe20] sm:$0xff]
    %v1407 = vld [vmem:[#allocation8 + $0xe28] sm:$0xff]
    %v1408 = vld [vmem:[#allocation8 + $0xe30] sm:$0xff]
    %v1409 = vld [vmem:[#allocation8 + $0xe38] sm:$0xff]
    %v1410 = vld [vmem:[#allocation8 + $0xe40] sm:$0xff]
    %v1411 = vld [vmem:[#allocation8 + $0xe48] sm:$0xff]
    %v1412 = vld [vmem:[#allocation8 + $0xe50] sm:$0xff]
    %v1413 = vld [vmem:[#allocation8 + $0xe58] sm:$0xff]
    %v1414 = vld [vmem:[#allocation8 + $0xe60] sm:$0xff]
    %v1415 = vld [vmem:[#allocation8 + $0xe68] sm:$0xff]
    %v1416 = vld [vmem:[#allocation8 + $0xe70] sm:$0xff]
    %v1417 = vld [vmem:[#allocation8 + $0xe78] sm:$0xff]
    %v1418 = vld [vmem:[#allocation8 + $0xe80] sm:$0xff]
    %v1419 = vld [vmem:[#allocation8 + $0xe88] sm:$0xff]
    %v1420 = vld [vmem:[#allocation8 + $0xe90] sm:$0xff]
    %v1421 = vld [vmem:[#allocation8 + $0xe98] sm:$0xff]
    %v1422 = vld [vmem:[#allocation8 + $0xea0] sm:$0xff]
    %v1423 = vld [vmem:[#allocation8 + $0xea8] sm:$0xff]
    %v1424 = vld [vmem:[#allocation8 + $0xeb0] sm:$0xff]
    %v1425 = vld [vmem:[#allocation8 + $0xeb8] sm:$0xff]
    %v1426 = vld [vmem:[#allocation8 + $0xec0] sm:$0xff]
    %v1427 = vld [vmem:[#allocation8 + $0xec8] sm:$0xff]
    %v1428 = vld [vmem:[#allocation8 + $0xed0] sm:$0xff]
    %v1429 = vld [vmem:[#allocation8 + $0xed8] sm:$0xff]
    %v1430 = vld [vmem:[#allocation8 + $0xee0] sm:$0xff]
    %v1431 = vld [vmem:[#allocation8 + $0xee8] sm:$0xff]
    %v1432 = vld [vmem:[#allocation8 + $0xef0] sm:$0xff]
    %v1433 = vld [vmem:[#allocation8 + $0xef8] sm:$0xff]
    %v1434 = vld [vmem:[#allocation8 + $0xf00] sm:$0xff]
    %v1435 = vld [vmem:[#allocation8 + $0xf08] sm:$0xff]
    %v1436 = vld [vmem:[#allocation8 + $0xf10] sm:$0xff]
    %v1437 = vld [vmem:[#allocation8 + $0xf18] sm:$0xff]
    %v1438 = vld [vmem:[#allocation8 + $0xf20] sm:$0xff]
    %v1439 = vld [vmem:[#allocation8 + $0xf28] sm:$0xff]
    %v1440 = vld [vmem:[#allocation8 + $0xf30] sm:$0xff]
    %v1441 = vld [vmem:[#allocation8 + $0xf38] sm:$0xff]
    %v1442 = vld [vmem:[#allocation8 + $0xf40] sm:$0xff]
    %v1443 = vld [vmem:[#allocation8 + $0xf48] sm:$0xff]
    %v1444 = vld [vmem:[#allocation8 + $0xf50] sm:$0xff]
    %v1445 = vld [vmem:[#allocation8 + $0xf58] sm:$0xff]
    %v1446 = vld [vmem:[#allocation8 + $0xf60] sm:$0xff]
    %v1447 = vld [vmem:[#allocation8 + $0xf68] sm:$0xff]
    %v1448 = vld [vmem:[#allocation8 + $0xf70] sm:$0xff]
    %v1449 = vld [vmem:[#allocation8 + $0xf78] sm:$0xff]
    %v1450 = vld [vmem:[#allocation8 + $0xf80] sm:$0xff]
    %v1451 = vld [vmem:[#allocation8 + $0xf88] sm:$0xff]
    %v1452 = vld [vmem:[#allocation8 + $0xf90] sm:$0xff]
    %v1453 = vld [vmem:[#allocation8 + $0xf98] sm:$0xff]
    %v1454 = vld [vmem:[#allocation8 + $0xfa0] sm:$0xff]
    %v1455 = vld [vmem:[#allocation8 + $0xfa8] sm:$0xff]
    %v1456 = vld [vmem:[#allocation8 + $0xfb0] sm:$0xff]
    %v1457 = vld [vmem:[#allocation8 + $0xfb8] sm:$0xff]
    %v1458 = vld [vmem:[#allocation8 + $0xfc0] sm:$0xff]
    %v1459 = vld [vmem:[#allocation8 + $0xfc8] sm:$0xff]
    %v1460 = vld [vmem:[#allocation8 + $0xfd0] sm:$0xff]
    %v1461 = vld [vmem:[#allocation8 + $0xfd8] sm:$0xff]
    %v1462 = vld [vmem:[#allocation8 + $0xfe0] sm:$0xff]
    %v1463 = vld [vmem:[#allocation8 + $0xfe8] sm:$0xff]
    %v1464 = vld [vmem:[#allocation8 + $0xff0] sm:$0xff]
    %v1465 = vld [vmem:[#allocation8 + $0xff8] sm:$0xff]
    %v1466 = vld [vmem:[#allocation9] sm:$0xff]
    %v1468 = vlaneseq
    %v1469 = vshrl.u32 %v1468, 7
    %v1470 = vsub.s32 0, %v1469
    %v1471 = vrot.slane %v1466, %v1470
    %v1472 = vlaneseq
    %v1473 = vshrl.u32 %v1472, 7
    %v1474 = vsub.s32 1, %v1473
    %v1475 = vrot.slane %v1466, %v1474
    %v1476 = vlaneseq
    %v1477 = vshrl.u32 %v1476, 7
    %v1478 = vsub.s32 2, %v1477
    %v1479 = vrot.slane %v1466, %v1478
    %v1480 = vlaneseq
    %v1481 = vshrl.u32 %v1480, 7
    %v1482 = vsub.s32 3, %v1481
    %v1483 = vrot.slane %v1466, %v1482
    %v1484 = vlaneseq
    %v1485 = vshrl.u32 %v1484, 7
    %v1486 = vsub.s32 4, %v1485
    %v1487 = vrot.slane %v1466, %v1486
    %v1488 = vlaneseq
    %v1489 = vshrl.u32 %v1488, 7
    %v1490 = vsub.s32 5, %v1489
    %v1491 = vrot.slane %v1466, %v1490
    %v1492 = vlaneseq
    %v1493 = vshrl.u32 %v1492, 7
    %v1494 = vsub.s32 6, %v1493
    %v1495 = vrot.slane %v1466, %v1494
    %v1496 = vlaneseq
    %v1497 = vshrl.u32 %v1496, 7
    %v1498 = vsub.s32 7, %v1497
    %v1499 = vrot.slane %v1466, %v1498
    %v2020 = vunpack.c.l.b16 %v954
    %v2021 = vunpack.c.h.b16 %v954
    %v2022 = vunpack.c.l.b16 %v955
    %v2023 = vunpack.c.h.b16 %v955
    %v2024 = vunpack.c.l.b16 %v956
    %v2025 = vunpack.c.h.b16 %v956
    %v2026 = vunpack.c.l.b16 %v957
    %v2027 = vunpack.c.h.b16 %v957
    %v2028 = vunpack.c.l.b16 %v958
    %v2029 = vunpack.c.h.b16 %v958
    %v2030 = vunpack.c.l.b16 %v959
    %v2031 = vunpack.c.h.b16 %v959
    %v2032 = vunpack.c.l.b16 %v960
    %v2033 = vunpack.c.h.b16 %v960
    %v2034 = vunpack.c.l.b16 %v961
    %v2035 = vunpack.c.h.b16 %v961
    %v2036 = vunpack.c.l.b16 %v962
    %v2037 = vunpack.c.h.b16 %v962
    %v2038 = vunpack.c.l.b16 %v963
    %v2039 = vunpack.c.h.b16 %v963
    %v2040 = vunpack.c.l.b16 %v964
    %v2041 = vunpack.c.h.b16 %v964
    %v2042 = vunpack.c.l.b16 %v965
    %v2043 = vunpack.c.h.b16 %v965
    %v2044 = vunpack.c.l.b16 %v966
    %v2045 = vunpack.c.h.b16 %v966
    %v2046 = vunpack.c.l.b16 %v967
    %v2047 = vunpack.c.h.b16 %v967
    %v2048 = vunpack.c.l.b16 %v968
    %v2049 = vunpack.c.h.b16 %v968
    %v2050 = vunpack.c.l.b16 %v969
    %v2051 = vunpack.c.h.b16 %v969
    %v2052 = vunpack.c.l.b16 %v970
    %v2053 = vunpack.c.h.b16 %v970
    %v2054 = vunpack.c.l.b16 %v971
    %v2055 = vunpack.c.h.b16 %v971
    %v2056 = vunpack.c.l.b16 %v972
    %v2057 = vunpack.c.h.b16 %v972
    %v2058 = vunpack.c.l.b16 %v973
    %v2059 = vunpack.c.h.b16 %v973
    %v2060 = vunpack.c.l.b16 %v974
    %v2061 = vunpack.c.h.b16 %v974
    %v2062 = vunpack.c.l.b16 %v975
    %v2063 = vunpack.c.h.b16 %v975
    %v2064 = vunpack.c.l.b16 %v976
    %v2065 = vunpack.c.h.b16 %v976
    %v2066 = vunpack.c.l.b16 %v977
    %v2067 = vunpack.c.h.b16 %v977
    %v2068 = vunpack.c.l.b16 %v978
    %v2069 = vunpack.c.h.b16 %v978
    %v2070 = vunpack.c.l.b16 %v979
    %v2071 = vunpack.c.h.b16 %v979
    %v2072 = vunpack.c.l.b16 %v980
    %v2073 = vunpack.c.h.b16 %v980
    %v2074 = vunpack.c.l.b16 %v981
    %v2075 = vunpack.c.h.b16 %v981
    %v2076 = vunpack.c.l.b16 %v982
    %v2077 = vunpack.c.h.b16 %v982
    %v2078 = vunpack.c.l.b16 %v983
    %v2079 = vunpack.c.h.b16 %v983
    %v2080 = vunpack.c.l.b16 %v984
    %v2081 = vunpack.c.h.b16 %v984
    %v2082 = vunpack.c.l.b16 %v985
    %v2083 = vunpack.c.h.b16 %v985
    %v2084 = vunpack.c.l.b16 %v986
    %v2085 = vunpack.c.h.b16 %v986
    %v2086 = vunpack.c.l.b16 %v987
    %v2087 = vunpack.c.h.b16 %v987
    %v2088 = vunpack.c.l.b16 %v988
    %v2089 = vunpack.c.h.b16 %v988
    %v2090 = vunpack.c.l.b16 %v989
    %v2091 = vunpack.c.h.b16 %v989
    %v2092 = vunpack.c.l.b16 %v990
    %v2093 = vunpack.c.h.b16 %v990
    %v2094 = vunpack.c.l.b16 %v991
    %v2095 = vunpack.c.h.b16 %v991
    %v2096 = vunpack.c.l.b16 %v992
    %v2097 = vunpack.c.h.b16 %v992
    %v2098 = vunpack.c.l.b16 %v993
    %v2099 = vunpack.c.h.b16 %v993
    %v2100 = vunpack.c.l.b16 %v994
    %v2101 = vunpack.c.h.b16 %v994
    %v2102 = vunpack.c.l.b16 %v995
    %v2103 = vunpack.c.h.b16 %v995
    %v2104 = vunpack.c.l.b16 %v996
    %v2105 = vunpack.c.h.b16 %v996
    %v2106 = vunpack.c.l.b16 %v997
    %v2107 = vunpack.c.h.b16 %v997
    %v2108 = vunpack.c.l.b16 %v998
    %v2109 = vunpack.c.h.b16 %v998
    %v2110 = vunpack.c.l.b16 %v999
    %v2111 = vunpack.c.h.b16 %v999
    %v2112 = vunpack.c.l.b16 %v1000
    %v2113 = vunpack.c.h.b16 %v1000
    %v2114 = vunpack.c.l.b16 %v1001
    %v2115 = vunpack.c.h.b16 %v1001
    %v2116 = vunpack.c.l.b16 %v1002
    %v2117 = vunpack.c.h.b16 %v1002
    %v2118 = vunpack.c.l.b16 %v1003
    %v2119 = vunpack.c.h.b16 %v1003
    %v2120 = vunpack.c.l.b16 %v1004
    %v2121 = vunpack.c.h.b16 %v1004
    %v2122 = vunpack.c.l.b16 %v1005
    %v2123 = vunpack.c.h.b16 %v1005
    %v2124 = vunpack.c.l.b16 %v1006
    %v2125 = vunpack.c.h.b16 %v1006
    %v2126 = vunpack.c.l.b16 %v1007
    %v2127 = vunpack.c.h.b16 %v1007
    %v2128 = vunpack.c.l.b16 %v1008
    %v2129 = vunpack.c.h.b16 %v1008
    %v2130 = vunpack.c.l.b16 %v1009
    %v2131 = vunpack.c.h.b16 %v1009
    %v2132 = vunpack.c.l.b16 %v1010
    %v2133 = vunpack.c.h.b16 %v1010
    %v2134 = vunpack.c.l.b16 %v1011
    %v2135 = vunpack.c.h.b16 %v1011
    %v2136 = vunpack.c.l.b16 %v1012
    %v2137 = vunpack.c.h.b16 %v1012
    %v2138 = vunpack.c.l.b16 %v1013
    %v2139 = vunpack.c.h.b16 %v1013
    %v2140 = vunpack.c.l.b16 %v1014
    %v2141 = vunpack.c.h.b16 %v1014
    %v2142 = vunpack.c.l.b16 %v1015
    %v2143 = vunpack.c.h.b16 %v1015
    %v2144 = vunpack.c.l.b16 %v1016
    %v2145 = vunpack.c.h.b16 %v1016
    %v2146 = vunpack.c.l.b16 %v1017
    %v2147 = vunpack.c.h.b16 %v1017
    %v2148 = vunpack.c.l.b16 %v1018
    %v2149 = vunpack.c.h.b16 %v1018
    %v2150 = vunpack.c.l.b16 %v1019
    %v2151 = vunpack.c.h.b16 %v1019
    %v2152 = vunpack.c.l.b16 %v1020
    %v2153 = vunpack.c.h.b16 %v1020
    %v2154 = vunpack.c.l.b16 %v1021
    %v2155 = vunpack.c.h.b16 %v1021
    %v2156 = vunpack.c.l.b16 %v1022
    %v2157 = vunpack.c.h.b16 %v1022
    %v2158 = vunpack.c.l.b16 %v1023
    %v2159 = vunpack.c.h.b16 %v1023
    %v2160 = vunpack.c.l.b16 %v1024
    %v2161 = vunpack.c.h.b16 %v1024
    %v2162 = vunpack.c.l.b16 %v1025
    %v2163 = vunpack.c.h.b16 %v1025
    %v2164 = vunpack.c.l.b16 %v1026
    %v2165 = vunpack.c.h.b16 %v1026
    %v2166 = vunpack.c.l.b16 %v1027
    %v2167 = vunpack.c.h.b16 %v1027
    %v2168 = vunpack.c.l.b16 %v1028
    %v2169 = vunpack.c.h.b16 %v1028
    %v2170 = vunpack.c.l.b16 %v1029
    %v2171 = vunpack.c.h.b16 %v1029
    %v2172 = vunpack.c.l.b16 %v1030
    %v2173 = vunpack.c.h.b16 %v1030
    %v2174 = vunpack.c.l.b16 %v1031
    %v2175 = vunpack.c.h.b16 %v1031
    %v2176 = vunpack.c.l.b16 %v1032
    %v2177 = vunpack.c.h.b16 %v1032
    %v2178 = vunpack.c.l.b16 %v1033
    %v2179 = vunpack.c.h.b16 %v1033
    %v2180 = vunpack.c.l.b16 %v1034
    %v2181 = vunpack.c.h.b16 %v1034
    %v2182 = vunpack.c.l.b16 %v1035
    %v2183 = vunpack.c.h.b16 %v1035
    %v2184 = vunpack.c.l.b16 %v1036
    %v2185 = vunpack.c.h.b16 %v1036
    %v2186 = vunpack.c.l.b16 %v1037
    %v2187 = vunpack.c.h.b16 %v1037
    %v2188 = vunpack.c.l.b16 %v1038
    %v2189 = vunpack.c.h.b16 %v1038
    %v2190 = vunpack.c.l.b16 %v1039
    %v2191 = vunpack.c.h.b16 %v1039
    %v2192 = vunpack.c.l.b16 %v1040
    %v2193 = vunpack.c.h.b16 %v1040
    %v2194 = vunpack.c.l.b16 %v1041
    %v2195 = vunpack.c.h.b16 %v1041
    %v2196 = vunpack.c.l.b16 %v1042
    %v2197 = vunpack.c.h.b16 %v1042
    %v2198 = vunpack.c.l.b16 %v1043
    %v2199 = vunpack.c.h.b16 %v1043
    %v2200 = vunpack.c.l.b16 %v1044
    %v2201 = vunpack.c.h.b16 %v1044
    %v2202 = vunpack.c.l.b16 %v1045
    %v2203 = vunpack.c.h.b16 %v1045
    %v2204 = vunpack.c.l.b16 %v1046
    %v2205 = vunpack.c.h.b16 %v1046
    %v2206 = vunpack.c.l.b16 %v1047
    %v2207 = vunpack.c.h.b16 %v1047
    %v2208 = vunpack.c.l.b16 %v1048
    %v2209 = vunpack.c.h.b16 %v1048
    %v2210 = vunpack.c.l.b16 %v1049
    %v2211 = vunpack.c.h.b16 %v1049
    %v2212 = vunpack.c.l.b16 %v1050
    %v2213 = vunpack.c.h.b16 %v1050
    %v2214 = vunpack.c.l.b16 %v1051
    %v2215 = vunpack.c.h.b16 %v1051
    %v2216 = vunpack.c.l.b16 %v1052
    %v2217 = vunpack.c.h.b16 %v1052
    %v2218 = vunpack.c.l.b16 %v1053
    %v2219 = vunpack.c.h.b16 %v1053
    %v2220 = vunpack.c.l.b16 %v1054
    %v2221 = vunpack.c.h.b16 %v1054
    %v2222 = vunpack.c.l.b16 %v1055
    %v2223 = vunpack.c.h.b16 %v1055
    %v2224 = vunpack.c.l.b16 %v1056
    %v2225 = vunpack.c.h.b16 %v1056
    %v2226 = vunpack.c.l.b16 %v1057
    %v2227 = vunpack.c.h.b16 %v1057
    %v2228 = vunpack.c.l.b16 %v1058
    %v2229 = vunpack.c.h.b16 %v1058
    %v2230 = vunpack.c.l.b16 %v1059
    %v2231 = vunpack.c.h.b16 %v1059
    %v2232 = vunpack.c.l.b16 %v1060
    %v2233 = vunpack.c.h.b16 %v1060
    %v2234 = vunpack.c.l.b16 %v1061
    %v2235 = vunpack.c.h.b16 %v1061
    %v2236 = vunpack.c.l.b16 %v1062
    %v2237 = vunpack.c.h.b16 %v1062
    %v2238 = vunpack.c.l.b16 %v1063
    %v2239 = vunpack.c.h.b16 %v1063
    %v2240 = vunpack.c.l.b16 %v1064
    %v2241 = vunpack.c.h.b16 %v1064
    %v2242 = vunpack.c.l.b16 %v1065
    %v2243 = vunpack.c.h.b16 %v1065
    %v2244 = vunpack.c.l.b16 %v1066
    %v2245 = vunpack.c.h.b16 %v1066
    %v2246 = vunpack.c.l.b16 %v1067
    %v2247 = vunpack.c.h.b16 %v1067
    %v2248 = vunpack.c.l.b16 %v1068
    %v2249 = vunpack.c.h.b16 %v1068
    %v2250 = vunpack.c.l.b16 %v1069
    %v2251 = vunpack.c.h.b16 %v1069
    %v2252 = vunpack.c.l.b16 %v1070
    %v2253 = vunpack.c.h.b16 %v1070
    %v2254 = vunpack.c.l.b16 %v1071
    %v2255 = vunpack.c.h.b16 %v1071
    %v2256 = vunpack.c.l.b16 %v1072
    %v2257 = vunpack.c.h.b16 %v1072
    %v2258 = vunpack.c.l.b16 %v1073
    %v2259 = vunpack.c.h.b16 %v1073
    %v2260 = vunpack.c.l.b16 %v1074
    %v2261 = vunpack.c.h.b16 %v1074
    %v2262 = vunpack.c.l.b16 %v1075
    %v2263 = vunpack.c.h.b16 %v1075
    %v2264 = vunpack.c.l.b16 %v1076
    %v2265 = vunpack.c.h.b16 %v1076
    %v2266 = vunpack.c.l.b16 %v1077
    %v2267 = vunpack.c.h.b16 %v1077
    %v2268 = vunpack.c.l.b16 %v1078
    %v2269 = vunpack.c.h.b16 %v1078
    %v2270 = vunpack.c.l.b16 %v1079
    %v2271 = vunpack.c.h.b16 %v1079
    %v2272 = vunpack.c.l.b16 %v1080
    %v2273 = vunpack.c.h.b16 %v1080
    %v2274 = vunpack.c.l.b16 %v1081
    %v2275 = vunpack.c.h.b16 %v1081
    %v2276 = vunpack.c.l.b16 %v1082
    %v2277 = vunpack.c.h.b16 %v1082
    %v2278 = vunpack.c.l.b16 %v1083
    %v2279 = vunpack.c.h.b16 %v1083
    %v2280 = vunpack.c.l.b16 %v1084
    %v2281 = vunpack.c.h.b16 %v1084
    %v2282 = vunpack.c.l.b16 %v1085
    %v2283 = vunpack.c.h.b16 %v1085
    %v2284 = vunpack.c.l.b16 %v1086
    %v2285 = vunpack.c.h.b16 %v1086
    %v2286 = vunpack.c.l.b16 %v1087
    %v2287 = vunpack.c.h.b16 %v1087
    %v2288 = vunpack.c.l.b16 %v1088
    %v2289 = vunpack.c.h.b16 %v1088
    %v2290 = vunpack.c.l.b16 %v1089
    %v2291 = vunpack.c.h.b16 %v1089
    %v2292 = vunpack.c.l.b16 %v1090
    %v2293 = vunpack.c.h.b16 %v1090
    %v2294 = vunpack.c.l.b16 %v1091
    %v2295 = vunpack.c.h.b16 %v1091
    %v2296 = vunpack.c.l.b16 %v1092
    %v2297 = vunpack.c.h.b16 %v1092
    %v2298 = vunpack.c.l.b16 %v1093
    %v2299 = vunpack.c.h.b16 %v1093
    %v2300 = vunpack.c.l.b16 %v1094
    %v2301 = vunpack.c.h.b16 %v1094
    %v2302 = vunpack.c.l.b16 %v1095
    %v2303 = vunpack.c.h.b16 %v1095
    %v2304 = vunpack.c.l.b16 %v1096
    %v2305 = vunpack.c.h.b16 %v1096
    %v2306 = vunpack.c.l.b16 %v1097
    %v2307 = vunpack.c.h.b16 %v1097
    %v2308 = vunpack.c.l.b16 %v1098
    %v2309 = vunpack.c.h.b16 %v1098
    %v2310 = vunpack.c.l.b16 %v1099
    %v2311 = vunpack.c.h.b16 %v1099
    %v2312 = vunpack.c.l.b16 %v1100
    %v2313 = vunpack.c.h.b16 %v1100
    %v2314 = vunpack.c.l.b16 %v1101
    %v2315 = vunpack.c.h.b16 %v1101
    %v2316 = vunpack.c.l.b16 %v1102
    %v2317 = vunpack.c.h.b16 %v1102
    %v2318 = vunpack.c.l.b16 %v1103
    %v2319 = vunpack.c.h.b16 %v1103
    %v2320 = vunpack.c.l.b16 %v1104
    %v2321 = vunpack.c.h.b16 %v1104
    %v2322 = vunpack.c.l.b16 %v1105
    %v2323 = vunpack.c.h.b16 %v1105
    %v2324 = vunpack.c.l.b16 %v1106
    %v2325 = vunpack.c.h.b16 %v1106
    %v2326 = vunpack.c.l.b16 %v1107
    %v2327 = vunpack.c.h.b16 %v1107
    %v2328 = vunpack.c.l.b16 %v1108
    %v2329 = vunpack.c.h.b16 %v1108
    %v2330 = vunpack.c.l.b16 %v1109
    %v2331 = vunpack.c.h.b16 %v1109
    %v2332 = vunpack.c.l.b16 %v1110
    %v2333 = vunpack.c.h.b16 %v1110
    %v2334 = vunpack.c.l.b16 %v1111
    %v2335 = vunpack.c.h.b16 %v1111
    %v2336 = vunpack.c.l.b16 %v1112
    %v2337 = vunpack.c.h.b16 %v1112
    %v2338 = vunpack.c.l.b16 %v1113
    %v2339 = vunpack.c.h.b16 %v1113
    %v2340 = vunpack.c.l.b16 %v1114
    %v2341 = vunpack.c.h.b16 %v1114
    %v2342 = vunpack.c.l.b16 %v1115
    %v2343 = vunpack.c.h.b16 %v1115
    %v2344 = vunpack.c.l.b16 %v1116
    %v2345 = vunpack.c.h.b16 %v1116
    %v2346 = vunpack.c.l.b16 %v1117
    %v2347 = vunpack.c.h.b16 %v1117
    %v2348 = vunpack.c.l.b16 %v1118
    %v2349 = vunpack.c.h.b16 %v1118
    %v2350 = vunpack.c.l.b16 %v1119
    %v2351 = vunpack.c.h.b16 %v1119
    %v2352 = vunpack.c.l.b16 %v1120
    %v2353 = vunpack.c.h.b16 %v1120
    %v2354 = vunpack.c.l.b16 %v1121
    %v2355 = vunpack.c.h.b16 %v1121
    %v2356 = vunpack.c.l.b16 %v1122
    %v2357 = vunpack.c.h.b16 %v1122
    %v2358 = vunpack.c.l.b16 %v1123
    %v2359 = vunpack.c.h.b16 %v1123
    %v2360 = vunpack.c.l.b16 %v1124
    %v2361 = vunpack.c.h.b16 %v1124
    %v2362 = vunpack.c.l.b16 %v1125
    %v2363 = vunpack.c.h.b16 %v1125
    %v2364 = vunpack.c.l.b16 %v1126
    %v2365 = vunpack.c.h.b16 %v1126
    %v2366 = vunpack.c.l.b16 %v1127
    %v2367 = vunpack.c.h.b16 %v1127
    %v2368 = vunpack.c.l.b16 %v1128
    %v2369 = vunpack.c.h.b16 %v1128
    %v2370 = vunpack.c.l.b16 %v1129
    %v2371 = vunpack.c.h.b16 %v1129
    %v2372 = vunpack.c.l.b16 %v1130
    %v2373 = vunpack.c.h.b16 %v1130
    %v2374 = vunpack.c.l.b16 %v1131
    %v2375 = vunpack.c.h.b16 %v1131
    %v2376 = vunpack.c.l.b16 %v1132
    %v2377 = vunpack.c.h.b16 %v1132
    %v2378 = vunpack.c.l.b16 %v1133
    %v2379 = vunpack.c.h.b16 %v1133
    %v2380 = vunpack.c.l.b16 %v1134
    %v2381 = vunpack.c.h.b16 %v1134
    %v2382 = vunpack.c.l.b16 %v1135
    %v2383 = vunpack.c.h.b16 %v1135
    %v2384 = vunpack.c.l.b16 %v1136
    %v2385 = vunpack.c.h.b16 %v1136
    %v2386 = vunpack.c.l.b16 %v1137
    %v2387 = vunpack.c.h.b16 %v1137
    %v2388 = vunpack.c.l.b16 %v1138
    %v2389 = vunpack.c.h.b16 %v1138
    %v2390 = vunpack.c.l.b16 %v1139
    %v2391 = vunpack.c.h.b16 %v1139
    %v2392 = vunpack.c.l.b16 %v1140
    %v2393 = vunpack.c.h.b16 %v1140
    %v2394 = vunpack.c.l.b16 %v1141
    %v2395 = vunpack.c.h.b16 %v1141
    %v2396 = vunpack.c.l.b16 %v1142
    %v2397 = vunpack.c.h.b16 %v1142
    %v2398 = vunpack.c.l.b16 %v1143
    %v2399 = vunpack.c.h.b16 %v1143
    %v2400 = vunpack.c.l.b16 %v1144
    %v2401 = vunpack.c.h.b16 %v1144
    %v2402 = vunpack.c.l.b16 %v1145
    %v2403 = vunpack.c.h.b16 %v1145
    %v2404 = vunpack.c.l.b16 %v1146
    %v2405 = vunpack.c.h.b16 %v1146
    %v2406 = vunpack.c.l.b16 %v1147
    %v2407 = vunpack.c.h.b16 %v1147
    %v2408 = vunpack.c.l.b16 %v1148
    %v2409 = vunpack.c.h.b16 %v1148
    %v2410 = vunpack.c.l.b16 %v1149
    %v2411 = vunpack.c.h.b16 %v1149
    %v2412 = vunpack.c.l.b16 %v1150
    %v2413 = vunpack.c.h.b16 %v1150
    %v2414 = vunpack.c.l.b16 %v1151
    %v2415 = vunpack.c.h.b16 %v1151
    %v2416 = vunpack.c.l.b16 %v1152
    %v2417 = vunpack.c.h.b16 %v1152
    %v2418 = vunpack.c.l.b16 %v1153
    %v2419 = vunpack.c.h.b16 %v1153
    %v2420 = vunpack.c.l.b16 %v1154
    %v2421 = vunpack.c.h.b16 %v1154
    %v2422 = vunpack.c.l.b16 %v1155
    %v2423 = vunpack.c.h.b16 %v1155
    %v2424 = vunpack.c.l.b16 %v1156
    %v2425 = vunpack.c.h.b16 %v1156
    %v2426 = vunpack.c.l.b16 %v1157
    %v2427 = vunpack.c.h.b16 %v1157
    %v2428 = vunpack.c.l.b16 %v1158
    %v2429 = vunpack.c.h.b16 %v1158
    %v2430 = vunpack.c.l.b16 %v1159
    %v2431 = vunpack.c.h.b16 %v1159
    %v2432 = vunpack.c.l.b16 %v1160
    %v2433 = vunpack.c.h.b16 %v1160
    %v2434 = vunpack.c.l.b16 %v1161
    %v2435 = vunpack.c.h.b16 %v1161
    %v2436 = vunpack.c.l.b16 %v1162
    %v2437 = vunpack.c.h.b16 %v1162
    %v2438 = vunpack.c.l.b16 %v1163
    %v2439 = vunpack.c.h.b16 %v1163
    %v2440 = vunpack.c.l.b16 %v1164
    %v2441 = vunpack.c.h.b16 %v1164
    %v2442 = vunpack.c.l.b16 %v1165
    %v2443 = vunpack.c.h.b16 %v1165
    %v2444 = vunpack.c.l.b16 %v1166
    %v2445 = vunpack.c.h.b16 %v1166
    %v2446 = vunpack.c.l.b16 %v1167
    %v2447 = vunpack.c.h.b16 %v1167
    %v2448 = vunpack.c.l.b16 %v1168
    %v2449 = vunpack.c.h.b16 %v1168
    %v2450 = vunpack.c.l.b16 %v1169
    %v2451 = vunpack.c.h.b16 %v1169
    %v2452 = vunpack.c.l.b16 %v1170
    %v2453 = vunpack.c.h.b16 %v1170
    %v2454 = vunpack.c.l.b16 %v1171
    %v2455 = vunpack.c.h.b16 %v1171
    %v2456 = vunpack.c.l.b16 %v1172
    %v2457 = vunpack.c.h.b16 %v1172
    %v2458 = vunpack.c.l.b16 %v1173
    %v2459 = vunpack.c.h.b16 %v1173
    %v2460 = vunpack.c.l.b16 %v1174
    %v2461 = vunpack.c.h.b16 %v1174
    %v2462 = vunpack.c.l.b16 %v1175
    %v2463 = vunpack.c.h.b16 %v1175
    %v2464 = vunpack.c.l.b16 %v1176
    %v2465 = vunpack.c.h.b16 %v1176
    %v2466 = vunpack.c.l.b16 %v1177
    %v2467 = vunpack.c.h.b16 %v1177
    %v2468 = vunpack.c.l.b16 %v1178
    %v2469 = vunpack.c.h.b16 %v1178
    %v2470 = vunpack.c.l.b16 %v1179
    %v2471 = vunpack.c.h.b16 %v1179
    %v2472 = vunpack.c.l.b16 %v1180
    %v2473 = vunpack.c.h.b16 %v1180
    %v2474 = vunpack.c.l.b16 %v1181
    %v2475 = vunpack.c.h.b16 %v1181
    %v2476 = vunpack.c.l.b16 %v1182
    %v2477 = vunpack.c.h.b16 %v1182
    %v2478 = vunpack.c.l.b16 %v1183
    %v2479 = vunpack.c.h.b16 %v1183
    %v2480 = vunpack.c.l.b16 %v1184
    %v2481 = vunpack.c.h.b16 %v1184
    %v2482 = vunpack.c.l.b16 %v1185
    %v2483 = vunpack.c.h.b16 %v1185
    %v2484 = vunpack.c.l.b16 %v1186
    %v2485 = vunpack.c.h.b16 %v1186
    %v2486 = vunpack.c.l.b16 %v1187
    %v2487 = vunpack.c.h.b16 %v1187
    %v2488 = vunpack.c.l.b16 %v1188
    %v2489 = vunpack.c.h.b16 %v1188
    %v2490 = vunpack.c.l.b16 %v1189
    %v2491 = vunpack.c.h.b16 %v1189
    %v2492 = vunpack.c.l.b16 %v1190
    %v2493 = vunpack.c.h.b16 %v1190
    %v2494 = vunpack.c.l.b16 %v1191
    %v2495 = vunpack.c.h.b16 %v1191
    %v2496 = vunpack.c.l.b16 %v1192
    %v2497 = vunpack.c.h.b16 %v1192
    %v2498 = vunpack.c.l.b16 %v1193
    %v2499 = vunpack.c.h.b16 %v1193
    %v2500 = vunpack.c.l.b16 %v1194
    %v2501 = vunpack.c.h.b16 %v1194
    %v2502 = vunpack.c.l.b16 %v1195
    %v2503 = vunpack.c.h.b16 %v1195
    %v2504 = vunpack.c.l.b16 %v1196
    %v2505 = vunpack.c.h.b16 %v1196
    %v2506 = vunpack.c.l.b16 %v1197
    %v2507 = vunpack.c.h.b16 %v1197
    %v2508 = vunpack.c.l.b16 %v1198
    %v2509 = vunpack.c.h.b16 %v1198
    %v2510 = vunpack.c.l.b16 %v1199
    %v2511 = vunpack.c.h.b16 %v1199
    %v2512 = vunpack.c.l.b16 %v1200
    %v2513 = vunpack.c.h.b16 %v1200
    %v2514 = vunpack.c.l.b16 %v1201
    %v2515 = vunpack.c.h.b16 %v1201
    %v2516 = vunpack.c.l.b16 %v1202
    %v2517 = vunpack.c.h.b16 %v1202
    %v2518 = vunpack.c.l.b16 %v1203
    %v2519 = vunpack.c.h.b16 %v1203
    %v2520 = vunpack.c.l.b16 %v1204
    %v2521 = vunpack.c.h.b16 %v1204
    %v2522 = vunpack.c.l.b16 %v1205
    %v2523 = vunpack.c.h.b16 %v1205
    %v2524 = vunpack.c.l.b16 %v1206
    %v2525 = vunpack.c.h.b16 %v1206
    %v2526 = vunpack.c.l.b16 %v1207
    %v2527 = vunpack.c.h.b16 %v1207
    %v2528 = vunpack.c.l.b16 %v1208
    %v2529 = vunpack.c.h.b16 %v1208
    %v2530 = vunpack.c.l.b16 %v1209
    %v2531 = vunpack.c.h.b16 %v1209
    %v2532 = vunpack.c.l.b16 %v1210
    %v2533 = vunpack.c.h.b16 %v1210
    %v2534 = vunpack.c.l.b16 %v1211
    %v2535 = vunpack.c.h.b16 %v1211
    %v2536 = vunpack.c.l.b16 %v1212
    %v2537 = vunpack.c.h.b16 %v1212
    %v2538 = vunpack.c.l.b16 %v1213
    %v2539 = vunpack.c.h.b16 %v1213
    %v2540 = vunpack.c.l.b16 %v1214
    %v2541 = vunpack.c.h.b16 %v1214
    %v2542 = vunpack.c.l.b16 %v1215
    %v2543 = vunpack.c.h.b16 %v1215
    %v2544 = vunpack.c.l.b16 %v1216
    %v2545 = vunpack.c.h.b16 %v1216
    %v2546 = vunpack.c.l.b16 %v1217
    %v2547 = vunpack.c.h.b16 %v1217
    %v2548 = vunpack.c.l.b16 %v1218
    %v2549 = vunpack.c.h.b16 %v1218
    %v2550 = vunpack.c.l.b16 %v1219
    %v2551 = vunpack.c.h.b16 %v1219
    %v2552 = vunpack.c.l.b16 %v1220
    %v2553 = vunpack.c.h.b16 %v1220
    %v2554 = vunpack.c.l.b16 %v1221
    %v2555 = vunpack.c.h.b16 %v1221
    %v2556 = vunpack.c.l.b16 %v1222
    %v2557 = vunpack.c.h.b16 %v1222
    %v2558 = vunpack.c.l.b16 %v1223
    %v2559 = vunpack.c.h.b16 %v1223
    %v2560 = vunpack.c.l.b16 %v1224
    %v2561 = vunpack.c.h.b16 %v1224
    %v2562 = vunpack.c.l.b16 %v1225
    %v2563 = vunpack.c.h.b16 %v1225
    %v2564 = vunpack.c.l.b16 %v1226
    %v2565 = vunpack.c.h.b16 %v1226
    %v2566 = vunpack.c.l.b16 %v1227
    %v2567 = vunpack.c.h.b16 %v1227
    %v2568 = vunpack.c.l.b16 %v1228
    %v2569 = vunpack.c.h.b16 %v1228
    %v2570 = vunpack.c.l.b16 %v1229
    %v2571 = vunpack.c.h.b16 %v1229
    %v2572 = vunpack.c.l.b16 %v1230
    %v2573 = vunpack.c.h.b16 %v1230
    %v2574 = vunpack.c.l.b16 %v1231
    %v2575 = vunpack.c.h.b16 %v1231
    %v2576 = vunpack.c.l.b16 %v1232
    %v2577 = vunpack.c.h.b16 %v1232
    %v2578 = vunpack.c.l.b16 %v1233
    %v2579 = vunpack.c.h.b16 %v1233
    %v2580 = vunpack.c.l.b16 %v1234
    %v2581 = vunpack.c.h.b16 %v1234
    %v2582 = vunpack.c.l.b16 %v1235
    %v2583 = vunpack.c.h.b16 %v1235
    %v2584 = vunpack.c.l.b16 %v1236
    %v2585 = vunpack.c.h.b16 %v1236
    %v2586 = vunpack.c.l.b16 %v1237
    %v2587 = vunpack.c.h.b16 %v1237
    %v2588 = vunpack.c.l.b16 %v1238
    %v2589 = vunpack.c.h.b16 %v1238
    %v2590 = vunpack.c.l.b16 %v1239
    %v2591 = vunpack.c.h.b16 %v1239
    %v2592 = vunpack.c.l.b16 %v1240
    %v2593 = vunpack.c.h.b16 %v1240
    %v2594 = vunpack.c.l.b16 %v1241
    %v2595 = vunpack.c.h.b16 %v1241
    %v2596 = vunpack.c.l.b16 %v1242
    %v2597 = vunpack.c.h.b16 %v1242
    %v2598 = vunpack.c.l.b16 %v1243
    %v2599 = vunpack.c.h.b16 %v1243
    %v2600 = vunpack.c.l.b16 %v1244
    %v2601 = vunpack.c.h.b16 %v1244
    %v2602 = vunpack.c.l.b16 %v1245
    %v2603 = vunpack.c.h.b16 %v1245
    %v2604 = vunpack.c.l.b16 %v1246
    %v2605 = vunpack.c.h.b16 %v1246
    %v2606 = vunpack.c.l.b16 %v1247
    %v2607 = vunpack.c.h.b16 %v1247
    %v2608 = vunpack.c.l.b16 %v1248
    %v2609 = vunpack.c.h.b16 %v1248
    %v2610 = vunpack.c.l.b16 %v1249
    %v2611 = vunpack.c.h.b16 %v1249
    %v2612 = vunpack.c.l.b16 %v1250
    %v2613 = vunpack.c.h.b16 %v1250
    %v2614 = vunpack.c.l.b16 %v1251
    %v2615 = vunpack.c.h.b16 %v1251
    %v2616 = vunpack.c.l.b16 %v1252
    %v2617 = vunpack.c.h.b16 %v1252
    %v2618 = vunpack.c.l.b16 %v1253
    %v2619 = vunpack.c.h.b16 %v1253
    %v2620 = vunpack.c.l.b16 %v1254
    %v2621 = vunpack.c.h.b16 %v1254
    %v2622 = vunpack.c.l.b16 %v1255
    %v2623 = vunpack.c.h.b16 %v1255
    %v2624 = vunpack.c.l.b16 %v1256
    %v2625 = vunpack.c.h.b16 %v1256
    %v2626 = vunpack.c.l.b16 %v1257
    %v2627 = vunpack.c.h.b16 %v1257
    %v2628 = vunpack.c.l.b16 %v1258
    %v2629 = vunpack.c.h.b16 %v1258
    %v2630 = vunpack.c.l.b16 %v1259
    %v2631 = vunpack.c.h.b16 %v1259
    %v2632 = vunpack.c.l.b16 %v1260
    %v2633 = vunpack.c.h.b16 %v1260
    %v2634 = vunpack.c.l.b16 %v1261
    %v2635 = vunpack.c.h.b16 %v1261
    %v2636 = vunpack.c.l.b16 %v1262
    %v2637 = vunpack.c.h.b16 %v1262
    %v2638 = vunpack.c.l.b16 %v1263
    %v2639 = vunpack.c.h.b16 %v1263
    %v2640 = vunpack.c.l.b16 %v1264
    %v2641 = vunpack.c.h.b16 %v1264
    %v2642 = vunpack.c.l.b16 %v1265
    %v2643 = vunpack.c.h.b16 %v1265
    %v2644 = vunpack.c.l.b16 %v1266
    %v2645 = vunpack.c.h.b16 %v1266
    %v2646 = vunpack.c.l.b16 %v1267
    %v2647 = vunpack.c.h.b16 %v1267
    %v2648 = vunpack.c.l.b16 %v1268
    %v2649 = vunpack.c.h.b16 %v1268
    %v2650 = vunpack.c.l.b16 %v1269
    %v2651 = vunpack.c.h.b16 %v1269
    %v2652 = vunpack.c.l.b16 %v1270
    %v2653 = vunpack.c.h.b16 %v1270
    %v2654 = vunpack.c.l.b16 %v1271
    %v2655 = vunpack.c.h.b16 %v1271
    %v2656 = vunpack.c.l.b16 %v1272
    %v2657 = vunpack.c.h.b16 %v1272
    %v2658 = vunpack.c.l.b16 %v1273
    %v2659 = vunpack.c.h.b16 %v1273
    %v2660 = vunpack.c.l.b16 %v1274
    %v2661 = vunpack.c.h.b16 %v1274
    %v2662 = vunpack.c.l.b16 %v1275
    %v2663 = vunpack.c.h.b16 %v1275
    %v2664 = vunpack.c.l.b16 %v1276
    %v2665 = vunpack.c.h.b16 %v1276
    %v2666 = vunpack.c.l.b16 %v1277
    %v2667 = vunpack.c.h.b16 %v1277
    %v2668 = vunpack.c.l.b16 %v1278
    %v2669 = vunpack.c.h.b16 %v1278
    %v2670 = vunpack.c.l.b16 %v1279
    %v2671 = vunpack.c.h.b16 %v1279
    %v2672 = vunpack.c.l.b16 %v1280
    %v2673 = vunpack.c.h.b16 %v1280
    %v2674 = vunpack.c.l.b16 %v1281
    %v2675 = vunpack.c.h.b16 %v1281
    %v2676 = vunpack.c.l.b16 %v1282
    %v2677 = vunpack.c.h.b16 %v1282
    %v2678 = vunpack.c.l.b16 %v1283
    %v2679 = vunpack.c.h.b16 %v1283
    %v2680 = vunpack.c.l.b16 %v1284
    %v2681 = vunpack.c.h.b16 %v1284
    %v2682 = vunpack.c.l.b16 %v1285
    %v2683 = vunpack.c.h.b16 %v1285
    %v2684 = vunpack.c.l.b16 %v1286
    %v2685 = vunpack.c.h.b16 %v1286
    %v2686 = vunpack.c.l.b16 %v1287
    %v2687 = vunpack.c.h.b16 %v1287
    %v2688 = vunpack.c.l.b16 %v1288
    %v2689 = vunpack.c.h.b16 %v1288
    %v2690 = vunpack.c.l.b16 %v1289
    %v2691 = vunpack.c.h.b16 %v1289
    %v2692 = vunpack.c.l.b16 %v1290
    %v2693 = vunpack.c.h.b16 %v1290
    %v2694 = vunpack.c.l.b16 %v1291
    %v2695 = vunpack.c.h.b16 %v1291
    %v2696 = vunpack.c.l.b16 %v1292
    %v2697 = vunpack.c.h.b16 %v1292
    %v2698 = vunpack.c.l.b16 %v1293
    %v2699 = vunpack.c.h.b16 %v1293
    %v2700 = vunpack.c.l.b16 %v1294
    %v2701 = vunpack.c.h.b16 %v1294
    %v2702 = vunpack.c.l.b16 %v1295
    %v2703 = vunpack.c.h.b16 %v1295
    %v2704 = vunpack.c.l.b16 %v1296
    %v2705 = vunpack.c.h.b16 %v1296
    %v2706 = vunpack.c.l.b16 %v1297
    %v2707 = vunpack.c.h.b16 %v1297
    %v2708 = vunpack.c.l.b16 %v1298
    %v2709 = vunpack.c.h.b16 %v1298
    %v2710 = vunpack.c.l.b16 %v1299
    %v2711 = vunpack.c.h.b16 %v1299
    %v2712 = vunpack.c.l.b16 %v1300
    %v2713 = vunpack.c.h.b16 %v1300
    %v2714 = vunpack.c.l.b16 %v1301
    %v2715 = vunpack.c.h.b16 %v1301
    %v2716 = vunpack.c.l.b16 %v1302
    %v2717 = vunpack.c.h.b16 %v1302
    %v2718 = vunpack.c.l.b16 %v1303
    %v2719 = vunpack.c.h.b16 %v1303
    %v2720 = vunpack.c.l.b16 %v1304
    %v2721 = vunpack.c.h.b16 %v1304
    %v2722 = vunpack.c.l.b16 %v1305
    %v2723 = vunpack.c.h.b16 %v1305
    %v2724 = vunpack.c.l.b16 %v1306
    %v2725 = vunpack.c.h.b16 %v1306
    %v2726 = vunpack.c.l.b16 %v1307
    %v2727 = vunpack.c.h.b16 %v1307
    %v2728 = vunpack.c.l.b16 %v1308
    %v2729 = vunpack.c.h.b16 %v1308
    %v2730 = vunpack.c.l.b16 %v1309
    %v2731 = vunpack.c.h.b16 %v1309
    %v2732 = vunpack.c.l.b16 %v1310
    %v2733 = vunpack.c.h.b16 %v1310
    %v2734 = vunpack.c.l.b16 %v1311
    %v2735 = vunpack.c.h.b16 %v1311
    %v2736 = vunpack.c.l.b16 %v1312
    %v2737 = vunpack.c.h.b16 %v1312
    %v2738 = vunpack.c.l.b16 %v1313
    %v2739 = vunpack.c.h.b16 %v1313
    %v2740 = vunpack.c.l.b16 %v1314
    %v2741 = vunpack.c.h.b16 %v1314
    %v2742 = vunpack.c.l.b16 %v1315
    %v2743 = vunpack.c.h.b16 %v1315
    %v2744 = vunpack.c.l.b16 %v1316
    %v2745 = vunpack.c.h.b16 %v1316
    %v2746 = vunpack.c.l.b16 %v1317
    %v2747 = vunpack.c.h.b16 %v1317
    %v2748 = vunpack.c.l.b16 %v1318
    %v2749 = vunpack.c.h.b16 %v1318
    %v2750 = vunpack.c.l.b16 %v1319
    %v2751 = vunpack.c.h.b16 %v1319
    %v2752 = vunpack.c.l.b16 %v1320
    %v2753 = vunpack.c.h.b16 %v1320
    %v2754 = vunpack.c.l.b16 %v1321
    %v2755 = vunpack.c.h.b16 %v1321
    %v2756 = vunpack.c.l.b16 %v1322
    %v2757 = vunpack.c.h.b16 %v1322
    %v2758 = vunpack.c.l.b16 %v1323
    %v2759 = vunpack.c.h.b16 %v1323
    %v2760 = vunpack.c.l.b16 %v1324
    %v2761 = vunpack.c.h.b16 %v1324
    %v2762 = vunpack.c.l.b16 %v1325
    %v2763 = vunpack.c.h.b16 %v1325
    %v2764 = vunpack.c.l.b16 %v1326
    %v2765 = vunpack.c.h.b16 %v1326
    %v2766 = vunpack.c.l.b16 %v1327
    %v2767 = vunpack.c.h.b16 %v1327
    %v2768 = vunpack.c.l.b16 %v1328
    %v2769 = vunpack.c.h.b16 %v1328
    %v2770 = vunpack.c.l.b16 %v1329
    %v2771 = vunpack.c.h.b16 %v1329
    %v2772 = vunpack.c.l.b16 %v1330
    %v2773 = vunpack.c.h.b16 %v1330
    %v2774 = vunpack.c.l.b16 %v1331
    %v2775 = vunpack.c.h.b16 %v1331
    %v2776 = vunpack.c.l.b16 %v1332
    %v2777 = vunpack.c.h.b16 %v1332
    %v2778 = vunpack.c.l.b16 %v1333
    %v2779 = vunpack.c.h.b16 %v1333
    %v2780 = vunpack.c.l.b16 %v1334
    %v2781 = vunpack.c.h.b16 %v1334
    %v2782 = vunpack.c.l.b16 %v1335
    %v2783 = vunpack.c.h.b16 %v1335
    %v2784 = vunpack.c.l.b16 %v1336
    %v2785 = vunpack.c.h.b16 %v1336
    %v2786 = vunpack.c.l.b16 %v1337
    %v2787 = vunpack.c.h.b16 %v1337
    %v2788 = vunpack.c.l.b16 %v1338
    %v2789 = vunpack.c.h.b16 %v1338
    %v2790 = vunpack.c.l.b16 %v1339
    %v2791 = vunpack.c.h.b16 %v1339
    %v2792 = vunpack.c.l.b16 %v1340
    %v2793 = vunpack.c.h.b16 %v1340
    %v2794 = vunpack.c.l.b16 %v1341
    %v2795 = vunpack.c.h.b16 %v1341
    %v2796 = vunpack.c.l.b16 %v1342
    %v2797 = vunpack.c.h.b16 %v1342
    %v2798 = vunpack.c.l.b16 %v1343
    %v2799 = vunpack.c.h.b16 %v1343
    %v2800 = vunpack.c.l.b16 %v1344
    %v2801 = vunpack.c.h.b16 %v1344
    %v2802 = vunpack.c.l.b16 %v1345
    %v2803 = vunpack.c.h.b16 %v1345
    %v2804 = vunpack.c.l.b16 %v1346
    %v2805 = vunpack.c.h.b16 %v1346
    %v2806 = vunpack.c.l.b16 %v1347
    %v2807 = vunpack.c.h.b16 %v1347
    %v2808 = vunpack.c.l.b16 %v1348
    %v2809 = vunpack.c.h.b16 %v1348
    %v2810 = vunpack.c.l.b16 %v1349
    %v2811 = vunpack.c.h.b16 %v1349
    %v2812 = vunpack.c.l.b16 %v1350
    %v2813 = vunpack.c.h.b16 %v1350
    %v2814 = vunpack.c.l.b16 %v1351
    %v2815 = vunpack.c.h.b16 %v1351
    %v2816 = vunpack.c.l.b16 %v1352
    %v2817 = vunpack.c.h.b16 %v1352
    %v2818 = vunpack.c.l.b16 %v1353
    %v2819 = vunpack.c.h.b16 %v1353
    %v2820 = vunpack.c.l.b16 %v1354
    %v2821 = vunpack.c.h.b16 %v1354
    %v2822 = vunpack.c.l.b16 %v1355
    %v2823 = vunpack.c.h.b16 %v1355
    %v2824 = vunpack.c.l.b16 %v1356
    %v2825 = vunpack.c.h.b16 %v1356
    %v2826 = vunpack.c.l.b16 %v1357
    %v2827 = vunpack.c.h.b16 %v1357
    %v2828 = vunpack.c.l.b16 %v1358
    %v2829 = vunpack.c.h.b16 %v1358
    %v2830 = vunpack.c.l.b16 %v1359
    %v2831 = vunpack.c.h.b16 %v1359
    %v2832 = vunpack.c.l.b16 %v1360
    %v2833 = vunpack.c.h.b16 %v1360
    %v2834 = vunpack.c.l.b16 %v1361
    %v2835 = vunpack.c.h.b16 %v1361
    %v2836 = vunpack.c.l.b16 %v1362
    %v2837 = vunpack.c.h.b16 %v1362
    %v2838 = vunpack.c.l.b16 %v1363
    %v2839 = vunpack.c.h.b16 %v1363
    %v2840 = vunpack.c.l.b16 %v1364
    %v2841 = vunpack.c.h.b16 %v1364
    %v2842 = vunpack.c.l.b16 %v1365
    %v2843 = vunpack.c.h.b16 %v1365
    %v2844 = vunpack.c.l.b16 %v1366
    %v2845 = vunpack.c.h.b16 %v1366
    %v2846 = vunpack.c.l.b16 %v1367
    %v2847 = vunpack.c.h.b16 %v1367
    %v2848 = vunpack.c.l.b16 %v1368
    %v2849 = vunpack.c.h.b16 %v1368
    %v2850 = vunpack.c.l.b16 %v1369
    %v2851 = vunpack.c.h.b16 %v1369
    %v2852 = vunpack.c.l.b16 %v1370
    %v2853 = vunpack.c.h.b16 %v1370
    %v2854 = vunpack.c.l.b16 %v1371
    %v2855 = vunpack.c.h.b16 %v1371
    %v2856 = vunpack.c.l.b16 %v1372
    %v2857 = vunpack.c.h.b16 %v1372
    %v2858 = vunpack.c.l.b16 %v1373
    %v2859 = vunpack.c.h.b16 %v1373
    %v2860 = vunpack.c.l.b16 %v1374
    %v2861 = vunpack.c.h.b16 %v1374
    %v2862 = vunpack.c.l.b16 %v1375
    %v2863 = vunpack.c.h.b16 %v1375
    %v2864 = vunpack.c.l.b16 %v1376
    %v2865 = vunpack.c.h.b16 %v1376
    %v2866 = vunpack.c.l.b16 %v1377
    %v2867 = vunpack.c.h.b16 %v1377
    %v2868 = vunpack.c.l.b16 %v1378
    %v2869 = vunpack.c.h.b16 %v1378
    %v2870 = vunpack.c.l.b16 %v1379
    %v2871 = vunpack.c.h.b16 %v1379
    %v2872 = vunpack.c.l.b16 %v1380
    %v2873 = vunpack.c.h.b16 %v1380
    %v2874 = vunpack.c.l.b16 %v1381
    %v2875 = vunpack.c.h.b16 %v1381
    %v2876 = vunpack.c.l.b16 %v1382
    %v2877 = vunpack.c.h.b16 %v1382
    %v2878 = vunpack.c.l.b16 %v1383
    %v2879 = vunpack.c.h.b16 %v1383
    %v2880 = vunpack.c.l.b16 %v1384
    %v2881 = vunpack.c.h.b16 %v1384
    %v2882 = vunpack.c.l.b16 %v1385
    %v2883 = vunpack.c.h.b16 %v1385
    %v2884 = vunpack.c.l.b16 %v1386
    %v2885 = vunpack.c.h.b16 %v1386
    %v2886 = vunpack.c.l.b16 %v1387
    %v2887 = vunpack.c.h.b16 %v1387
    %v2888 = vunpack.c.l.b16 %v1388
    %v2889 = vunpack.c.h.b16 %v1388
    %v2890 = vunpack.c.l.b16 %v1389
    %v2891 = vunpack.c.h.b16 %v1389
    %v2892 = vunpack.c.l.b16 %v1390
    %v2893 = vunpack.c.h.b16 %v1390
    %v2894 = vunpack.c.l.b16 %v1391
    %v2895 = vunpack.c.h.b16 %v1391
    %v2896 = vunpack.c.l.b16 %v1392
    %v2897 = vunpack.c.h.b16 %v1392
    %v2898 = vunpack.c.l.b16 %v1393
    %v2899 = vunpack.c.h.b16 %v1393
    %v2900 = vunpack.c.l.b16 %v1394
    %v2901 = vunpack.c.h.b16 %v1394
    %v2902 = vunpack.c.l.b16 %v1395
    %v2903 = vunpack.c.h.b16 %v1395
    %v2904 = vunpack.c.l.b16 %v1396
    %v2905 = vunpack.c.h.b16 %v1396
    %v2906 = vunpack.c.l.b16 %v1397
    %v2907 = vunpack.c.h.b16 %v1397
    %v2908 = vunpack.c.l.b16 %v1398
    %v2909 = vunpack.c.h.b16 %v1398
    %v2910 = vunpack.c.l.b16 %v1399
    %v2911 = vunpack.c.h.b16 %v1399
    %v2912 = vunpack.c.l.b16 %v1400
    %v2913 = vunpack.c.h.b16 %v1400
    %v2914 = vunpack.c.l.b16 %v1401
    %v2915 = vunpack.c.h.b16 %v1401
    %v2916 = vunpack.c.l.b16 %v1402
    %v2917 = vunpack.c.h.b16 %v1402
    %v2918 = vunpack.c.l.b16 %v1403
    %v2919 = vunpack.c.h.b16 %v1403
    %v2920 = vunpack.c.l.b16 %v1404
    %v2921 = vunpack.c.h.b16 %v1404
    %v2922 = vunpack.c.l.b16 %v1405
    %v2923 = vunpack.c.h.b16 %v1405
    %v2924 = vunpack.c.l.b16 %v1406
    %v2925 = vunpack.c.h.b16 %v1406
    %v2926 = vunpack.c.l.b16 %v1407
    %v2927 = vunpack.c.h.b16 %v1407
    %v2928 = vunpack.c.l.b16 %v1408
    %v2929 = vunpack.c.h.b16 %v1408
    %v2930 = vunpack.c.l.b16 %v1409
    %v2931 = vunpack.c.h.b16 %v1409
    %v2932 = vunpack.c.l.b16 %v1410
    %v2933 = vunpack.c.h.b16 %v1410
    %v2934 = vunpack.c.l.b16 %v1411
    %v2935 = vunpack.c.h.b16 %v1411
    %v2936 = vunpack.c.l.b16 %v1412
    %v2937 = vunpack.c.h.b16 %v1412
    %v2938 = vunpack.c.l.b16 %v1413
    %v2939 = vunpack.c.h.b16 %v1413
    %v2940 = vunpack.c.l.b16 %v1414
    %v2941 = vunpack.c.h.b16 %v1414
    %v2942 = vunpack.c.l.b16 %v1415
    %v2943 = vunpack.c.h.b16 %v1415
    %v2944 = vunpack.c.l.b16 %v1416
    %v2945 = vunpack.c.h.b16 %v1416
    %v2946 = vunpack.c.l.b16 %v1417
    %v2947 = vunpack.c.h.b16 %v1417
    %v2948 = vunpack.c.l.b16 %v1418
    %v2949 = vunpack.c.h.b16 %v1418
    %v2950 = vunpack.c.l.b16 %v1419
    %v2951 = vunpack.c.h.b16 %v1419
    %v2952 = vunpack.c.l.b16 %v1420
    %v2953 = vunpack.c.h.b16 %v1420
    %v2954 = vunpack.c.l.b16 %v1421
    %v2955 = vunpack.c.h.b16 %v1421
    %v2956 = vunpack.c.l.b16 %v1422
    %v2957 = vunpack.c.h.b16 %v1422
    %v2958 = vunpack.c.l.b16 %v1423
    %v2959 = vunpack.c.h.b16 %v1423
    %v2960 = vunpack.c.l.b16 %v1424
    %v2961 = vunpack.c.h.b16 %v1424
    %v2962 = vunpack.c.l.b16 %v1425
    %v2963 = vunpack.c.h.b16 %v1425
    %v2964 = vunpack.c.l.b16 %v1426
    %v2965 = vunpack.c.h.b16 %v1426
    %v2966 = vunpack.c.l.b16 %v1427
    %v2967 = vunpack.c.h.b16 %v1427
    %v2968 = vunpack.c.l.b16 %v1428
    %v2969 = vunpack.c.h.b16 %v1428
    %v2970 = vunpack.c.l.b16 %v1429
    %v2971 = vunpack.c.h.b16 %v1429
    %v2972 = vunpack.c.l.b16 %v1430
    %v2973 = vunpack.c.h.b16 %v1430
    %v2974 = vunpack.c.l.b16 %v1431
    %v2975 = vunpack.c.h.b16 %v1431
    %v2976 = vunpack.c.l.b16 %v1432
    %v2977 = vunpack.c.h.b16 %v1432
    %v2978 = vunpack.c.l.b16 %v1433
    %v2979 = vunpack.c.h.b16 %v1433
    %v2980 = vunpack.c.l.b16 %v1434
    %v2981 = vunpack.c.h.b16 %v1434
    %v2982 = vunpack.c.l.b16 %v1435
    %v2983 = vunpack.c.h.b16 %v1435
    %v2984 = vunpack.c.l.b16 %v1436
    %v2985 = vunpack.c.h.b16 %v1436
    %v2986 = vunpack.c.l.b16 %v1437
    %v2987 = vunpack.c.h.b16 %v1437
    %v2988 = vunpack.c.l.b16 %v1438
    %v2989 = vunpack.c.h.b16 %v1438
    %v2990 = vunpack.c.l.b16 %v1439
    %v2991 = vunpack.c.h.b16 %v1439
    %v2992 = vunpack.c.l.b16 %v1440
    %v2993 = vunpack.c.h.b16 %v1440
    %v2994 = vunpack.c.l.b16 %v1441
    %v2995 = vunpack.c.h.b16 %v1441
    %v2996 = vunpack.c.l.b16 %v1442
    %v2997 = vunpack.c.h.b16 %v1442
    %v2998 = vunpack.c.l.b16 %v1443
    %v2999 = vunpack.c.h.b16 %v1443
    %v3000 = vunpack.c.l.b16 %v1444
    %v3001 = vunpack.c.h.b16 %v1444
    %v3002 = vunpack.c.l.b16 %v1445
    %v3003 = vunpack.c.h.b16 %v1445
    %v3004 = vunpack.c.l.b16 %v1446
    %v3005 = vunpack.c.h.b16 %v1446
    %v3006 = vunpack.c.l.b16 %v1447
    %v3007 = vunpack.c.h.b16 %v1447
    %v3008 = vunpack.c.l.b16 %v1448
    %v3009 = vunpack.c.h.b16 %v1448
    %v3010 = vunpack.c.l.b16 %v1449
    %v3011 = vunpack.c.h.b16 %v1449
    %v3012 = vunpack.c.l.b16 %v1450
    %v3013 = vunpack.c.h.b16 %v1450
    %v3014 = vunpack.c.l.b16 %v1451
    %v3015 = vunpack.c.h.b16 %v1451
    %v3016 = vunpack.c.l.b16 %v1452
    %v3017 = vunpack.c.h.b16 %v1452
    %v3018 = vunpack.c.l.b16 %v1453
    %v3019 = vunpack.c.h.b16 %v1453
    %v3020 = vunpack.c.l.b16 %v1454
    %v3021 = vunpack.c.h.b16 %v1454
    %v3022 = vunpack.c.l.b16 %v1455
    %v3023 = vunpack.c.h.b16 %v1455
    %v3024 = vunpack.c.l.b16 %v1456
    %v3025 = vunpack.c.h.b16 %v1456
    %v3026 = vunpack.c.l.b16 %v1457
    %v3027 = vunpack.c.h.b16 %v1457
    %v3028 = vunpack.c.l.b16 %v1458
    %v3029 = vunpack.c.h.b16 %v1458
    %v3030 = vunpack.c.l.b16 %v1459
    %v3031 = vunpack.c.h.b16 %v1459
    %v3032 = vunpack.c.l.b16 %v1460
    %v3033 = vunpack.c.h.b16 %v1460
    %v3034 = vunpack.c.l.b16 %v1461
    %v3035 = vunpack.c.h.b16 %v1461
    %v3036 = vunpack.c.l.b16 %v1462
    %v3037 = vunpack.c.h.b16 %v1462
    %v3038 = vunpack.c.l.b16 %v1463
    %v3039 = vunpack.c.h.b16 %v1463
    %v3040 = vunpack.c.l.b16 %v1464
    %v3041 = vunpack.c.h.b16 %v1464
    %v3042 = vunpack.c.l.b16 %v1465
    %v3043 = vunpack.c.h.b16 %v1465
    %v3044 = vpack.c.b16 %v2028, %v2020
    %v3045 = vpack.c.b16 %v2029, %v2021
    %v3046 = vpack.c.b16 %v2030, %v2022
    %v3047 = vpack.c.b16 %v2031, %v2023
    %v3048 = vpack.c.b16 %v2032, %v2024
    %v3049 = vpack.c.b16 %v2033, %v2025
    %v3050 = vpack.c.b16 %v2034, %v2026
    %v3051 = vpack.c.b16 %v2035, %v2027
    %v3052 = vpack.c.b16 %v2044, %v2036
    %v3053 = vpack.c.b16 %v2045, %v2037
    %v3054 = vpack.c.b16 %v2046, %v2038
    %v3055 = vpack.c.b16 %v2047, %v2039
    %v3056 = vpack.c.b16 %v2048, %v2040
    %v3057 = vpack.c.b16 %v2049, %v2041
    %v3058 = vpack.c.b16 %v2050, %v2042
    %v3059 = vpack.c.b16 %v2051, %v2043
    %v3060 = vpack.c.b16 %v2060, %v2052
    %v3061 = vpack.c.b16 %v2061, %v2053
    %v3062 = vpack.c.b16 %v2062, %v2054
    %v3063 = vpack.c.b16 %v2063, %v2055
    %v3064 = vpack.c.b16 %v2064, %v2056
    %v3065 = vpack.c.b16 %v2065, %v2057
    %v3066 = vpack.c.b16 %v2066, %v2058
    %v3067 = vpack.c.b16 %v2067, %v2059
    %v3068 = vpack.c.b16 %v2076, %v2068
    %v3069 = vpack.c.b16 %v2077, %v2069
    %v3070 = vpack.c.b16 %v2078, %v2070
    %v3071 = vpack.c.b16 %v2079, %v2071
    %v3072 = vpack.c.b16 %v2080, %v2072
    %v3073 = vpack.c.b16 %v2081, %v2073
    %v3074 = vpack.c.b16 %v2082, %v2074
    %v3075 = vpack.c.b16 %v2083, %v2075
    %v3076 = vpack.c.b16 %v2092, %v2084
    %v3077 = vpack.c.b16 %v2093, %v2085
    %v3078 = vpack.c.b16 %v2094, %v2086
    %v3079 = vpack.c.b16 %v2095, %v2087
    %v3080 = vpack.c.b16 %v2096, %v2088
    %v3081 = vpack.c.b16 %v2097, %v2089
    %v3082 = vpack.c.b16 %v2098, %v2090
    %v3083 = vpack.c.b16 %v2099, %v2091
    %v3084 = vpack.c.b16 %v2108, %v2100
    %v3085 = vpack.c.b16 %v2109, %v2101
    %v3086 = vpack.c.b16 %v2110, %v2102
    %v3087 = vpack.c.b16 %v2111, %v2103
    %v3088 = vpack.c.b16 %v2112, %v2104
    %v3089 = vpack.c.b16 %v2113, %v2105
    %v3090 = vpack.c.b16 %v2114, %v2106
    %v3091 = vpack.c.b16 %v2115, %v2107
    %v3092 = vpack.c.b16 %v2124, %v2116
    %v3093 = vpack.c.b16 %v2125, %v2117
    %v3094 = vpack.c.b16 %v2126, %v2118
    %v3095 = vpack.c.b16 %v2127, %v2119
    %v3096 = vpack.c.b16 %v2128, %v2120
    %v3097 = vpack.c.b16 %v2129, %v2121
    %v3098 = vpack.c.b16 %v2130, %v2122
    %v3099 = vpack.c.b16 %v2131, %v2123
    %v3100 = vpack.c.b16 %v2140, %v2132
    %v3101 = vpack.c.b16 %v2141, %v2133
    %v3102 = vpack.c.b16 %v2142, %v2134
    %v3103 = vpack.c.b16 %v2143, %v2135
    %v3104 = vpack.c.b16 %v2144, %v2136
    %v3105 = vpack.c.b16 %v2145, %v2137
    %v3106 = vpack.c.b16 %v2146, %v2138
    %v3107 = vpack.c.b16 %v2147, %v2139
    %v3108 = vpack.c.b16 %v2156, %v2148
    %v3109 = vpack.c.b16 %v2157, %v2149
    %v3110 = vpack.c.b16 %v2158, %v2150
    %v3111 = vpack.c.b16 %v2159, %v2151
    %v3112 = vpack.c.b16 %v2160, %v2152
    %v3113 = vpack.c.b16 %v2161, %v2153
    %v3114 = vpack.c.b16 %v2162, %v2154
    %v3115 = vpack.c.b16 %v2163, %v2155
    %v3116 = vpack.c.b16 %v2172, %v2164
    %v3117 = vpack.c.b16 %v2173, %v2165
    %v3118 = vpack.c.b16 %v2174, %v2166
    %v3119 = vpack.c.b16 %v2175, %v2167
    %v3120 = vpack.c.b16 %v2176, %v2168
    %v3121 = vpack.c.b16 %v2177, %v2169
    %v3122 = vpack.c.b16 %v2178, %v2170
    %v3123 = vpack.c.b16 %v2179, %v2171
    %v3124 = vpack.c.b16 %v2188, %v2180
    %v3125 = vpack.c.b16 %v2189, %v2181
    %v3126 = vpack.c.b16 %v2190, %v2182
    %v3127 = vpack.c.b16 %v2191, %v2183
    %v3128 = vpack.c.b16 %v2192, %v2184
    %v3129 = vpack.c.b16 %v2193, %v2185
    %v3130 = vpack.c.b16 %v2194, %v2186
    %v3131 = vpack.c.b16 %v2195, %v2187
    %v3132 = vpack.c.b16 %v2204, %v2196
    %v3133 = vpack.c.b16 %v2205, %v2197
    %v3134 = vpack.c.b16 %v2206, %v2198
    %v3135 = vpack.c.b16 %v2207, %v2199
    %v3136 = vpack.c.b16 %v2208, %v2200
    %v3137 = vpack.c.b16 %v2209, %v2201
    %v3138 = vpack.c.b16 %v2210, %v2202
    %v3139 = vpack.c.b16 %v2211, %v2203
    %v3140 = vpack.c.b16 %v2220, %v2212
    %v3141 = vpack.c.b16 %v2221, %v2213
    %v3142 = vpack.c.b16 %v2222, %v2214
    %v3143 = vpack.c.b16 %v2223, %v2215
    %v3144 = vpack.c.b16 %v2224, %v2216
    %v3145 = vpack.c.b16 %v2225, %v2217
    %v3146 = vpack.c.b16 %v2226, %v2218
    %v3147 = vpack.c.b16 %v2227, %v2219
    %v3148 = vpack.c.b16 %v2236, %v2228
    %v3149 = vpack.c.b16 %v2237, %v2229
    %v3150 = vpack.c.b16 %v2238, %v2230
    %v3151 = vpack.c.b16 %v2239, %v2231
    %v3152 = vpack.c.b16 %v2240, %v2232
    %v3153 = vpack.c.b16 %v2241, %v2233
    %v3154 = vpack.c.b16 %v2242, %v2234
    %v3155 = vpack.c.b16 %v2243, %v2235
    %v3156 = vpack.c.b16 %v2252, %v2244
    %v3157 = vpack.c.b16 %v2253, %v2245
    %v3158 = vpack.c.b16 %v2254, %v2246
    %v3159 = vpack.c.b16 %v2255, %v2247
    %v3160 = vpack.c.b16 %v2256, %v2248
    %v3161 = vpack.c.b16 %v2257, %v2249
    %v3162 = vpack.c.b16 %v2258, %v2250
    %v3163 = vpack.c.b16 %v2259, %v2251
    %v3164 = vpack.c.b16 %v2268, %v2260
    %v3165 = vpack.c.b16 %v2269, %v2261
    %v3166 = vpack.c.b16 %v2270, %v2262
    %v3167 = vpack.c.b16 %v2271, %v2263
    %v3168 = vpack.c.b16 %v2272, %v2264
    %v3169 = vpack.c.b16 %v2273, %v2265
    %v3170 = vpack.c.b16 %v2274, %v2266
    %v3171 = vpack.c.b16 %v2275, %v2267
    %v3172 = vpack.c.b16 %v2284, %v2276
    %v3173 = vpack.c.b16 %v2285, %v2277
    %v3174 = vpack.c.b16 %v2286, %v2278
    %v3175 = vpack.c.b16 %v2287, %v2279
    %v3176 = vpack.c.b16 %v2288, %v2280
    %v3177 = vpack.c.b16 %v2289, %v2281
    %v3178 = vpack.c.b16 %v2290, %v2282
    %v3179 = vpack.c.b16 %v2291, %v2283
    %v3180 = vpack.c.b16 %v2300, %v2292
    %v3181 = vpack.c.b16 %v2301, %v2293
    %v3182 = vpack.c.b16 %v2302, %v2294
    %v3183 = vpack.c.b16 %v2303, %v2295
    %v3184 = vpack.c.b16 %v2304, %v2296
    %v3185 = vpack.c.b16 %v2305, %v2297
    %v3186 = vpack.c.b16 %v2306, %v2298
    %v3187 = vpack.c.b16 %v2307, %v2299
    %v3188 = vpack.c.b16 %v2316, %v2308
    %v3189 = vpack.c.b16 %v2317, %v2309
    %v3190 = vpack.c.b16 %v2318, %v2310
    %v3191 = vpack.c.b16 %v2319, %v2311
    %v3192 = vpack.c.b16 %v2320, %v2312
    %v3193 = vpack.c.b16 %v2321, %v2313
    %v3194 = vpack.c.b16 %v2322, %v2314
    %v3195 = vpack.c.b16 %v2323, %v2315
    %v3196 = vpack.c.b16 %v2332, %v2324
    %v3197 = vpack.c.b16 %v2333, %v2325
    %v3198 = vpack.c.b16 %v2334, %v2326
    %v3199 = vpack.c.b16 %v2335, %v2327
    %v3200 = vpack.c.b16 %v2336, %v2328
    %v3201 = vpack.c.b16 %v2337, %v2329
    %v3202 = vpack.c.b16 %v2338, %v2330
    %v3203 = vpack.c.b16 %v2339, %v2331
    %v3204 = vpack.c.b16 %v2348, %v2340
    %v3205 = vpack.c.b16 %v2349, %v2341
    %v3206 = vpack.c.b16 %v2350, %v2342
    %v3207 = vpack.c.b16 %v2351, %v2343
    %v3208 = vpack.c.b16 %v2352, %v2344
    %v3209 = vpack.c.b16 %v2353, %v2345
    %v3210 = vpack.c.b16 %v2354, %v2346
    %v3211 = vpack.c.b16 %v2355, %v2347
    %v3212 = vpack.c.b16 %v2364, %v2356
    %v3213 = vpack.c.b16 %v2365, %v2357
    %v3214 = vpack.c.b16 %v2366, %v2358
    %v3215 = vpack.c.b16 %v2367, %v2359
    %v3216 = vpack.c.b16 %v2368, %v2360
    %v3217 = vpack.c.b16 %v2369, %v2361
    %v3218 = vpack.c.b16 %v2370, %v2362
    %v3219 = vpack.c.b16 %v2371, %v2363
    %v3220 = vpack.c.b16 %v2380, %v2372
    %v3221 = vpack.c.b16 %v2381, %v2373
    %v3222 = vpack.c.b16 %v2382, %v2374
    %v3223 = vpack.c.b16 %v2383, %v2375
    %v3224 = vpack.c.b16 %v2384, %v2376
    %v3225 = vpack.c.b16 %v2385, %v2377
    %v3226 = vpack.c.b16 %v2386, %v2378
    %v3227 = vpack.c.b16 %v2387, %v2379
    %v3228 = vpack.c.b16 %v2396, %v2388
    %v3229 = vpack.c.b16 %v2397, %v2389
    %v3230 = vpack.c.b16 %v2398, %v2390
    %v3231 = vpack.c.b16 %v2399, %v2391
    %v3232 = vpack.c.b16 %v2400, %v2392
    %v3233 = vpack.c.b16 %v2401, %v2393
    %v3234 = vpack.c.b16 %v2402, %v2394
    %v3235 = vpack.c.b16 %v2403, %v2395
    %v3236 = vpack.c.b16 %v2412, %v2404
    %v3237 = vpack.c.b16 %v2413, %v2405
    %v3238 = vpack.c.b16 %v2414, %v2406
    %v3239 = vpack.c.b16 %v2415, %v2407
    %v3240 = vpack.c.b16 %v2416, %v2408
    %v3241 = vpack.c.b16 %v2417, %v2409
    %v3242 = vpack.c.b16 %v2418, %v2410
    %v3243 = vpack.c.b16 %v2419, %v2411
    %v3244 = vpack.c.b16 %v2428, %v2420
    %v3245 = vpack.c.b16 %v2429, %v2421
    %v3246 = vpack.c.b16 %v2430, %v2422
    %v3247 = vpack.c.b16 %v2431, %v2423
    %v3248 = vpack.c.b16 %v2432, %v2424
    %v3249 = vpack.c.b16 %v2433, %v2425
    %v3250 = vpack.c.b16 %v2434, %v2426
    %v3251 = vpack.c.b16 %v2435, %v2427
    %v3252 = vpack.c.b16 %v2444, %v2436
    %v3253 = vpack.c.b16 %v2445, %v2437
    %v3254 = vpack.c.b16 %v2446, %v2438
    %v3255 = vpack.c.b16 %v2447, %v2439
    %v3256 = vpack.c.b16 %v2448, %v2440
    %v3257 = vpack.c.b16 %v2449, %v2441
    %v3258 = vpack.c.b16 %v2450, %v2442
    %v3259 = vpack.c.b16 %v2451, %v2443
    %v3260 = vpack.c.b16 %v2460, %v2452
    %v3261 = vpack.c.b16 %v2461, %v2453
    %v3262 = vpack.c.b16 %v2462, %v2454
    %v3263 = vpack.c.b16 %v2463, %v2455
    %v3264 = vpack.c.b16 %v2464, %v2456
    %v3265 = vpack.c.b16 %v2465, %v2457
    %v3266 = vpack.c.b16 %v2466, %v2458
    %v3267 = vpack.c.b16 %v2467, %v2459
    %v3268 = vpack.c.b16 %v2476, %v2468
    %v3269 = vpack.c.b16 %v2477, %v2469
    %v3270 = vpack.c.b16 %v2478, %v2470
    %v3271 = vpack.c.b16 %v2479, %v2471
    %v3272 = vpack.c.b16 %v2480, %v2472
    %v3273 = vpack.c.b16 %v2481, %v2473
    %v3274 = vpack.c.b16 %v2482, %v2474
    %v3275 = vpack.c.b16 %v2483, %v2475
    %v3276 = vpack.c.b16 %v2492, %v2484
    %v3277 = vpack.c.b16 %v2493, %v2485
    %v3278 = vpack.c.b16 %v2494, %v2486
    %v3279 = vpack.c.b16 %v2495, %v2487
    %v3280 = vpack.c.b16 %v2496, %v2488
    %v3281 = vpack.c.b16 %v2497, %v2489
    %v3282 = vpack.c.b16 %v2498, %v2490
    %v3283 = vpack.c.b16 %v2499, %v2491
    %v3284 = vpack.c.b16 %v2508, %v2500
    %v3285 = vpack.c.b16 %v2509, %v2501
    %v3286 = vpack.c.b16 %v2510, %v2502
    %v3287 = vpack.c.b16 %v2511, %v2503
    %v3288 = vpack.c.b16 %v2512, %v2504
    %v3289 = vpack.c.b16 %v2513, %v2505
    %v3290 = vpack.c.b16 %v2514, %v2506
    %v3291 = vpack.c.b16 %v2515, %v2507
    %v3292 = vpack.c.b16 %v2524, %v2516
    %v3293 = vpack.c.b16 %v2525, %v2517
    %v3294 = vpack.c.b16 %v2526, %v2518
    %v3295 = vpack.c.b16 %v2527, %v2519
    %v3296 = vpack.c.b16 %v2528, %v2520
    %v3297 = vpack.c.b16 %v2529, %v2521
    %v3298 = vpack.c.b16 %v2530, %v2522
    %v3299 = vpack.c.b16 %v2531, %v2523
    %v3300 = vpack.c.b16 %v2540, %v2532
    %v3301 = vpack.c.b16 %v2541, %v2533
    %v3302 = vpack.c.b16 %v2542, %v2534
    %v3303 = vpack.c.b16 %v2543, %v2535
    %v3304 = vpack.c.b16 %v2544, %v2536
    %v3305 = vpack.c.b16 %v2545, %v2537
    %v3306 = vpack.c.b16 %v2546, %v2538
    %v3307 = vpack.c.b16 %v2547, %v2539
    %v3308 = vpack.c.b16 %v2556, %v2548
    %v3309 = vpack.c.b16 %v2557, %v2549
    %v3310 = vpack.c.b16 %v2558, %v2550
    %v3311 = vpack.c.b16 %v2559, %v2551
    %v3312 = vpack.c.b16 %v2560, %v2552
    %v3313 = vpack.c.b16 %v2561, %v2553
    %v3314 = vpack.c.b16 %v2562, %v2554
    %v3315 = vpack.c.b16 %v2563, %v2555
    %v3316 = vpack.c.b16 %v2572, %v2564
    %v3317 = vpack.c.b16 %v2573, %v2565
    %v3318 = vpack.c.b16 %v2574, %v2566
    %v3319 = vpack.c.b16 %v2575, %v2567
    %v3320 = vpack.c.b16 %v2576, %v2568
    %v3321 = vpack.c.b16 %v2577, %v2569
    %v3322 = vpack.c.b16 %v2578, %v2570
    %v3323 = vpack.c.b16 %v2579, %v2571
    %v3324 = vpack.c.b16 %v2588, %v2580
    %v3325 = vpack.c.b16 %v2589, %v2581
    %v3326 = vpack.c.b16 %v2590, %v2582
    %v3327 = vpack.c.b16 %v2591, %v2583
    %v3328 = vpack.c.b16 %v2592, %v2584
    %v3329 = vpack.c.b16 %v2593, %v2585
    %v3330 = vpack.c.b16 %v2594, %v2586
    %v3331 = vpack.c.b16 %v2595, %v2587
    %v3332 = vpack.c.b16 %v2604, %v2596
    %v3333 = vpack.c.b16 %v2605, %v2597
    %v3334 = vpack.c.b16 %v2606, %v2598
    %v3335 = vpack.c.b16 %v2607, %v2599
    %v3336 = vpack.c.b16 %v2608, %v2600
    %v3337 = vpack.c.b16 %v2609, %v2601
    %v3338 = vpack.c.b16 %v2610, %v2602
    %v3339 = vpack.c.b16 %v2611, %v2603
    %v3340 = vpack.c.b16 %v2620, %v2612
    %v3341 = vpack.c.b16 %v2621, %v2613
    %v3342 = vpack.c.b16 %v2622, %v2614
    %v3343 = vpack.c.b16 %v2623, %v2615
    %v3344 = vpack.c.b16 %v2624, %v2616
    %v3345 = vpack.c.b16 %v2625, %v2617
    %v3346 = vpack.c.b16 %v2626, %v2618
    %v3347 = vpack.c.b16 %v2627, %v2619
    %v3348 = vpack.c.b16 %v2636, %v2628
    %v3349 = vpack.c.b16 %v2637, %v2629
    %v3350 = vpack.c.b16 %v2638, %v2630
    %v3351 = vpack.c.b16 %v2639, %v2631
    %v3352 = vpack.c.b16 %v2640, %v2632
    %v3353 = vpack.c.b16 %v2641, %v2633
    %v3354 = vpack.c.b16 %v2642, %v2634
    %v3355 = vpack.c.b16 %v2643, %v2635
    %v3356 = vpack.c.b16 %v2652, %v2644
    %v3357 = vpack.c.b16 %v2653, %v2645
    %v3358 = vpack.c.b16 %v2654, %v2646
    %v3359 = vpack.c.b16 %v2655, %v2647
    %v3360 = vpack.c.b16 %v2656, %v2648
    %v3361 = vpack.c.b16 %v2657, %v2649
    %v3362 = vpack.c.b16 %v2658, %v2650
    %v3363 = vpack.c.b16 %v2659, %v2651
    %v3364 = vpack.c.b16 %v2668, %v2660
    %v3365 = vpack.c.b16 %v2669, %v2661
    %v3366 = vpack.c.b16 %v2670, %v2662
    %v3367 = vpack.c.b16 %v2671, %v2663
    %v3368 = vpack.c.b16 %v2672, %v2664
    %v3369 = vpack.c.b16 %v2673, %v2665
    %v3370 = vpack.c.b16 %v2674, %v2666
    %v3371 = vpack.c.b16 %v2675, %v2667
    %v3372 = vpack.c.b16 %v2684, %v2676
    %v3373 = vpack.c.b16 %v2685, %v2677
    %v3374 = vpack.c.b16 %v2686, %v2678
    %v3375 = vpack.c.b16 %v2687, %v2679
    %v3376 = vpack.c.b16 %v2688, %v2680
    %v3377 = vpack.c.b16 %v2689, %v2681
    %v3378 = vpack.c.b16 %v2690, %v2682
    %v3379 = vpack.c.b16 %v2691, %v2683
    %v3380 = vpack.c.b16 %v2700, %v2692
    %v3381 = vpack.c.b16 %v2701, %v2693
    %v3382 = vpack.c.b16 %v2702, %v2694
    %v3383 = vpack.c.b16 %v2703, %v2695
    %v3384 = vpack.c.b16 %v2704, %v2696
    %v3385 = vpack.c.b16 %v2705, %v2697
    %v3386 = vpack.c.b16 %v2706, %v2698
    %v3387 = vpack.c.b16 %v2707, %v2699
    %v3388 = vpack.c.b16 %v2716, %v2708
    %v3389 = vpack.c.b16 %v2717, %v2709
    %v3390 = vpack.c.b16 %v2718, %v2710
    %v3391 = vpack.c.b16 %v2719, %v2711
    %v3392 = vpack.c.b16 %v2720, %v2712
    %v3393 = vpack.c.b16 %v2721, %v2713
    %v3394 = vpack.c.b16 %v2722, %v2714
    %v3395 = vpack.c.b16 %v2723, %v2715
    %v3396 = vpack.c.b16 %v2732, %v2724
    %v3397 = vpack.c.b16 %v2733, %v2725
    %v3398 = vpack.c.b16 %v2734, %v2726
    %v3399 = vpack.c.b16 %v2735, %v2727
    %v3400 = vpack.c.b16 %v2736, %v2728
    %v3401 = vpack.c.b16 %v2737, %v2729
    %v3402 = vpack.c.b16 %v2738, %v2730
    %v3403 = vpack.c.b16 %v2739, %v2731
    %v3404 = vpack.c.b16 %v2748, %v2740
    %v3405 = vpack.c.b16 %v2749, %v2741
    %v3406 = vpack.c.b16 %v2750, %v2742
    %v3407 = vpack.c.b16 %v2751, %v2743
    %v3408 = vpack.c.b16 %v2752, %v2744
    %v3409 = vpack.c.b16 %v2753, %v2745
    %v3410 = vpack.c.b16 %v2754, %v2746
    %v3411 = vpack.c.b16 %v2755, %v2747
    %v3412 = vpack.c.b16 %v2764, %v2756
    %v3413 = vpack.c.b16 %v2765, %v2757
    %v3414 = vpack.c.b16 %v2766, %v2758
    %v3415 = vpack.c.b16 %v2767, %v2759
    %v3416 = vpack.c.b16 %v2768, %v2760
    %v3417 = vpack.c.b16 %v2769, %v2761
    %v3418 = vpack.c.b16 %v2770, %v2762
    %v3419 = vpack.c.b16 %v2771, %v2763
    %v3420 = vpack.c.b16 %v2780, %v2772
    %v3421 = vpack.c.b16 %v2781, %v2773
    %v3422 = vpack.c.b16 %v2782, %v2774
    %v3423 = vpack.c.b16 %v2783, %v2775
    %v3424 = vpack.c.b16 %v2784, %v2776
    %v3425 = vpack.c.b16 %v2785, %v2777
    %v3426 = vpack.c.b16 %v2786, %v2778
    %v3427 = vpack.c.b16 %v2787, %v2779
    %v3428 = vpack.c.b16 %v2796, %v2788
    %v3429 = vpack.c.b16 %v2797, %v2789
    %v3430 = vpack.c.b16 %v2798, %v2790
    %v3431 = vpack.c.b16 %v2799, %v2791
    %v3432 = vpack.c.b16 %v2800, %v2792
    %v3433 = vpack.c.b16 %v2801, %v2793
    %v3434 = vpack.c.b16 %v2802, %v2794
    %v3435 = vpack.c.b16 %v2803, %v2795
    %v3436 = vpack.c.b16 %v2812, %v2804
    %v3437 = vpack.c.b16 %v2813, %v2805
    %v3438 = vpack.c.b16 %v2814, %v2806
    %v3439 = vpack.c.b16 %v2815, %v2807
    %v3440 = vpack.c.b16 %v2816, %v2808
    %v3441 = vpack.c.b16 %v2817, %v2809
    %v3442 = vpack.c.b16 %v2818, %v2810
    %v3443 = vpack.c.b16 %v2819, %v2811
    %v3444 = vpack.c.b16 %v2828, %v2820
    %v3445 = vpack.c.b16 %v2829, %v2821
    %v3446 = vpack.c.b16 %v2830, %v2822
    %v3447 = vpack.c.b16 %v2831, %v2823
    %v3448 = vpack.c.b16 %v2832, %v2824
    %v3449 = vpack.c.b16 %v2833, %v2825
    %v3450 = vpack.c.b16 %v2834, %v2826
    %v3451 = vpack.c.b16 %v2835, %v2827
    %v3452 = vpack.c.b16 %v2844, %v2836
    %v3453 = vpack.c.b16 %v2845, %v2837
    %v3454 = vpack.c.b16 %v2846, %v2838
    %v3455 = vpack.c.b16 %v2847, %v2839
    %v3456 = vpack.c.b16 %v2848, %v2840
    %v3457 = vpack.c.b16 %v2849, %v2841
    %v3458 = vpack.c.b16 %v2850, %v2842
    %v3459 = vpack.c.b16 %v2851, %v2843
    %v3460 = vpack.c.b16 %v2860, %v2852
    %v3461 = vpack.c.b16 %v2861, %v2853
    %v3462 = vpack.c.b16 %v2862, %v2854
    %v3463 = vpack.c.b16 %v2863, %v2855
    %v3464 = vpack.c.b16 %v2864, %v2856
    %v3465 = vpack.c.b16 %v2865, %v2857
    %v3466 = vpack.c.b16 %v2866, %v2858
    %v3467 = vpack.c.b16 %v2867, %v2859
    %v3468 = vpack.c.b16 %v2876, %v2868
    %v3469 = vpack.c.b16 %v2877, %v2869
    %v3470 = vpack.c.b16 %v2878, %v2870
    %v3471 = vpack.c.b16 %v2879, %v2871
    %v3472 = vpack.c.b16 %v2880, %v2872
    %v3473 = vpack.c.b16 %v2881, %v2873
    %v3474 = vpack.c.b16 %v2882, %v2874
    %v3475 = vpack.c.b16 %v2883, %v2875
    %v3476 = vpack.c.b16 %v2892, %v2884
    %v3477 = vpack.c.b16 %v2893, %v2885
    %v3478 = vpack.c.b16 %v2894, %v2886
    %v3479 = vpack.c.b16 %v2895, %v2887
    %v3480 = vpack.c.b16 %v2896, %v2888
    %v3481 = vpack.c.b16 %v2897, %v2889
    %v3482 = vpack.c.b16 %v2898, %v2890
    %v3483 = vpack.c.b16 %v2899, %v2891
    %v3484 = vpack.c.b16 %v2908, %v2900
    %v3485 = vpack.c.b16 %v2909, %v2901
    %v3486 = vpack.c.b16 %v2910, %v2902
    %v3487 = vpack.c.b16 %v2911, %v2903
    %v3488 = vpack.c.b16 %v2912, %v2904
    %v3489 = vpack.c.b16 %v2913, %v2905
    %v3490 = vpack.c.b16 %v2914, %v2906
    %v3491 = vpack.c.b16 %v2915, %v2907
    %v3492 = vpack.c.b16 %v2924, %v2916
    %v3493 = vpack.c.b16 %v2925, %v2917
    %v3494 = vpack.c.b16 %v2926, %v2918
    %v3495 = vpack.c.b16 %v2927, %v2919
    %v3496 = vpack.c.b16 %v2928, %v2920
    %v3497 = vpack.c.b16 %v2929, %v2921
    %v3498 = vpack.c.b16 %v2930, %v2922
    %v3499 = vpack.c.b16 %v2931, %v2923
    %v3500 = vpack.c.b16 %v2940, %v2932
    %v3501 = vpack.c.b16 %v2941, %v2933
    %v3502 = vpack.c.b16 %v2942, %v2934
    %v3503 = vpack.c.b16 %v2943, %v2935
    %v3504 = vpack.c.b16 %v2944, %v2936
    %v3505 = vpack.c.b16 %v2945, %v2937
    %v3506 = vpack.c.b16 %v2946, %v2938
    %v3507 = vpack.c.b16 %v2947, %v2939
    %v3508 = vpack.c.b16 %v2956, %v2948
    %v3509 = vpack.c.b16 %v2957, %v2949
    %v3510 = vpack.c.b16 %v2958, %v2950
    %v3511 = vpack.c.b16 %v2959, %v2951
    %v3512 = vpack.c.b16 %v2960, %v2952
    %v3513 = vpack.c.b16 %v2961, %v2953
    %v3514 = vpack.c.b16 %v2962, %v2954
    %v3515 = vpack.c.b16 %v2963, %v2955
    %v3516 = vpack.c.b16 %v2972, %v2964
    %v3517 = vpack.c.b16 %v2973, %v2965
    %v3518 = vpack.c.b16 %v2974, %v2966
    %v3519 = vpack.c.b16 %v2975, %v2967
    %v3520 = vpack.c.b16 %v2976, %v2968
    %v3521 = vpack.c.b16 %v2977, %v2969
    %v3522 = vpack.c.b16 %v2978, %v2970
    %v3523 = vpack.c.b16 %v2979, %v2971
    %v3524 = vpack.c.b16 %v2988, %v2980
    %v3525 = vpack.c.b16 %v2989, %v2981
    %v3526 = vpack.c.b16 %v2990, %v2982
    %v3527 = vpack.c.b16 %v2991, %v2983
    %v3528 = vpack.c.b16 %v2992, %v2984
    %v3529 = vpack.c.b16 %v2993, %v2985
    %v3530 = vpack.c.b16 %v2994, %v2986
    %v3531 = vpack.c.b16 %v2995, %v2987
    %v3532 = vpack.c.b16 %v3004, %v2996
    %v3533 = vpack.c.b16 %v3005, %v2997
    %v3534 = vpack.c.b16 %v3006, %v2998
    %v3535 = vpack.c.b16 %v3007, %v2999
    %v3536 = vpack.c.b16 %v3008, %v3000
    %v3537 = vpack.c.b16 %v3009, %v3001
    %v3538 = vpack.c.b16 %v3010, %v3002
    %v3539 = vpack.c.b16 %v3011, %v3003
    %v3540 = vpack.c.b16 %v3020, %v3012
    %v3541 = vpack.c.b16 %v3021, %v3013
    %v3542 = vpack.c.b16 %v3022, %v3014
    %v3543 = vpack.c.b16 %v3023, %v3015
    %v3544 = vpack.c.b16 %v3024, %v3016
    %v3545 = vpack.c.b16 %v3025, %v3017
    %v3546 = vpack.c.b16 %v3026, %v3018
    %v3547 = vpack.c.b16 %v3027, %v3019
    %v3548 = vpack.c.b16 %v3036, %v3028
    %v3549 = vpack.c.b16 %v3037, %v3029
    %v3550 = vpack.c.b16 %v3038, %v3030
    %v3551 = vpack.c.b16 %v3039, %v3031
    %v3552 = vpack.c.b16 %v3040, %v3032
    %v3553 = vpack.c.b16 %v3041, %v3033
    %v3554 = vpack.c.b16 %v3042, %v3034
    %v3555 = vpack.c.b16 %v3043, %v3035
    %4068 = vmatprep.subr.bf16.mxu0 %v3101
    %4069 = vmatpush1.bf16.msra.mxu0 %v3100
    %4070 = vmatprep.subr.bf16.mxu0 %v3093
    %4071 = vmatpush1.bf16.msra.mxu0 %v3092
    %4072 = vmatprep.subr.bf16.mxu0 %v3085
    %4073 = vmatpush1.bf16.msra.mxu0 %v3084
    %4074 = vmatprep.subr.bf16.mxu0 %v3077
    %4075 = vmatpush1.bf16.msra.mxu0 %v3076
    %4076 = vmatprep.subr.bf16.mxu0 %v3069
    %4077 = vmatpush1.bf16.msra.mxu0 %v3068
    %4078 = vmatprep.subr.bf16.mxu0 %v3061
    %4079 = vmatpush1.bf16.msra.mxu0 %v3060
    %4080 = vmatprep.subr.bf16.mxu0 %v3053
    %4081 = vmatpush1.bf16.msra.mxu0 %v3052
    %4082 = vmatprep.subr.bf16.mxu0 %v3045
    %4083 = vmatpush1.bf16.msra.mxu0 %v3044
    %4084 = vmatprep.subr.bf16.mxu0 %v3165
    %4085 = vmatpush2.bf16.msra.mxu0 %v3164
    %4086 = vmatprep.subr.bf16.mxu0 %v3157
    %4087 = vmatpush2.bf16.msra.mxu0 %v3156
    %4088 = vmatprep.subr.bf16.mxu0 %v3149
    %4089 = vmatpush2.bf16.msra.mxu0 %v3148
    %4090 = vmatprep.subr.bf16.mxu0 %v3141
    %4091 = vmatpush2.bf16.msra.mxu0 %v3140
    %4092 = vmatprep.subr.bf16.mxu0 %v3133
    %4093 = vmatpush2.bf16.msra.mxu0 %v3132
    %4094 = vmatprep.subr.bf16.mxu0 %v3125
    %4095 = vmatpush2.bf16.msra.mxu0 %v3124
    %4096 = vmatprep.subr.bf16.mxu0 %v3117
    %4097 = vmatpush2.bf16.msra.mxu0 %v3116
    %4098 = vmatprep.subr.bf16.mxu0 %v3109
    %4099 = vmatpush2.bf16.msra.mxu0 %v3108
    %4100 = vmatprep.mubr.bf16.mxu0 %v891
    %4101 = vmatmul.mubr.bf16.gmra.mxu0 %v890
    %v4102 = vpop.f32.mrf.mxu0
    %v4103 = vadd.f32 %v1471, %v4102
    %v4104 = vpop.f32.mrf.mxu0
    %v4105 = vadd.f32 %v1475, %v4104
    %v4106 = vpop.f32.mrf.mxu0
    %v4107 = vadd.f32 %v1471, %v4106
    %v4108 = vpop.f32.mrf.mxu0
    %v4109 = vadd.f32 %v1475, %v4108
    %4110 = vmatprep.mubr.bf16.mxu0 %v899
    %4111 = vmatmul.mubr.bf16.gmra.mxu0 %v898
    %v4112 = vpop.f32.mrf.mxu0
    %v4113 = vadd.f32 %v1471, %v4112
    %v4114 = vpop.f32.mrf.mxu0
    %v4115 = vadd.f32 %v1475, %v4114
    %v4116 = vpop.f32.mrf.mxu0
    %v4117 = vadd.f32 %v1471, %v4116
    %v4118 = vpop.f32.mrf.mxu0
    %v4119 = vadd.f32 %v1475, %v4118
    %4120 = vmatprep.mubr.bf16.mxu0 %v907
    %4121 = vmatmul.mubr.bf16.gmra.mxu0 %v906
    %v4122 = vpop.f32.mrf.mxu0
    %v4123 = vadd.f32 %v1471, %v4122
    %v4124 = vpop.f32.mrf.mxu0
    %v4125 = vadd.f32 %v1475, %v4124
    %v4126 = vpop.f32.mrf.mxu0
    %v4127 = vadd.f32 %v1471, %v4126
    %v4128 = vpop.f32.mrf.mxu0
    %v4129 = vadd.f32 %v1475, %v4128
    %4130 = vmatprep.mubr.bf16.mxu0 %v915
    %4131 = vmatmul.mubr.bf16.gmra.mxu0 %v914
    %v4132 = vpop.f32.mrf.mxu0
    %v4133 = vadd.f32 %v1471, %v4132
    %v4134 = vpop.f32.mrf.mxu0
    %v4135 = vadd.f32 %v1475, %v4134
    %v4136 = vpop.f32.mrf.mxu0
    %v4137 = vadd.f32 %v1471, %v4136
    %v4138 = vpop.f32.mrf.mxu0
    %v4139 = vadd.f32 %v1475, %v4138
    %4140 = vmatprep.mubr.bf16.mxu0 %v923
    %4141 = vmatmul.mubr.bf16.gmra.mxu0 %v922
    %v4142 = vpop.f32.mrf.mxu0
    %v4143 = vadd.f32 %v1471, %v4142
    %v4144 = vpop.f32.mrf.mxu0
    %v4145 = vadd.f32 %v1475, %v4144
    %v4146 = vpop.f32.mrf.mxu0
    %v4147 = vadd.f32 %v1471, %v4146
    %v4148 = vpop.f32.mrf.mxu0
    %v4149 = vadd.f32 %v1475, %v4148
    %4150 = vmatprep.mubr.bf16.mxu0 %v931
    %4151 = vmatmul.mubr.bf16.gmra.mxu0 %v930
    %v4152 = vpop.f32.mrf.mxu0
    %v4153 = vadd.f32 %v1471, %v4152
    %v4154 = vpop.f32.mrf.mxu0
    %v4155 = vadd.f32 %v1475, %v4154
    %v4156 = vpop.f32.mrf.mxu0
    %v4157 = vadd.f32 %v1471, %v4156
    %v4158 = vpop.f32.mrf.mxu0
    %v4159 = vadd.f32 %v1475, %v4158
    %4160 = vmatprep.mubr.bf16.mxu0 %v939
    %4161 = vmatmul.mubr.bf16.gmra.mxu0 %v938
    %v4162 = vpop.f32.mrf.mxu0
    %v4163 = vadd.f32 %v1471, %v4162
    %v4164 = vpop.f32.mrf.mxu0
    %v4165 = vadd.f32 %v1475, %v4164
    %v4166 = vpop.f32.mrf.mxu0
    %v4167 = vadd.f32 %v1471, %v4166
    %v4168 = vpop.f32.mrf.mxu0
    %v4169 = vadd.f32 %v1475, %v4168
    %4170 = vmatprep.mubr.bf16.mxu0 %v947
    %4171 = vmatmul.mubr.bf16.gmra.mxu0 %v946
    %v4172 = vpop.f32.mrf.mxu0
    %v4173 = vadd.f32 %v1471, %v4172
    %v4174 = vpop.f32.mrf.mxu0
    %v4175 = vadd.f32 %v1475, %v4174
    %v4176 = vpop.f32.mrf.mxu0
    %v4177 = vadd.f32 %v1471, %v4176
    %v4178 = vpop.f32.mrf.mxu0
    %v4179 = vadd.f32 %v1475, %v4178
    %4180 = vdwg.mxu0
    %4181 = vmatprep.subr.bf16.mxu0 %v3229
    %4182 = vmatpush1.bf16.msra.mxu0 %v3228
    %4183 = vmatprep.subr.bf16.mxu0 %v3221
    %4184 = vmatpush1.bf16.msra.mxu0 %v3220
    %4185 = vmatprep.subr.bf16.mxu0 %v3213
    %4186 = vmatpush1.bf16.msra.mxu0 %v3212
    %4187 = vmatprep.subr.bf16.mxu0 %v3205
    %4188 = vmatpush1.bf16.msra.mxu0 %v3204
    %4189 = vmatprep.subr.bf16.mxu0 %v3197
    %4190 = vmatpush1.bf16.msra.mxu0 %v3196
    %4191 = vmatprep.subr.bf16.mxu0 %v3189
    %4192 = vmatpush1.bf16.msra.mxu0 %v3188
    %4193 = vmatprep.subr.bf16.mxu0 %v3181
    %4194 = vmatpush1.bf16.msra.mxu0 %v3180
    %4195 = vmatprep.subr.bf16.mxu0 %v3173
    %4196 = vmatpush1.bf16.msra.mxu0 %v3172
    %4197 = vmatprep.subr.bf16.mxu0 %v3293
    %4198 = vmatpush2.bf16.msra.mxu0 %v3292
    %4199 = vmatprep.subr.bf16.mxu0 %v3285
    %4200 = vmatpush2.bf16.msra.mxu0 %v3284
    %4201 = vmatprep.subr.bf16.mxu0 %v3277
    %4202 = vmatpush2.bf16.msra.mxu0 %v3276
    %4203 = vmatprep.subr.bf16.mxu0 %v3269
    %4204 = vmatpush2.bf16.msra.mxu0 %v3268
    %4205 = vmatprep.subr.bf16.mxu0 %v3261
    %4206 = vmatpush2.bf16.msra.mxu0 %v3260
    %4207 = vmatprep.subr.bf16.mxu0 %v3253
    %4208 = vmatpush2.bf16.msra.mxu0 %v3252
    %4209 = vmatprep.subr.bf16.mxu0 %v3245
    %4210 = vmatpush2.bf16.msra.mxu0 %v3244
    %4211 = vmatprep.subr.bf16.mxu0 %v3237
    %4212 = vmatpush2.bf16.msra.mxu0 %v3236
    %4213 = vmatprep.mubr.bf16.mxu0 %v893
    %4214 = vmatmul.mubr.bf16.gmra.mxu0 %v892
    %v4215 = vpop.f32.mrf.mxu0
    %v4216 = vadd.f32 %v4103, %v4215
    %v4217 = vpop.f32.mrf.mxu0
    %v4218 = vadd.f32 %v4105, %v4217
    %v4219 = vpop.f32.mrf.mxu0
    %v4220 = vadd.f32 %v4107, %v4219
    %v4221 = vpop.f32.mrf.mxu0
    %v4222 = vadd.f32 %v4109, %v4221
    %4223 = vmatprep.mubr.bf16.mxu0 %v901
    %4224 = vmatmul.mubr.bf16.gmra.mxu0 %v900
    %v4225 = vpop.f32.mrf.mxu0
    %v4226 = vadd.f32 %v4113, %v4225
    %v4227 = vpop.f32.mrf.mxu0
    %v4228 = vadd.f32 %v4115, %v4227
    %v4229 = vpop.f32.mrf.mxu0
    %v4230 = vadd.f32 %v4117, %v4229
    %v4231 = vpop.f32.mrf.mxu0
    %v4232 = vadd.f32 %v4119, %v4231
    %4233 = vmatprep.mubr.bf16.mxu0 %v909
    %4234 = vmatmul.mubr.bf16.gmra.mxu0 %v908
    %v4235 = vpop.f32.mrf.mxu0
    %v4236 = vadd.f32 %v4123, %v4235
    %v4237 = vpop.f32.mrf.mxu0
    %v4238 = vadd.f32 %v4125, %v4237
    %v4239 = vpop.f32.mrf.mxu0
    %v4240 = vadd.f32 %v4127, %v4239
    %v4241 = vpop.f32.mrf.mxu0
    %v4242 = vadd.f32 %v4129, %v4241
    %4243 = vmatprep.mubr.bf16.mxu0 %v917
    %4244 = vmatmul.mubr.bf16.gmra.mxu0 %v916
    %v4245 = vpop.f32.mrf.mxu0
    %v4246 = vadd.f32 %v4133, %v4245
    %v4247 = vpop.f32.mrf.mxu0
    %v4248 = vadd.f32 %v4135, %v4247
    %v4249 = vpop.f32.mrf.mxu0
    %v4250 = vadd.f32 %v4137, %v4249
    %v4251 = vpop.f32.mrf.mxu0
    %v4252 = vadd.f32 %v4139, %v4251
    %4253 = vmatprep.mubr.bf16.mxu0 %v925
    %4254 = vmatmul.mubr.bf16.gmra.mxu0 %v924
    %v4255 = vpop.f32.mrf.mxu0
    %v4256 = vadd.f32 %v4143, %v4255
    %v4257 = vpop.f32.mrf.mxu0
    %v4258 = vadd.f32 %v4145, %v4257
    %v4259 = vpop.f32.mrf.mxu0
    %v4260 = vadd.f32 %v4147, %v4259
    %v4261 = vpop.f32.mrf.mxu0
    %v4262 = vadd.f32 %v4149, %v4261
    %4263 = vmatprep.mubr.bf16.mxu0 %v933
    %4264 = vmatmul.mubr.bf16.gmra.mxu0 %v932
    %v4265 = vpop.f32.mrf.mxu0
    %v4266 = vadd.f32 %v4153, %v4265
    %v4267 = vpop.f32.mrf.mxu0
    %v4268 = vadd.f32 %v4155, %v4267
    %v4269 = vpop.f32.mrf.mxu0
    %v4270 = vadd.f32 %v4157, %v4269
    %v4271 = vpop.f32.mrf.mxu0
    %v4272 = vadd.f32 %v4159, %v4271
    %4273 = vmatprep.mubr.bf16.mxu0 %v941
    %4274 = vmatmul.mubr.bf16.gmra.mxu0 %v940
    %v4275 = vpop.f32.mrf.mxu0
    %v4276 = vadd.f32 %v4163, %v4275
    %v4277 = vpop.f32.mrf.mxu0
    %v4278 = vadd.f32 %v4165, %v4277
    %v4279 = vpop.f32.mrf.mxu0
    %v4280 = vadd.f32 %v4167, %v4279
    %v4281 = vpop.f32.mrf.mxu0
    %v4282 = vadd.f32 %v4169, %v4281
    %4283 = vmatprep.mubr.bf16.mxu0 %v949
    %4284 = vmatmul.mubr.bf16.gmra.mxu0 %v948
    %v4285 = vpop.f32.mrf.mxu0
    %v4286 = vadd.f32 %v4173, %v4285
    %v4287 = vpop.f32.mrf.mxu0
    %v4288 = vadd.f32 %v4175, %v4287
    %v4289 = vpop.f32.mrf.mxu0
    %v4290 = vadd.f32 %v4177, %v4289
    %v4291 = vpop.f32.mrf.mxu0
    %v4292 = vadd.f32 %v4179, %v4291
    %4293 = vdwg.mxu0
    %4294 = vmatprep.subr.bf16.mxu0 %v3357
    %4295 = vmatpush1.bf16.msra.mxu0 %v3356
    %4296 = vmatprep.subr.bf16.mxu0 %v3349
    %4297 = vmatpush1.bf16.msra.mxu0 %v3348
    %4298 = vmatprep.subr.bf16.mxu0 %v3341
    %4299 = vmatpush1.bf16.msra.mxu0 %v3340
    %4300 = vmatprep.subr.bf16.mxu0 %v3333
    %4301 = vmatpush1.bf16.msra.mxu0 %v3332
    %4302 = vmatprep.subr.bf16.mxu0 %v3325
    %4303 = vmatpush1.bf16.msra.mxu0 %v3324
    %4304 = vmatprep.subr.bf16.mxu0 %v3317
    %4305 = vmatpush1.bf16.msra.mxu0 %v3316
    %4306 = vmatprep.subr.bf16.mxu0 %v3309
    %4307 = vmatpush1.bf16.msra.mxu0 %v3308
    %4308 = vmatprep.subr.bf16.mxu0 %v3301
    %4309 = vmatpush1.bf16.msra.mxu0 %v3300
    %4310 = vmatprep.subr.bf16.mxu0 %v3421
    %4311 = vmatpush2.bf16.msra.mxu0 %v3420
    %4312 = vmatprep.subr.bf16.mxu0 %v3413
    %4313 = vmatpush2.bf16.msra.mxu0 %v3412
    %4314 = vmatprep.subr.bf16.mxu0 %v3405
    %4315 = vmatpush2.bf16.msra.mxu0 %v3404
    %4316 = vmatprep.subr.bf16.mxu0 %v3397
    %4317 = vmatpush2.bf16.msra.mxu0 %v3396
    %4318 = vmatprep.subr.bf16.mxu0 %v3389
    %4319 = vmatpush2.bf16.msra.mxu0 %v3388
    %4320 = vmatprep.subr.bf16.mxu0 %v3381
    %4321 = vmatpush2.bf16.msra.mxu0 %v3380
    %4322 = vmatprep.subr.bf16.mxu0 %v3373
    %4323 = vmatpush2.bf16.msra.mxu0 %v3372
    %4324 = vmatprep.subr.bf16.mxu0 %v3365
    %4325 = vmatpush2.bf16.msra.mxu0 %v3364
    %4326 = vmatprep.mubr.bf16.mxu0 %v895
    %4327 = vmatmul.mubr.bf16.gmra.mxu0 %v894
    %v4328 = vpop.f32.mrf.mxu0
    %v4329 = vadd.f32 %v4216, %v4328
    %v4330 = vpop.f32.mrf.mxu0
    %v4331 = vadd.f32 %v4218, %v4330
    %v4332 = vpop.f32.mrf.mxu0
    %v4333 = vadd.f32 %v4220, %v4332
    %v4334 = vpop.f32.mrf.mxu0
    %v4335 = vadd.f32 %v4222, %v4334
    %4336 = vmatprep.mubr.bf16.mxu0 %v903
    %4337 = vmatmul.mubr.bf16.gmra.mxu0 %v902
    %v4338 = vpop.f32.mrf.mxu0
    %v4339 = vadd.f32 %v4226, %v4338
    %v4340 = vpop.f32.mrf.mxu0
    %v4341 = vadd.f32 %v4228, %v4340
    %v4342 = vpop.f32.mrf.mxu0
    %v4343 = vadd.f32 %v4230, %v4342
    %v4344 = vpop.f32.mrf.mxu0
    %v4345 = vadd.f32 %v4232, %v4344
    %4346 = vmatprep.mubr.bf16.mxu0 %v911
    %4347 = vmatmul.mubr.bf16.gmra.mxu0 %v910
    %v4348 = vpop.f32.mrf.mxu0
    %v4349 = vadd.f32 %v4236, %v4348
    %v4350 = vpop.f32.mrf.mxu0
    %v4351 = vadd.f32 %v4238, %v4350
    %v4352 = vpop.f32.mrf.mxu0
    %v4353 = vadd.f32 %v4240, %v4352
    %v4354 = vpop.f32.mrf.mxu0
    %v4355 = vadd.f32 %v4242, %v4354
    %4356 = vmatprep.mubr.bf16.mxu0 %v919
    %4357 = vmatmul.mubr.bf16.gmra.mxu0 %v918
    %v4358 = vpop.f32.mrf.mxu0
    %v4359 = vadd.f32 %v4246, %v4358
    %v4360 = vpop.f32.mrf.mxu0
    %v4361 = vadd.f32 %v4248, %v4360
    %v4362 = vpop.f32.mrf.mxu0
    %v4363 = vadd.f32 %v4250, %v4362
    %v4364 = vpop.f32.mrf.mxu0
    %v4365 = vadd.f32 %v4252, %v4364
    %4366 = vmatprep.mubr.bf16.mxu0 %v927
    %4367 = vmatmul.mubr.bf16.gmra.mxu0 %v926
    %v4368 = vpop.f32.mrf.mxu0
    %v4369 = vadd.f32 %v4256, %v4368
    %v4370 = vpop.f32.mrf.mxu0
    %v4371 = vadd.f32 %v4258, %v4370
    %v4372 = vpop.f32.mrf.mxu0
    %v4373 = vadd.f32 %v4260, %v4372
    %v4374 = vpop.f32.mrf.mxu0
    %v4375 = vadd.f32 %v4262, %v4374
    %4376 = vmatprep.mubr.bf16.mxu0 %v935
    %4377 = vmatmul.mubr.bf16.gmra.mxu0 %v934
    %v4378 = vpop.f32.mrf.mxu0
    %v4379 = vadd.f32 %v4266, %v4378
    %v4380 = vpop.f32.mrf.mxu0
    %v4381 = vadd.f32 %v4268, %v4380
    %v4382 = vpop.f32.mrf.mxu0
    %v4383 = vadd.f32 %v4270, %v4382
    %v4384 = vpop.f32.mrf.mxu0
    %v4385 = vadd.f32 %v4272, %v4384
    %4386 = vmatprep.mubr.bf16.mxu0 %v943
    %4387 = vmatmul.mubr.bf16.gmra.mxu0 %v942
    %v4388 = vpop.f32.mrf.mxu0
    %v4389 = vadd.f32 %v4276, %v4388
    %v4390 = vpop.f32.mrf.mxu0
    %v4391 = vadd.f32 %v4278, %v4390
    %v4392 = vpop.f32.mrf.mxu0
    %v4393 = vadd.f32 %v4280, %v4392
    %v4394 = vpop.f32.mrf.mxu0
    %v4395 = vadd.f32 %v4282, %v4394
    %4396 = vmatprep.mubr.bf16.mxu0 %v951
    %4397 = vmatmul.mubr.bf16.gmra.mxu0 %v950
    %v4398 = vpop.f32.mrf.mxu0
    %v4399 = vadd.f32 %v4286, %v4398
    %v4400 = vpop.f32.mrf.mxu0
    %v4401 = vadd.f32 %v4288, %v4400
    %v4402 = vpop.f32.mrf.mxu0
    %v4403 = vadd.f32 %v4290, %v4402
    %v4404 = vpop.f32.mrf.mxu0
    %v4405 = vadd.f32 %v4292, %v4404
    %4406 = vdwg.mxu0
    %4407 = vmatprep.subr.bf16.mxu0 %v3485
    %4408 = vmatpush1.bf16.msra.mxu0 %v3484
    %4409 = vmatprep.subr.bf16.mxu0 %v3477
    %4410 = vmatpush1.bf16.msra.mxu0 %v3476
    %4411 = vmatprep.subr.bf16.mxu0 %v3469
    %4412 = vmatpush1.bf16.msra.mxu0 %v3468
    %4413 = vmatprep.subr.bf16.mxu0 %v3461
    %4414 = vmatpush1.bf16.msra.mxu0 %v3460
    %4415 = vmatprep.subr.bf16.mxu0 %v3453
    %4416 = vmatpush1.bf16.msra.mxu0 %v3452
    %4417 = vmatprep.subr.bf16.mxu0 %v3445
    %4418 = vmatpush1.bf16.msra.mxu0 %v3444
    %4419 = vmatprep.subr.bf16.mxu0 %v3437
    %4420 = vmatpush1.bf16.msra.mxu0 %v3436
    %4421 = vmatprep.subr.bf16.mxu0 %v3429
    %4422 = vmatpush1.bf16.msra.mxu0 %v3428
    %4423 = vmatprep.subr.bf16.mxu0 %v3549
    %4424 = vmatpush2.bf16.msra.mxu0 %v3548
    %4425 = vmatprep.subr.bf16.mxu0 %v3541
    %4426 = vmatpush2.bf16.msra.mxu0 %v3540
    %4427 = vmatprep.subr.bf16.mxu0 %v3533
    %4428 = vmatpush2.bf16.msra.mxu0 %v3532
    %4429 = vmatprep.subr.bf16.mxu0 %v3525
    %4430 = vmatpush2.bf16.msra.mxu0 %v3524
    %4431 = vmatprep.subr.bf16.mxu0 %v3517
    %4432 = vmatpush2.bf16.msra.mxu0 %v3516
    %4433 = vmatprep.subr.bf16.mxu0 %v3509
    %4434 = vmatpush2.bf16.msra.mxu0 %v3508
    %4435 = vmatprep.subr.bf16.mxu0 %v3501
    %4436 = vmatpush2.bf16.msra.mxu0 %v3500
    %4437 = vmatprep.subr.bf16.mxu0 %v3493
    %4438 = vmatpush2.bf16.msra.mxu0 %v3492
    %4439 = vmatprep.mubr.bf16.mxu0 %v897
    %4440 = vmatmul.mubr.bf16.gmra.mxu0 %v896
    %v4441 = vpop.f32.mrf.mxu0
    %v4442 = vadd.f32 %v4329, %v4441
    %v4443 = vpop.f32.mrf.mxu0
    %v4444 = vadd.f32 %v4331, %v4443
    %v4445 = vpop.f32.mrf.mxu0
    %v4446 = vadd.f32 %v4333, %v4445
    %v4447 = vpop.f32.mrf.mxu0
    %v4448 = vadd.f32 %v4335, %v4447
    %4449 = vmatprep.mubr.bf16.mxu0 %v905
    %4450 = vmatmul.mubr.bf16.gmra.mxu0 %v904
    %v4451 = vpop.f32.mrf.mxu0
    %v4452 = vadd.f32 %v4339, %v4451
    %v4453 = vpop.f32.mrf.mxu0
    %v4454 = vadd.f32 %v4341, %v4453
    %v4455 = vpop.f32.mrf.mxu0
    %v4456 = vadd.f32 %v4343, %v4455
    %v4457 = vpop.f32.mrf.mxu0
    %v4458 = vadd.f32 %v4345, %v4457
    %4459 = vmatprep.mubr.bf16.mxu0 %v913
    %4460 = vmatmul.mubr.bf16.gmra.mxu0 %v912
    %v4461 = vpop.f32.mrf.mxu0
    %v4462 = vadd.f32 %v4349, %v4461
    %v4463 = vpop.f32.mrf.mxu0
    %v4464 = vadd.f32 %v4351, %v4463
    %v4465 = vpop.f32.mrf.mxu0
    %v4466 = vadd.f32 %v4353, %v4465
    %v4467 = vpop.f32.mrf.mxu0
    %v4468 = vadd.f32 %v4355, %v4467
    %4469 = vmatprep.mubr.bf16.mxu0 %v921
    %4470 = vmatmul.mubr.bf16.gmra.mxu0 %v920
    %v4471 = vpop.f32.mrf.mxu0
    %v4472 = vadd.f32 %v4359, %v4471
    %v4473 = vpop.f32.mrf.mxu0
    %v4474 = vadd.f32 %v4361, %v4473
    %v4475 = vpop.f32.mrf.mxu0
    %v4476 = vadd.f32 %v4363, %v4475
    %v4477 = vpop.f32.mrf.mxu0
    %v4478 = vadd.f32 %v4365, %v4477
    %4479 = vmatprep.mubr.bf16.mxu0 %v929
    %4480 = vmatmul.mubr.bf16.gmra.mxu0 %v928
    %v4481 = vpop.f32.mrf.mxu0
    %v4482 = vadd.f32 %v4369, %v4481
    %v4483 = vpop.f32.mrf.mxu0
    %v4484 = vadd.f32 %v4371, %v4483
    %v4485 = vpop.f32.mrf.mxu0
    %v4486 = vadd.f32 %v4373, %v4485
    %v4487 = vpop.f32.mrf.mxu0
    %v4488 = vadd.f32 %v4375, %v4487
    %4489 = vmatprep.mubr.bf16.mxu0 %v937
    %4490 = vmatmul.mubr.bf16.gmra.mxu0 %v936
    %v4491 = vpop.f32.mrf.mxu0
    %v4492 = vadd.f32 %v4379, %v4491
    %v4493 = vpop.f32.mrf.mxu0
    %v4494 = vadd.f32 %v4381, %v4493
    %v4495 = vpop.f32.mrf.mxu0
    %v4496 = vadd.f32 %v4383, %v4495
    %v4497 = vpop.f32.mrf.mxu0
    %v4498 = vadd.f32 %v4385, %v4497
    %4499 = vmatprep.mubr.bf16.mxu0 %v945
    %4500 = vmatmul.mubr.bf16.gmra.mxu0 %v944
    %v4501 = vpop.f32.mrf.mxu0
    %v4502 = vadd.f32 %v4389, %v4501
    %v4503 = vpop.f32.mrf.mxu0
    %v4504 = vadd.f32 %v4391, %v4503
    %v4505 = vpop.f32.mrf.mxu0
    %v4506 = vadd.f32 %v4393, %v4505
    %v4507 = vpop.f32.mrf.mxu0
    %v4508 = vadd.f32 %v4395, %v4507
    %4509 = vmatprep.mubr.bf16.mxu0 %v953
    %4510 = vmatmul.mubr.bf16.gmra.mxu0 %v952
    %v4511 = vpop.f32.mrf.mxu0
    %v4512 = vadd.f32 %v4399, %v4511
    %v4513 = vpop.f32.mrf.mxu0
    %v4514 = vadd.f32 %v4401, %v4513
    %v4515 = vpop.f32.mrf.mxu0
    %v4516 = vadd.f32 %v4403, %v4515
    %v4517 = vpop.f32.mrf.mxu0
    %v4518 = vadd.f32 %v4405, %v4517
    %4519 = vdwg.mxu0
    %4520 = vmatprep.subr.bf16.mxu0 %v3103
    %4521 = vmatpush1.bf16.msra.mxu0 %v3102
    %4522 = vmatprep.subr.bf16.mxu0 %v3095
    %4523 = vmatpush1.bf16.msra.mxu0 %v3094
    %4524 = vmatprep.subr.bf16.mxu0 %v3087
    %4525 = vmatpush1.bf16.msra.mxu0 %v3086
    %4526 = vmatprep.subr.bf16.mxu0 %v3079
    %4527 = vmatpush1.bf16.msra.mxu0 %v3078
    %4528 = vmatprep.subr.bf16.mxu0 %v3071
    %4529 = vmatpush1.bf16.msra.mxu0 %v3070
    %4530 = vmatprep.subr.bf16.mxu0 %v3063
    %4531 = vmatpush1.bf16.msra.mxu0 %v3062
    %4532 = vmatprep.subr.bf16.mxu0 %v3055
    %4533 = vmatpush1.bf16.msra.mxu0 %v3054
    %4534 = vmatprep.subr.bf16.mxu0 %v3047
    %4535 = vmatpush1.bf16.msra.mxu0 %v3046
    %4536 = vmatprep.subr.bf16.mxu0 %v3167
    %4537 = vmatpush2.bf16.msra.mxu0 %v3166
    %4538 = vmatprep.subr.bf16.mxu0 %v3159
    %4539 = vmatpush2.bf16.msra.mxu0 %v3158
    %4540 = vmatprep.subr.bf16.mxu0 %v3151
    %4541 = vmatpush2.bf16.msra.mxu0 %v3150
    %4542 = vmatprep.subr.bf16.mxu0 %v3143
    %4543 = vmatpush2.bf16.msra.mxu0 %v3142
    %4544 = vmatprep.subr.bf16.mxu0 %v3135
    %4545 = vmatpush2.bf16.msra.mxu0 %v3134
    %4546 = vmatprep.subr.bf16.mxu0 %v3127
    %4547 = vmatpush2.bf16.msra.mxu0 %v3126
    %4548 = vmatprep.subr.bf16.mxu0 %v3119
    %4549 = vmatpush2.bf16.msra.mxu0 %v3118
    %4550 = vmatprep.subr.bf16.mxu0 %v3111
    %4551 = vmatpush2.bf16.msra.mxu0 %v3110
    %4552 = vmatprep.mubr.bf16.mxu0 %v891
    %4553 = vmatmul.mubr.bf16.gmra.mxu0 %v890
    %v4554 = vpop.f32.mrf.mxu0
    %v4555 = vadd.f32 %v1479, %v4554
    %v4556 = vpop.f32.mrf.mxu0
    %v4557 = vadd.f32 %v1483, %v4556
    %v4558 = vpop.f32.mrf.mxu0
    %v4559 = vadd.f32 %v1479, %v4558
    %v4560 = vpop.f32.mrf.mxu0
    %v4561 = vadd.f32 %v1483, %v4560
    %4562 = vmatprep.mubr.bf16.mxu0 %v899
    %4563 = vmatmul.mubr.bf16.gmra.mxu0 %v898
    %v4564 = vpop.f32.mrf.mxu0
    %v4565 = vadd.f32 %v1479, %v4564
    %v4566 = vpop.f32.mrf.mxu0
    %v4567 = vadd.f32 %v1483, %v4566
    %v4568 = vpop.f32.mrf.mxu0
    %v4569 = vadd.f32 %v1479, %v4568
    %v4570 = vpop.f32.mrf.mxu0
    %v4571 = vadd.f32 %v1483, %v4570
    %4572 = vmatprep.mubr.bf16.mxu0 %v907
    %4573 = vmatmul.mubr.bf16.gmra.mxu0 %v906
    %v4574 = vpop.f32.mrf.mxu0
    %v4575 = vadd.f32 %v1479, %v4574
    %v4576 = vpop.f32.mrf.mxu0
    %v4577 = vadd.f32 %v1483, %v4576
    %v4578 = vpop.f32.mrf.mxu0
    %v4579 = vadd.f32 %v1479, %v4578
    %v4580 = vpop.f32.mrf.mxu0
    %v4581 = vadd.f32 %v1483, %v4580
    %4582 = vmatprep.mubr.bf16.mxu0 %v915
    %4583 = vmatmul.mubr.bf16.gmra.mxu0 %v914
    %v4584 = vpop.f32.mrf.mxu0
    %v4585 = vadd.f32 %v1479, %v4584
    %v4586 = vpop.f32.mrf.mxu0
    %v4587 = vadd.f32 %v1483, %v4586
    %v4588 = vpop.f32.mrf.mxu0
    %v4589 = vadd.f32 %v1479, %v4588
    %v4590 = vpop.f32.mrf.mxu0
    %v4591 = vadd.f32 %v1483, %v4590
    %4592 = vmatprep.mubr.bf16.mxu0 %v923
    %4593 = vmatmul.mubr.bf16.gmra.mxu0 %v922
    %v4594 = vpop.f32.mrf.mxu0
    %v4595 = vadd.f32 %v1479, %v4594
    %v4596 = vpop.f32.mrf.mxu0
    %v4597 = vadd.f32 %v1483, %v4596
    %v4598 = vpop.f32.mrf.mxu0
    %v4599 = vadd.f32 %v1479, %v4598
    %v4600 = vpop.f32.mrf.mxu0
    %v4601 = vadd.f32 %v1483, %v4600
    %4602 = vmatprep.mubr.bf16.mxu0 %v931
    %4603 = vmatmul.mubr.bf16.gmra.mxu0 %v930
    %v4604 = vpop.f32.mrf.mxu0
    %v4605 = vadd.f32 %v1479, %v4604
    %v4606 = vpop.f32.mrf.mxu0
    %v4607 = vadd.f32 %v1483, %v4606
    %v4608 = vpop.f32.mrf.mxu0
    %v4609 = vadd.f32 %v1479, %v4608
    %v4610 = vpop.f32.mrf.mxu0
    %v4611 = vadd.f32 %v1483, %v4610
    %4612 = vmatprep.mubr.bf16.mxu0 %v939
    %4613 = vmatmul.mubr.bf16.gmra.mxu0 %v938
    %v4614 = vpop.f32.mrf.mxu0
    %v4615 = vadd.f32 %v1479, %v4614
    %v4616 = vpop.f32.mrf.mxu0
    %v4617 = vadd.f32 %v1483, %v4616
    %v4618 = vpop.f32.mrf.mxu0
    %v4619 = vadd.f32 %v1479, %v4618
    %v4620 = vpop.f32.mrf.mxu0
    %v4621 = vadd.f32 %v1483, %v4620
    %4622 = vmatprep.mubr.bf16.mxu0 %v947
    %4623 = vmatmul.mubr.bf16.gmra.mxu0 %v946
    %v4624 = vpop.f32.mrf.mxu0
    %v4625 = vadd.f32 %v1479, %v4624
    %v4626 = vpop.f32.mrf.mxu0
    %v4627 = vadd.f32 %v1483, %v4626
    %v4628 = vpop.f32.mrf.mxu0
    %v4629 = vadd.f32 %v1479, %v4628
    %v4630 = vpop.f32.mrf.mxu0
    %v4631 = vadd.f32 %v1483, %v4630
    %4632 = vdwg.mxu0
    %4633 = vmatprep.subr.bf16.mxu0 %v3231
    %4634 = vmatpush1.bf16.msra.mxu0 %v3230
    %4635 = vmatprep.subr.bf16.mxu0 %v3223
    %4636 = vmatpush1.bf16.msra.mxu0 %v3222
    %4637 = vmatprep.subr.bf16.mxu0 %v3215
    %4638 = vmatpush1.bf16.msra.mxu0 %v3214
    %4639 = vmatprep.subr.bf16.mxu0 %v3207
    %4640 = vmatpush1.bf16.msra.mxu0 %v3206
    %4641 = vmatprep.subr.bf16.mxu0 %v3199
    %4642 = vmatpush1.bf16.msra.mxu0 %v3198
    %4643 = vmatprep.subr.bf16.mxu0 %v3191
    %4644 = vmatpush1.bf16.msra.mxu0 %v3190
    %4645 = vmatprep.subr.bf16.mxu0 %v3183
    %4646 = vmatpush1.bf16.msra.mxu0 %v3182
    %4647 = vmatprep.subr.bf16.mxu0 %v3175
    %4648 = vmatpush1.bf16.msra.mxu0 %v3174
    %4649 = vmatprep.subr.bf16.mxu0 %v3295
    %4650 = vmatpush2.bf16.msra.mxu0 %v3294
    %4651 = vmatprep.subr.bf16.mxu0 %v3287
    %4652 = vmatpush2.bf16.msra.mxu0 %v3286
    %4653 = vmatprep.subr.bf16.mxu0 %v3279
    %4654 = vmatpush2.bf16.msra.mxu0 %v3278
    %4655 = vmatprep.subr.bf16.mxu0 %v3271
    %4656 = vmatpush2.bf16.msra.mxu0 %v3270
    %4657 = vmatprep.subr.bf16.mxu0 %v3263
    %4658 = vmatpush2.bf16.msra.mxu0 %v3262
    %4659 = vmatprep.subr.bf16.mxu0 %v3255
    %4660 = vmatpush2.bf16.msra.mxu0 %v3254
    %4661 = vmatprep.subr.bf16.mxu0 %v3247
    %4662 = vmatpush2.bf16.msra.mxu0 %v3246
    %4663 = vmatprep.subr.bf16.mxu0 %v3239
    %4664 = vmatpush2.bf16.msra.mxu0 %v3238
    %4665 = vmatprep.mubr.bf16.mxu0 %v893
    %4666 = vmatmul.mubr.bf16.gmra.mxu0 %v892
    %v4667 = vpop.f32.mrf.mxu0
    %v4668 = vadd.f32 %v4555, %v4667
    %v4669 = vpop.f32.mrf.mxu0
    %v4670 = vadd.f32 %v4557, %v4669
    %v4671 = vpop.f32.mrf.mxu0
    %v4672 = vadd.f32 %v4559, %v4671
    %v4673 = vpop.f32.mrf.mxu0
    %v4674 = vadd.f32 %v4561, %v4673
    %4675 = vmatprep.mubr.bf16.mxu0 %v901
    %4676 = vmatmul.mubr.bf16.gmra.mxu0 %v900
    %v4677 = vpop.f32.mrf.mxu0
    %v4678 = vadd.f32 %v4565, %v4677
    %v4679 = vpop.f32.mrf.mxu0
    %v4680 = vadd.f32 %v4567, %v4679
    %v4681 = vpop.f32.mrf.mxu0
    %v4682 = vadd.f32 %v4569, %v4681
    %v4683 = vpop.f32.mrf.mxu0
    %v4684 = vadd.f32 %v4571, %v4683
    %4685 = vmatprep.mubr.bf16.mxu0 %v909
    %4686 = vmatmul.mubr.bf16.gmra.mxu0 %v908
    %v4687 = vpop.f32.mrf.mxu0
    %v4688 = vadd.f32 %v4575, %v4687
    %v4689 = vpop.f32.mrf.mxu0
    %v4690 = vadd.f32 %v4577, %v4689
    %v4691 = vpop.f32.mrf.mxu0
    %v4692 = vadd.f32 %v4579, %v4691
    %v4693 = vpop.f32.mrf.mxu0
    %v4694 = vadd.f32 %v4581, %v4693
    %4695 = vmatprep.mubr.bf16.mxu0 %v917
    %4696 = vmatmul.mubr.bf16.gmra.mxu0 %v916
    %v4697 = vpop.f32.mrf.mxu0
    %v4698 = vadd.f32 %v4585, %v4697
    %v4699 = vpop.f32.mrf.mxu0
    %v4700 = vadd.f32 %v4587, %v4699
    %v4701 = vpop.f32.mrf.mxu0
    %v4702 = vadd.f32 %v4589, %v4701
    %v4703 = vpop.f32.mrf.mxu0
    %v4704 = vadd.f32 %v4591, %v4703
    %4705 = vmatprep.mubr.bf16.mxu0 %v925
    %4706 = vmatmul.mubr.bf16.gmra.mxu0 %v924
    %v4707 = vpop.f32.mrf.mxu0
    %v4708 = vadd.f32 %v4595, %v4707
    %v4709 = vpop.f32.mrf.mxu0
    %v4710 = vadd.f32 %v4597, %v4709
    %v4711 = vpop.f32.mrf.mxu0
    %v4712 = vadd.f32 %v4599, %v4711
    %v4713 = vpop.f32.mrf.mxu0
    %v4714 = vadd.f32 %v4601, %v4713
    %4715 = vmatprep.mubr.bf16.mxu0 %v933
    %4716 = vmatmul.mubr.bf16.gmra.mxu0 %v932
    %v4717 = vpop.f32.mrf.mxu0
    %v4718 = vadd.f32 %v4605, %v4717
    %v4719 = vpop.f32.mrf.mxu0
    %v4720 = vadd.f32 %v4607, %v4719
    %v4721 = vpop.f32.mrf.mxu0
    %v4722 = vadd.f32 %v4609, %v4721
    %v4723 = vpop.f32.mrf.mxu0
    %v4724 = vadd.f32 %v4611, %v4723
    %4725 = vmatprep.mubr.bf16.mxu0 %v941
    %4726 = vmatmul.mubr.bf16.gmra.mxu0 %v940
    %v4727 = vpop.f32.mrf.mxu0
    %v4728 = vadd.f32 %v4615, %v4727
    %v4729 = vpop.f32.mrf.mxu0
    %v4730 = vadd.f32 %v4617, %v4729
    %v4731 = vpop.f32.mrf.mxu0
    %v4732 = vadd.f32 %v4619, %v4731
    %v4733 = vpop.f32.mrf.mxu0
    %v4734 = vadd.f32 %v4621, %v4733
    %4735 = vmatprep.mubr.bf16.mxu0 %v949
    %4736 = vmatmul.mubr.bf16.gmra.mxu0 %v948
    %v4737 = vpop.f32.mrf.mxu0
    %v4738 = vadd.f32 %v4625, %v4737
    %v4739 = vpop.f32.mrf.mxu0
    %v4740 = vadd.f32 %v4627, %v4739
    %v4741 = vpop.f32.mrf.mxu0
    %v4742 = vadd.f32 %v4629, %v4741
    %v4743 = vpop.f32.mrf.mxu0
    %v4744 = vadd.f32 %v4631, %v4743
    %4745 = vdwg.mxu0
    %4746 = vmatprep.subr.bf16.mxu0 %v3359
    %4747 = vmatpush1.bf16.msra.mxu0 %v3358
    %4748 = vmatprep.subr.bf16.mxu0 %v3351
    %4749 = vmatpush1.bf16.msra.mxu0 %v3350
    %4750 = vmatprep.subr.bf16.mxu0 %v3343
    %4751 = vmatpush1.bf16.msra.mxu0 %v3342
    %4752 = vmatprep.subr.bf16.mxu0 %v3335
    %4753 = vmatpush1.bf16.msra.mxu0 %v3334
    %4754 = vmatprep.subr.bf16.mxu0 %v3327
    %4755 = vmatpush1.bf16.msra.mxu0 %v3326
    %4756 = vmatprep.subr.bf16.mxu0 %v3319
    %4757 = vmatpush1.bf16.msra.mxu0 %v3318
    %4758 = vmatprep.subr.bf16.mxu0 %v3311
    %4759 = vmatpush1.bf16.msra.mxu0 %v3310
    %4760 = vmatprep.subr.bf16.mxu0 %v3303
    %4761 = vmatpush1.bf16.msra.mxu0 %v3302
    %4762 = vmatprep.subr.bf16.mxu0 %v3423
    %4763 = vmatpush2.bf16.msra.mxu0 %v3422
    %4764 = vmatprep.subr.bf16.mxu0 %v3415
    %4765 = vmatpush2.bf16.msra.mxu0 %v3414
    %4766 = vmatprep.subr.bf16.mxu0 %v3407
    %4767 = vmatpush2.bf16.msra.mxu0 %v3406
    %4768 = vmatprep.subr.bf16.mxu0 %v3399
    %4769 = vmatpush2.bf16.msra.mxu0 %v3398
    %4770 = vmatprep.subr.bf16.mxu0 %v3391
    %4771 = vmatpush2.bf16.msra.mxu0 %v3390
    %4772 = vmatprep.subr.bf16.mxu0 %v3383
    %4773 = vmatpush2.bf16.msra.mxu0 %v3382
    %4774 = vmatprep.subr.bf16.mxu0 %v3375
    %4775 = vmatpush2.bf16.msra.mxu0 %v3374
    %4776 = vmatprep.subr.bf16.mxu0 %v3367
    %4777 = vmatpush2.bf16.msra.mxu0 %v3366
    %4778 = vmatprep.mubr.bf16.mxu0 %v895
    %4779 = vmatmul.mubr.bf16.gmra.mxu0 %v894
    %v4780 = vpop.f32.mrf.mxu0
    %v4781 = vadd.f32 %v4668, %v4780
    %v4782 = vpop.f32.mrf.mxu0
    %v4783 = vadd.f32 %v4670, %v4782
    %v4784 = vpop.f32.mrf.mxu0
    %v4785 = vadd.f32 %v4672, %v4784
    %v4786 = vpop.f32.mrf.mxu0
    %v4787 = vadd.f32 %v4674, %v4786
    %4788 = vmatprep.mubr.bf16.mxu0 %v903
    %4789 = vmatmul.mubr.bf16.gmra.mxu0 %v902
    %v4790 = vpop.f32.mrf.mxu0
    %v4791 = vadd.f32 %v4678, %v4790
    %v4792 = vpop.f32.mrf.mxu0
    %v4793 = vadd.f32 %v4680, %v4792
    %v4794 = vpop.f32.mrf.mxu0
    %v4795 = vadd.f32 %v4682, %v4794
    %v4796 = vpop.f32.mrf.mxu0
    %v4797 = vadd.f32 %v4684, %v4796
    %4798 = vmatprep.mubr.bf16.mxu0 %v911
    %4799 = vmatmul.mubr.bf16.gmra.mxu0 %v910
    %v4800 = vpop.f32.mrf.mxu0
    %v4801 = vadd.f32 %v4688, %v4800
    %v4802 = vpop.f32.mrf.mxu0
    %v4803 = vadd.f32 %v4690, %v4802
    %v4804 = vpop.f32.mrf.mxu0
    %v4805 = vadd.f32 %v4692, %v4804
    %v4806 = vpop.f32.mrf.mxu0
    %v4807 = vadd.f32 %v4694, %v4806
    %4808 = vmatprep.mubr.bf16.mxu0 %v919
    %4809 = vmatmul.mubr.bf16.gmra.mxu0 %v918
    %v4810 = vpop.f32.mrf.mxu0
    %v4811 = vadd.f32 %v4698, %v4810
    %v4812 = vpop.f32.mrf.mxu0
    %v4813 = vadd.f32 %v4700, %v4812
    %v4814 = vpop.f32.mrf.mxu0
    %v4815 = vadd.f32 %v4702, %v4814
    %v4816 = vpop.f32.mrf.mxu0
    %v4817 = vadd.f32 %v4704, %v4816
    %4818 = vmatprep.mubr.bf16.mxu0 %v927
    %4819 = vmatmul.mubr.bf16.gmra.mxu0 %v926
    %v4820 = vpop.f32.mrf.mxu0
    %v4821 = vadd.f32 %v4708, %v4820
    %v4822 = vpop.f32.mrf.mxu0
    %v4823 = vadd.f32 %v4710, %v4822
    %v4824 = vpop.f32.mrf.mxu0
    %v4825 = vadd.f32 %v4712, %v4824
    %v4826 = vpop.f32.mrf.mxu0
    %v4827 = vadd.f32 %v4714, %v4826
    %4828 = vmatprep.mubr.bf16.mxu0 %v935
    %4829 = vmatmul.mubr.bf16.gmra.mxu0 %v934
    %v4830 = vpop.f32.mrf.mxu0
    %v4831 = vadd.f32 %v4718, %v4830
    %v4832 = vpop.f32.mrf.mxu0
    %v4833 = vadd.f32 %v4720, %v4832
    %v4834 = vpop.f32.mrf.mxu0
    %v4835 = vadd.f32 %v4722, %v4834
    %v4836 = vpop.f32.mrf.mxu0
    %v4837 = vadd.f32 %v4724, %v4836
    %4838 = vmatprep.mubr.bf16.mxu0 %v943
    %4839 = vmatmul.mubr.bf16.gmra.mxu0 %v942
    %v4840 = vpop.f32.mrf.mxu0
    %v4841 = vadd.f32 %v4728, %v4840
    %v4842 = vpop.f32.mrf.mxu0
    %v4843 = vadd.f32 %v4730, %v4842
    %v4844 = vpop.f32.mrf.mxu0
    %v4845 = vadd.f32 %v4732, %v4844
    %v4846 = vpop.f32.mrf.mxu0
    %v4847 = vadd.f32 %v4734, %v4846
    %4848 = vmatprep.mubr.bf16.mxu0 %v951
    %4849 = vmatmul.mubr.bf16.gmra.mxu0 %v950
    %v4850 = vpop.f32.mrf.mxu0
    %v4851 = vadd.f32 %v4738, %v4850
    %v4852 = vpop.f32.mrf.mxu0
    %v4853 = vadd.f32 %v4740, %v4852
    %v4854 = vpop.f32.mrf.mxu0
    %v4855 = vadd.f32 %v4742, %v4854
    %v4856 = vpop.f32.mrf.mxu0
    %v4857 = vadd.f32 %v4744, %v4856
    %4858 = vdwg.mxu0
    %4859 = vmatprep.subr.bf16.mxu0 %v3487
    %4860 = vmatpush1.bf16.msra.mxu0 %v3486
    %4861 = vmatprep.subr.bf16.mxu0 %v3479
    %4862 = vmatpush1.bf16.msra.mxu0 %v3478
    %4863 = vmatprep.subr.bf16.mxu0 %v3471
    %4864 = vmatpush1.bf16.msra.mxu0 %v3470
    %4865 = vmatprep.subr.bf16.mxu0 %v3463
    %4866 = vmatpush1.bf16.msra.mxu0 %v3462
    %4867 = vmatprep.subr.bf16.mxu0 %v3455
    %4868 = vmatpush1.bf16.msra.mxu0 %v3454
    %4869 = vmatprep.subr.bf16.mxu0 %v3447
    %4870 = vmatpush1.bf16.msra.mxu0 %v3446
    %4871 = vmatprep.subr.bf16.mxu0 %v3439
    %4872 = vmatpush1.bf16.msra.mxu0 %v3438
    %4873 = vmatprep.subr.bf16.mxu0 %v3431
    %4874 = vmatpush1.bf16.msra.mxu0 %v3430
    %4875 = vmatprep.subr.bf16.mxu0 %v3551
    %4876 = vmatpush2.bf16.msra.mxu0 %v3550
    %4877 = vmatprep.subr.bf16.mxu0 %v3543
    %4878 = vmatpush2.bf16.msra.mxu0 %v3542
    %4879 = vmatprep.subr.bf16.mxu0 %v3535
    %4880 = vmatpush2.bf16.msra.mxu0 %v3534
    %4881 = vmatprep.subr.bf16.mxu0 %v3527
    %4882 = vmatpush2.bf16.msra.mxu0 %v3526
    %4883 = vmatprep.subr.bf16.mxu0 %v3519
    %4884 = vmatpush2.bf16.msra.mxu0 %v3518
    %4885 = vmatprep.subr.bf16.mxu0 %v3511
    %4886 = vmatpush2.bf16.msra.mxu0 %v3510
    %4887 = vmatprep.subr.bf16.mxu0 %v3503
    %4888 = vmatpush2.bf16.msra.mxu0 %v3502
    %4889 = vmatprep.subr.bf16.mxu0 %v3495
    %4890 = vmatpush2.bf16.msra.mxu0 %v3494
    %4891 = vmatprep.mubr.bf16.mxu0 %v897
    %4892 = vmatmul.mubr.bf16.gmra.mxu0 %v896
    %v4893 = vpop.f32.mrf.mxu0
    %v4894 = vadd.f32 %v4781, %v4893
    %v4895 = vpop.f32.mrf.mxu0
    %v4896 = vadd.f32 %v4783, %v4895
    %v4897 = vpop.f32.mrf.mxu0
    %v4898 = vadd.f32 %v4785, %v4897
    %v4899 = vpop.f32.mrf.mxu0
    %v4900 = vadd.f32 %v4787, %v4899
    %4901 = vmatprep.mubr.bf16.mxu0 %v905
    %4902 = vmatmul.mubr.bf16.gmra.mxu0 %v904
    %v4903 = vpop.f32.mrf.mxu0
    %v4904 = vadd.f32 %v4791, %v4903
    %v4905 = vpop.f32.mrf.mxu0
    %v4906 = vadd.f32 %v4793, %v4905
    %v4907 = vpop.f32.mrf.mxu0
    %v4908 = vadd.f32 %v4795, %v4907
    %v4909 = vpop.f32.mrf.mxu0
    %v4910 = vadd.f32 %v4797, %v4909
    %4911 = vmatprep.mubr.bf16.mxu0 %v913
    %4912 = vmatmul.mubr.bf16.gmra.mxu0 %v912
    %v4913 = vpop.f32.mrf.mxu0
    %v4914 = vadd.f32 %v4801, %v4913
    %v4915 = vpop.f32.mrf.mxu0
    %v4916 = vadd.f32 %v4803, %v4915
    %v4917 = vpop.f32.mrf.mxu0
    %v4918 = vadd.f32 %v4805, %v4917
    %v4919 = vpop.f32.mrf.mxu0
    %v4920 = vadd.f32 %v4807, %v4919
    %4921 = vmatprep.mubr.bf16.mxu0 %v921
    %4922 = vmatmul.mubr.bf16.gmra.mxu0 %v920
    %v4923 = vpop.f32.mrf.mxu0
    %v4924 = vadd.f32 %v4811, %v4923
    %v4925 = vpop.f32.mrf.mxu0
    %v4926 = vadd.f32 %v4813, %v4925
    %v4927 = vpop.f32.mrf.mxu0
    %v4928 = vadd.f32 %v4815, %v4927
    %v4929 = vpop.f32.mrf.mxu0
    %v4930 = vadd.f32 %v4817, %v4929
    %4931 = vmatprep.mubr.bf16.mxu0 %v929
    %4932 = vmatmul.mubr.bf16.gmra.mxu0 %v928
    %v4933 = vpop.f32.mrf.mxu0
    %v4934 = vadd.f32 %v4821, %v4933
    %v4935 = vpop.f32.mrf.mxu0
    %v4936 = vadd.f32 %v4823, %v4935
    %v4937 = vpop.f32.mrf.mxu0
    %v4938 = vadd.f32 %v4825, %v4937
    %v4939 = vpop.f32.mrf.mxu0
    %v4940 = vadd.f32 %v4827, %v4939
    %4941 = vmatprep.mubr.bf16.mxu0 %v937
    %4942 = vmatmul.mubr.bf16.gmra.mxu0 %v936
    %v4943 = vpop.f32.mrf.mxu0
    %v4944 = vadd.f32 %v4831, %v4943
    %v4945 = vpop.f32.mrf.mxu0
    %v4946 = vadd.f32 %v4833, %v4945
    %v4947 = vpop.f32.mrf.mxu0
    %v4948 = vadd.f32 %v4835, %v4947
    %v4949 = vpop.f32.mrf.mxu0
    %v4950 = vadd.f32 %v4837, %v4949
    %4951 = vmatprep.mubr.bf16.mxu0 %v945
    %4952 = vmatmul.mubr.bf16.gmra.mxu0 %v944
    %v4953 = vpop.f32.mrf.mxu0
    %v4954 = vadd.f32 %v4841, %v4953
    %v4955 = vpop.f32.mrf.mxu0
    %v4956 = vadd.f32 %v4843, %v4955
    %v4957 = vpop.f32.mrf.mxu0
    %v4958 = vadd.f32 %v4845, %v4957
    %v4959 = vpop.f32.mrf.mxu0
    %v4960 = vadd.f32 %v4847, %v4959
    %4961 = vmatprep.mubr.bf16.mxu0 %v953
    %4962 = vmatmul.mubr.bf16.gmra.mxu0 %v952
    %v4963 = vpop.f32.mrf.mxu0
    %v4964 = vadd.f32 %v4851, %v4963
    %v4965 = vpop.f32.mrf.mxu0
    %v4966 = vadd.f32 %v4853, %v4965
    %v4967 = vpop.f32.mrf.mxu0
    %v4968 = vadd.f32 %v4855, %v4967
    %v4969 = vpop.f32.mrf.mxu0
    %v4970 = vadd.f32 %v4857, %v4969
    %4971 = vdwg.mxu0
    %4972 = vmatprep.subr.bf16.mxu0 %v3105
    %4973 = vmatpush1.bf16.msra.mxu0 %v3104
    %4974 = vmatprep.subr.bf16.mxu0 %v3097
    %4975 = vmatpush1.bf16.msra.mxu0 %v3096
    %4976 = vmatprep.subr.bf16.mxu0 %v3089
    %4977 = vmatpush1.bf16.msra.mxu0 %v3088
    %4978 = vmatprep.subr.bf16.mxu0 %v3081
    %4979 = vmatpush1.bf16.msra.mxu0 %v3080
    %4980 = vmatprep.subr.bf16.mxu0 %v3073
    %4981 = vmatpush1.bf16.msra.mxu0 %v3072
    %4982 = vmatprep.subr.bf16.mxu0 %v3065
    %4983 = vmatpush1.bf16.msra.mxu0 %v3064
    %4984 = vmatprep.subr.bf16.mxu0 %v3057
    %4985 = vmatpush1.bf16.msra.mxu0 %v3056
    %4986 = vmatprep.subr.bf16.mxu0 %v3049
    %4987 = vmatpush1.bf16.msra.mxu0 %v3048
    %4988 = vmatprep.subr.bf16.mxu0 %v3169
    %4989 = vmatpush2.bf16.msra.mxu0 %v3168
    %4990 = vmatprep.subr.bf16.mxu0 %v3161
    %4991 = vmatpush2.bf16.msra.mxu0 %v3160
    %4992 = vmatprep.subr.bf16.mxu0 %v3153
    %4993 = vmatpush2.bf16.msra.mxu0 %v3152
    %4994 = vmatprep.subr.bf16.mxu0 %v3145
    %4995 = vmatpush2.bf16.msra.mxu0 %v3144
    %4996 = vmatprep.subr.bf16.mxu0 %v3137
    %4997 = vmatpush2.bf16.msra.mxu0 %v3136
    %4998 = vmatprep.subr.bf16.mxu0 %v3129
    %4999 = vmatpush2.bf16.msra.mxu0 %v3128
    %5000 = vmatprep.subr.bf16.mxu0 %v3121
    %5001 = vmatpush2.bf16.msra.mxu0 %v3120
    %5002 = vmatprep.subr.bf16.mxu0 %v3113
    %5003 = vmatpush2.bf16.msra.mxu0 %v3112
    %5004 = vmatprep.mubr.bf16.mxu0 %v891
    %5005 = vmatmul.mubr.bf16.gmra.mxu0 %v890
    %v5006 = vpop.f32.mrf.mxu0
    %v5007 = vadd.f32 %v1487, %v5006
    %v5008 = vpop.f32.mrf.mxu0
    %v5009 = vadd.f32 %v1491, %v5008
    %v5010 = vpop.f32.mrf.mxu0
    %v5011 = vadd.f32 %v1487, %v5010
    %v5012 = vpop.f32.mrf.mxu0
    %v5013 = vadd.f32 %v1491, %v5012
    %5014 = vmatprep.mubr.bf16.mxu0 %v899
    %5015 = vmatmul.mubr.bf16.gmra.mxu0 %v898
    %v5016 = vpop.f32.mrf.mxu0
    %v5017 = vadd.f32 %v1487, %v5016
    %v5018 = vpop.f32.mrf.mxu0
    %v5019 = vadd.f32 %v1491, %v5018
    %v5020 = vpop.f32.mrf.mxu0
    %v5021 = vadd.f32 %v1487, %v5020
    %v5022 = vpop.f32.mrf.mxu0
    %v5023 = vadd.f32 %v1491, %v5022
    %5024 = vmatprep.mubr.bf16.mxu0 %v907
    %5025 = vmatmul.mubr.bf16.gmra.mxu0 %v906
    %v5026 = vpop.f32.mrf.mxu0
    %v5027 = vadd.f32 %v1487, %v5026
    %v5028 = vpop.f32.mrf.mxu0
    %v5029 = vadd.f32 %v1491, %v5028
    %v5030 = vpop.f32.mrf.mxu0
    %v5031 = vadd.f32 %v1487, %v5030
    %v5032 = vpop.f32.mrf.mxu0
    %v5033 = vadd.f32 %v1491, %v5032
    %5034 = vmatprep.mubr.bf16.mxu0 %v915
    %5035 = vmatmul.mubr.bf16.gmra.mxu0 %v914
    %v5036 = vpop.f32.mrf.mxu0
    %v5037 = vadd.f32 %v1487, %v5036
    %v5038 = vpop.f32.mrf.mxu0
    %v5039 = vadd.f32 %v1491, %v5038
    %v5040 = vpop.f32.mrf.mxu0
    %v5041 = vadd.f32 %v1487, %v5040
    %v5042 = vpop.f32.mrf.mxu0
    %v5043 = vadd.f32 %v1491, %v5042
    %5044 = vmatprep.mubr.bf16.mxu0 %v923
    %5045 = vmatmul.mubr.bf16.gmra.mxu0 %v922
    %v5046 = vpop.f32.mrf.mxu0
    %v5047 = vadd.f32 %v1487, %v5046
    %v5048 = vpop.f32.mrf.mxu0
    %v5049 = vadd.f32 %v1491, %v5048
    %v5050 = vpop.f32.mrf.mxu0
    %v5051 = vadd.f32 %v1487, %v5050
    %v5052 = vpop.f32.mrf.mxu0
    %v5053 = vadd.f32 %v1491, %v5052
    %5054 = vmatprep.mubr.bf16.mxu0 %v931
    %5055 = vmatmul.mubr.bf16.gmra.mxu0 %v930
    %v5056 = vpop.f32.mrf.mxu0
    %v5057 = vadd.f32 %v1487, %v5056
    %v5058 = vpop.f32.mrf.mxu0
    %v5059 = vadd.f32 %v1491, %v5058
    %v5060 = vpop.f32.mrf.mxu0
    %v5061 = vadd.f32 %v1487, %v5060
    %v5062 = vpop.f32.mrf.mxu0
    %v5063 = vadd.f32 %v1491, %v5062
    %5064 = vmatprep.mubr.bf16.mxu0 %v939
    %5065 = vmatmul.mubr.bf16.gmra.mxu0 %v938
    %v5066 = vpop.f32.mrf.mxu0
    %v5067 = vadd.f32 %v1487, %v5066
    %v5068 = vpop.f32.mrf.mxu0
    %v5069 = vadd.f32 %v1491, %v5068
    %v5070 = vpop.f32.mrf.mxu0
    %v5071 = vadd.f32 %v1487, %v5070
    %v5072 = vpop.f32.mrf.mxu0
    %v5073 = vadd.f32 %v1491, %v5072
    %5074 = vmatprep.mubr.bf16.mxu0 %v947
    %5075 = vmatmul.mubr.bf16.gmra.mxu0 %v946
    %v5076 = vpop.f32.mrf.mxu0
    %v5077 = vadd.f32 %v1487, %v5076
    %v5078 = vpop.f32.mrf.mxu0
    %v5079 = vadd.f32 %v1491, %v5078
    %v5080 = vpop.f32.mrf.mxu0
    %v5081 = vadd.f32 %v1487, %v5080
    %v5082 = vpop.f32.mrf.mxu0
    %v5083 = vadd.f32 %v1491, %v5082
    %5084 = vdwg.mxu0
    %5085 = vmatprep.subr.bf16.mxu0 %v3233
    %5086 = vmatpush1.bf16.msra.mxu0 %v3232
    %5087 = vmatprep.subr.bf16.mxu0 %v3225
    %5088 = vmatpush1.bf16.msra.mxu0 %v3224
    %5089 = vmatprep.subr.bf16.mxu0 %v3217
    %5090 = vmatpush1.bf16.msra.mxu0 %v3216
    %5091 = vmatprep.subr.bf16.mxu0 %v3209
    %5092 = vmatpush1.bf16.msra.mxu0 %v3208
    %5093 = vmatprep.subr.bf16.mxu0 %v3201
    %5094 = vmatpush1.bf16.msra.mxu0 %v3200
    %5095 = vmatprep.subr.bf16.mxu0 %v3193
    %5096 = vmatpush1.bf16.msra.mxu0 %v3192
    %5097 = vmatprep.subr.bf16.mxu0 %v3185
    %5098 = vmatpush1.bf16.msra.mxu0 %v3184
    %5099 = vmatprep.subr.bf16.mxu0 %v3177
    %5100 = vmatpush1.bf16.msra.mxu0 %v3176
    %5101 = vmatprep.subr.bf16.mxu0 %v3297
    %5102 = vmatpush2.bf16.msra.mxu0 %v3296
    %5103 = vmatprep.subr.bf16.mxu0 %v3289
    %5104 = vmatpush2.bf16.msra.mxu0 %v3288
    %5105 = vmatprep.subr.bf16.mxu0 %v3281
    %5106 = vmatpush2.bf16.msra.mxu0 %v3280
    %5107 = vmatprep.subr.bf16.mxu0 %v3273
    %5108 = vmatpush2.bf16.msra.mxu0 %v3272
    %5109 = vmatprep.subr.bf16.mxu0 %v3265
    %5110 = vmatpush2.bf16.msra.mxu0 %v3264
    %5111 = vmatprep.subr.bf16.mxu0 %v3257
    %5112 = vmatpush2.bf16.msra.mxu0 %v3256
    %5113 = vmatprep.subr.bf16.mxu0 %v3249
    %5114 = vmatpush2.bf16.msra.mxu0 %v3248
    %5115 = vmatprep.subr.bf16.mxu0 %v3241
    %5116 = vmatpush2.bf16.msra.mxu0 %v3240
    %5117 = vmatprep.mubr.bf16.mxu0 %v893
    %5118 = vmatmul.mubr.bf16.gmra.mxu0 %v892
    %v5119 = vpop.f32.mrf.mxu0
    %v5120 = vadd.f32 %v5007, %v5119
    %v5121 = vpop.f32.mrf.mxu0
    %v5122 = vadd.f32 %v5009, %v5121
    %v5123 = vpop.f32.mrf.mxu0
    %v5124 = vadd.f32 %v5011, %v5123
    %v5125 = vpop.f32.mrf.mxu0
    %v5126 = vadd.f32 %v5013, %v5125
    %5127 = vmatprep.mubr.bf16.mxu0 %v901
    %5128 = vmatmul.mubr.bf16.gmra.mxu0 %v900
    %v5129 = vpop.f32.mrf.mxu0
    %v5130 = vadd.f32 %v5017, %v5129
    %v5131 = vpop.f32.mrf.mxu0
    %v5132 = vadd.f32 %v5019, %v5131
    %v5133 = vpop.f32.mrf.mxu0
    %v5134 = vadd.f32 %v5021, %v5133
    %v5135 = vpop.f32.mrf.mxu0
    %v5136 = vadd.f32 %v5023, %v5135
    %5137 = vmatprep.mubr.bf16.mxu0 %v909
    %5138 = vmatmul.mubr.bf16.gmra.mxu0 %v908
    %v5139 = vpop.f32.mrf.mxu0
    %v5140 = vadd.f32 %v5027, %v5139
    %v5141 = vpop.f32.mrf.mxu0
    %v5142 = vadd.f32 %v5029, %v5141
    %v5143 = vpop.f32.mrf.mxu0
    %v5144 = vadd.f32 %v5031, %v5143
    %v5145 = vpop.f32.mrf.mxu0
    %v5146 = vadd.f32 %v5033, %v5145
    %5147 = vmatprep.mubr.bf16.mxu0 %v917
    %5148 = vmatmul.mubr.bf16.gmra.mxu0 %v916
    %v5149 = vpop.f32.mrf.mxu0
    %v5150 = vadd.f32 %v5037, %v5149
    %v5151 = vpop.f32.mrf.mxu0
    %v5152 = vadd.f32 %v5039, %v5151
    %v5153 = vpop.f32.mrf.mxu0
    %v5154 = vadd.f32 %v5041, %v5153
    %v5155 = vpop.f32.mrf.mxu0
    %v5156 = vadd.f32 %v5043, %v5155
    %5157 = vmatprep.mubr.bf16.mxu0 %v925
    %5158 = vmatmul.mubr.bf16.gmra.mxu0 %v924
    %v5159 = vpop.f32.mrf.mxu0
    %v5160 = vadd.f32 %v5047, %v5159
    %v5161 = vpop.f32.mrf.mxu0
    %v5162 = vadd.f32 %v5049, %v5161
    %v5163 = vpop.f32.mrf.mxu0
    %v5164 = vadd.f32 %v5051, %v5163
    %v5165 = vpop.f32.mrf.mxu0
    %v5166 = vadd.f32 %v5053, %v5165
    %5167 = vmatprep.mubr.bf16.mxu0 %v933
    %5168 = vmatmul.mubr.bf16.gmra.mxu0 %v932
    %v5169 = vpop.f32.mrf.mxu0
    %v5170 = vadd.f32 %v5057, %v5169
    %v5171 = vpop.f32.mrf.mxu0
    %v5172 = vadd.f32 %v5059, %v5171
    %v5173 = vpop.f32.mrf.mxu0
    %v5174 = vadd.f32 %v5061, %v5173
    %v5175 = vpop.f32.mrf.mxu0
    %v5176 = vadd.f32 %v5063, %v5175
    %5177 = vmatprep.mubr.bf16.mxu0 %v941
    %5178 = vmatmul.mubr.bf16.gmra.mxu0 %v940
    %v5179 = vpop.f32.mrf.mxu0
    %v5180 = vadd.f32 %v5067, %v5179
    %v5181 = vpop.f32.mrf.mxu0
    %v5182 = vadd.f32 %v5069, %v5181
    %v5183 = vpop.f32.mrf.mxu0
    %v5184 = vadd.f32 %v5071, %v5183
    %v5185 = vpop.f32.mrf.mxu0
    %v5186 = vadd.f32 %v5073, %v5185
    %5187 = vmatprep.mubr.bf16.mxu0 %v949
    %5188 = vmatmul.mubr.bf16.gmra.mxu0 %v948
    %v5189 = vpop.f32.mrf.mxu0
    %v5190 = vadd.f32 %v5077, %v5189
    %v5191 = vpop.f32.mrf.mxu0
    %v5192 = vadd.f32 %v5079, %v5191
    %v5193 = vpop.f32.mrf.mxu0
    %v5194 = vadd.f32 %v5081, %v5193
    %v5195 = vpop.f32.mrf.mxu0
    %v5196 = vadd.f32 %v5083, %v5195
    %5197 = vdwg.mxu0
    %5198 = vmatprep.subr.bf16.mxu0 %v3361
    %5199 = vmatpush1.bf16.msra.mxu0 %v3360
    %5200 = vmatprep.subr.bf16.mxu0 %v3353
    %5201 = vmatpush1.bf16.msra.mxu0 %v3352
    %5202 = vmatprep.subr.bf16.mxu0 %v3345
    %5203 = vmatpush1.bf16.msra.mxu0 %v3344
    %5204 = vmatprep.subr.bf16.mxu0 %v3337
    %5205 = vmatpush1.bf16.msra.mxu0 %v3336
    %5206 = vmatprep.subr.bf16.mxu0 %v3329
    %5207 = vmatpush1.bf16.msra.mxu0 %v3328
    %5208 = vmatprep.subr.bf16.mxu0 %v3321
    %5209 = vmatpush1.bf16.msra.mxu0 %v3320
    %5210 = vmatprep.subr.bf16.mxu0 %v3313
    %5211 = vmatpush1.bf16.msra.mxu0 %v3312
    %5212 = vmatprep.subr.bf16.mxu0 %v3305
    %5213 = vmatpush1.bf16.msra.mxu0 %v3304
    %5214 = vmatprep.subr.bf16.mxu0 %v3425
    %5215 = vmatpush2.bf16.msra.mxu0 %v3424
    %5216 = vmatprep.subr.bf16.mxu0 %v3417
    %5217 = vmatpush2.bf16.msra.mxu0 %v3416
    %5218 = vmatprep.subr.bf16.mxu0 %v3409
    %5219 = vmatpush2.bf16.msra.mxu0 %v3408
    %5220 = vmatprep.subr.bf16.mxu0 %v3401
    %5221 = vmatpush2.bf16.msra.mxu0 %v3400
    %5222 = vmatprep.subr.bf16.mxu0 %v3393
    %5223 = vmatpush2.bf16.msra.mxu0 %v3392
    %5224 = vmatprep.subr.bf16.mxu0 %v3385
    %5225 = vmatpush2.bf16.msra.mxu0 %v3384
    %5226 = vmatprep.subr.bf16.mxu0 %v3377
    %5227 = vmatpush2.bf16.msra.mxu0 %v3376
    %5228 = vmatprep.subr.bf16.mxu0 %v3369
    %5229 = vmatpush2.bf16.msra.mxu0 %v3368
    %5230 = vmatprep.mubr.bf16.mxu0 %v895
    %5231 = vmatmul.mubr.bf16.gmra.mxu0 %v894
    %v5232 = vpop.f32.mrf.mxu0
    %v5233 = vadd.f32 %v5120, %v5232
    %v5234 = vpop.f32.mrf.mxu0
    %v5235 = vadd.f32 %v5122, %v5234
    %v5236 = vpop.f32.mrf.mxu0
    %v5237 = vadd.f32 %v5124, %v5236
    %v5238 = vpop.f32.mrf.mxu0
    %v5239 = vadd.f32 %v5126, %v5238
    %5240 = vmatprep.mubr.bf16.mxu0 %v903
    %5241 = vmatmul.mubr.bf16.gmra.mxu0 %v902
    %v5242 = vpop.f32.mrf.mxu0
    %v5243 = vadd.f32 %v5130, %v5242
    %v5244 = vpop.f32.mrf.mxu0
    %v5245 = vadd.f32 %v5132, %v5244
    %v5246 = vpop.f32.mrf.mxu0
    %v5247 = vadd.f32 %v5134, %v5246
    %v5248 = vpop.f32.mrf.mxu0
    %v5249 = vadd.f32 %v5136, %v5248
    %5250 = vmatprep.mubr.bf16.mxu0 %v911
    %5251 = vmatmul.mubr.bf16.gmra.mxu0 %v910
    %v5252 = vpop.f32.mrf.mxu0
    %v5253 = vadd.f32 %v5140, %v5252
    %v5254 = vpop.f32.mrf.mxu0
    %v5255 = vadd.f32 %v5142, %v5254
    %v5256 = vpop.f32.mrf.mxu0
    %v5257 = vadd.f32 %v5144, %v5256
    %v5258 = vpop.f32.mrf.mxu0
    %v5259 = vadd.f32 %v5146, %v5258
    %5260 = vmatprep.mubr.bf16.mxu0 %v919
    %5261 = vmatmul.mubr.bf16.gmra.mxu0 %v918
    %v5262 = vpop.f32.mrf.mxu0
    %v5263 = vadd.f32 %v5150, %v5262
    %v5264 = vpop.f32.mrf.mxu0
    %v5265 = vadd.f32 %v5152, %v5264
    %v5266 = vpop.f32.mrf.mxu0
    %v5267 = vadd.f32 %v5154, %v5266
    %v5268 = vpop.f32.mrf.mxu0
    %v5269 = vadd.f32 %v5156, %v5268
    %5270 = vmatprep.mubr.bf16.mxu0 %v927
    %5271 = vmatmul.mubr.bf16.gmra.mxu0 %v926
    %v5272 = vpop.f32.mrf.mxu0
    %v5273 = vadd.f32 %v5160, %v5272
    %v5274 = vpop.f32.mrf.mxu0
    %v5275 = vadd.f32 %v5162, %v5274
    %v5276 = vpop.f32.mrf.mxu0
    %v5277 = vadd.f32 %v5164, %v5276
    %v5278 = vpop.f32.mrf.mxu0
    %v5279 = vadd.f32 %v5166, %v5278
    %5280 = vmatprep.mubr.bf16.mxu0 %v935
    %5281 = vmatmul.mubr.bf16.gmra.mxu0 %v934
    %v5282 = vpop.f32.mrf.mxu0
    %v5283 = vadd.f32 %v5170, %v5282
    %v5284 = vpop.f32.mrf.mxu0
    %v5285 = vadd.f32 %v5172, %v5284
    %v5286 = vpop.f32.mrf.mxu0
    %v5287 = vadd.f32 %v5174, %v5286
    %v5288 = vpop.f32.mrf.mxu0
    %v5289 = vadd.f32 %v5176, %v5288
    %5290 = vmatprep.mubr.bf16.mxu0 %v943
    %5291 = vmatmul.mubr.bf16.gmra.mxu0 %v942
    %v5292 = vpop.f32.mrf.mxu0
    %v5293 = vadd.f32 %v5180, %v5292
    %v5294 = vpop.f32.mrf.mxu0
    %v5295 = vadd.f32 %v5182, %v5294
    %v5296 = vpop.f32.mrf.mxu0
    %v5297 = vadd.f32 %v5184, %v5296
    %v5298 = vpop.f32.mrf.mxu0
    %v5299 = vadd.f32 %v5186, %v5298
    %5300 = vmatprep.mubr.bf16.mxu0 %v951
    %5301 = vmatmul.mubr.bf16.gmra.mxu0 %v950
    %v5302 = vpop.f32.mrf.mxu0
    %v5303 = vadd.f32 %v5190, %v5302
    %v5304 = vpop.f32.mrf.mxu0
    %v5305 = vadd.f32 %v5192, %v5304
    %v5306 = vpop.f32.mrf.mxu0
    %v5307 = vadd.f32 %v5194, %v5306
    %v5308 = vpop.f32.mrf.mxu0
    %v5309 = vadd.f32 %v5196, %v5308
    %5310 = vdwg.mxu0
    %5311 = vmatprep.subr.bf16.mxu0 %v3489
    %5312 = vmatpush1.bf16.msra.mxu0 %v3488
    %5313 = vmatprep.subr.bf16.mxu0 %v3481
    %5314 = vmatpush1.bf16.msra.mxu0 %v3480
    %5315 = vmatprep.subr.bf16.mxu0 %v3473
    %5316 = vmatpush1.bf16.msra.mxu0 %v3472
    %5317 = vmatprep.subr.bf16.mxu0 %v3465
    %5318 = vmatpush1.bf16.msra.mxu0 %v3464
    %5319 = vmatprep.subr.bf16.mxu0 %v3457
    %5320 = vmatpush1.bf16.msra.mxu0 %v3456
    %5321 = vmatprep.subr.bf16.mxu0 %v3449
    %5322 = vmatpush1.bf16.msra.mxu0 %v3448
    %5323 = vmatprep.subr.bf16.mxu0 %v3441
    %5324 = vmatpush1.bf16.msra.mxu0 %v3440
    %5325 = vmatprep.subr.bf16.mxu0 %v3433
    %5326 = vmatpush1.bf16.msra.mxu0 %v3432
    %5327 = vmatprep.subr.bf16.mxu0 %v3553
    %5328 = vmatpush2.bf16.msra.mxu0 %v3552
    %5329 = vmatprep.subr.bf16.mxu0 %v3545
    %5330 = vmatpush2.bf16.msra.mxu0 %v3544
    %5331 = vmatprep.subr.bf16.mxu0 %v3537
    %5332 = vmatpush2.bf16.msra.mxu0 %v3536
    %5333 = vmatprep.subr.bf16.mxu0 %v3529
    %5334 = vmatpush2.bf16.msra.mxu0 %v3528
    %5335 = vmatprep.subr.bf16.mxu0 %v3521
    %5336 = vmatpush2.bf16.msra.mxu0 %v3520
    %5337 = vmatprep.subr.bf16.mxu0 %v3513
    %5338 = vmatpush2.bf16.msra.mxu0 %v3512
    %5339 = vmatprep.subr.bf16.mxu0 %v3505
    %5340 = vmatpush2.bf16.msra.mxu0 %v3504
    %5341 = vmatprep.subr.bf16.mxu0 %v3497
    %5342 = vmatpush2.bf16.msra.mxu0 %v3496
    %5343 = vmatprep.mubr.bf16.mxu0 %v897
    %5344 = vmatmul.mubr.bf16.gmra.mxu0 %v896
    %v5345 = vpop.f32.mrf.mxu0
    %v5346 = vadd.f32 %v5233, %v5345
    %v5347 = vpop.f32.mrf.mxu0
    %v5348 = vadd.f32 %v5235, %v5347
    %v5349 = vpop.f32.mrf.mxu0
    %v5350 = vadd.f32 %v5237, %v5349
    %v5351 = vpop.f32.mrf.mxu0
    %v5352 = vadd.f32 %v5239, %v5351
    %5353 = vmatprep.mubr.bf16.mxu0 %v905
    %5354 = vmatmul.mubr.bf16.gmra.mxu0 %v904
    %v5355 = vpop.f32.mrf.mxu0
    %v5356 = vadd.f32 %v5243, %v5355
    %v5357 = vpop.f32.mrf.mxu0
    %v5358 = vadd.f32 %v5245, %v5357
    %v5359 = vpop.f32.mrf.mxu0
    %v5360 = vadd.f32 %v5247, %v5359
    %v5361 = vpop.f32.mrf.mxu0
    %v5362 = vadd.f32 %v5249, %v5361
    %5363 = vmatprep.mubr.bf16.mxu0 %v913
    %5364 = vmatmul.mubr.bf16.gmra.mxu0 %v912
    %v5365 = vpop.f32.mrf.mxu0
    %v5366 = vadd.f32 %v5253, %v5365
    %v5367 = vpop.f32.mrf.mxu0
    %v5368 = vadd.f32 %v5255, %v5367
    %v5369 = vpop.f32.mrf.mxu0
    %v5370 = vadd.f32 %v5257, %v5369
    %v5371 = vpop.f32.mrf.mxu0
    %v5372 = vadd.f32 %v5259, %v5371
    %5373 = vmatprep.mubr.bf16.mxu0 %v921
    %5374 = vmatmul.mubr.bf16.gmra.mxu0 %v920
    %v5375 = vpop.f32.mrf.mxu0
    %v5376 = vadd.f32 %v5263, %v5375
    %v5377 = vpop.f32.mrf.mxu0
    %v5378 = vadd.f32 %v5265, %v5377
    %v5379 = vpop.f32.mrf.mxu0
    %v5380 = vadd.f32 %v5267, %v5379
    %v5381 = vpop.f32.mrf.mxu0
    %v5382 = vadd.f32 %v5269, %v5381
    %5383 = vmatprep.mubr.bf16.mxu0 %v929
    %5384 = vmatmul.mubr.bf16.gmra.mxu0 %v928
    %v5385 = vpop.f32.mrf.mxu0
    %v5386 = vadd.f32 %v5273, %v5385
    %v5387 = vpop.f32.mrf.mxu0
    %v5388 = vadd.f32 %v5275, %v5387
    %v5389 = vpop.f32.mrf.mxu0
    %v5390 = vadd.f32 %v5277, %v5389
    %v5391 = vpop.f32.mrf.mxu0
    %v5392 = vadd.f32 %v5279, %v5391
    %5393 = vmatprep.mubr.bf16.mxu0 %v937
    %5394 = vmatmul.mubr.bf16.gmra.mxu0 %v936
    %v5395 = vpop.f32.mrf.mxu0
    %v5396 = vadd.f32 %v5283, %v5395
    %v5397 = vpop.f32.mrf.mxu0
    %v5398 = vadd.f32 %v5285, %v5397
    %v5399 = vpop.f32.mrf.mxu0
    %v5400 = vadd.f32 %v5287, %v5399
    %v5401 = vpop.f32.mrf.mxu0
    %v5402 = vadd.f32 %v5289, %v5401
    %5403 = vmatprep.mubr.bf16.mxu0 %v945
    %5404 = vmatmul.mubr.bf16.gmra.mxu0 %v944
    %v5405 = vpop.f32.mrf.mxu0
    %v5406 = vadd.f32 %v5293, %v5405
    %v5407 = vpop.f32.mrf.mxu0
    %v5408 = vadd.f32 %v5295, %v5407
    %v5409 = vpop.f32.mrf.mxu0
    %v5410 = vadd.f32 %v5297, %v5409
    %v5411 = vpop.f32.mrf.mxu0
    %v5412 = vadd.f32 %v5299, %v5411
    %5413 = vmatprep.mubr.bf16.mxu0 %v953
    %5414 = vmatmul.mubr.bf16.gmra.mxu0 %v952
    %v5415 = vpop.f32.mrf.mxu0
    %v5416 = vadd.f32 %v5303, %v5415
    %v5417 = vpop.f32.mrf.mxu0
    %v5418 = vadd.f32 %v5305, %v5417
    %v5419 = vpop.f32.mrf.mxu0
    %v5420 = vadd.f32 %v5307, %v5419
    %v5421 = vpop.f32.mrf.mxu0
    %v5422 = vadd.f32 %v5309, %v5421
    %5423 = vdwg.mxu0
    %5424 = vmatprep.subr.bf16.mxu0 %v3107
    %5425 = vmatpush1.bf16.msra.mxu0 %v3106
    %5426 = vmatprep.subr.bf16.mxu0 %v3099
    %5427 = vmatpush1.bf16.msra.mxu0 %v3098
    %5428 = vmatprep.subr.bf16.mxu0 %v3091
    %5429 = vmatpush1.bf16.msra.mxu0 %v3090
    %5430 = vmatprep.subr.bf16.mxu0 %v3083
    %5431 = vmatpush1.bf16.msra.mxu0 %v3082
    %5432 = vmatprep.subr.bf16.mxu0 %v3075
    %5433 = vmatpush1.bf16.msra.mxu0 %v3074
    %5434 = vmatprep.subr.bf16.mxu0 %v3067
    %5435 = vmatpush1.bf16.msra.mxu0 %v3066
    %5436 = vmatprep.subr.bf16.mxu0 %v3059
    %5437 = vmatpush1.bf16.msra.mxu0 %v3058
    %5438 = vmatprep.subr.bf16.mxu0 %v3051
    %5439 = vmatpush1.bf16.msra.mxu0 %v3050
    %5440 = vmatprep.subr.bf16.mxu0 %v3171
    %5441 = vmatpush2.bf16.msra.mxu0 %v3170
    %5442 = vmatprep.subr.bf16.mxu0 %v3163
    %5443 = vmatpush2.bf16.msra.mxu0 %v3162
    %5444 = vmatprep.subr.bf16.mxu0 %v3155
    %5445 = vmatpush2.bf16.msra.mxu0 %v3154
    %5446 = vmatprep.subr.bf16.mxu0 %v3147
    %5447 = vmatpush2.bf16.msra.mxu0 %v3146
    %5448 = vmatprep.subr.bf16.mxu0 %v3139
    %5449 = vmatpush2.bf16.msra.mxu0 %v3138
    %5450 = vmatprep.subr.bf16.mxu0 %v3131
    %5451 = vmatpush2.bf16.msra.mxu0 %v3130
    %5452 = vmatprep.subr.bf16.mxu0 %v3123
    %5453 = vmatpush2.bf16.msra.mxu0 %v3122
    %5454 = vmatprep.subr.bf16.mxu0 %v3115
    %5455 = vmatpush2.bf16.msra.mxu0 %v3114
    %5456 = vmatprep.mubr.bf16.mxu0 %v891
    %5457 = vmatmul.mubr.bf16.gmra.mxu0 %v890
    %v5458 = vpop.f32.mrf.mxu0
    %v5459 = vadd.f32 %v1495, %v5458
    %v5460 = vpop.f32.mrf.mxu0
    %v5461 = vadd.f32 %v1499, %v5460
    %v5462 = vpop.f32.mrf.mxu0
    %v5463 = vadd.f32 %v1495, %v5462
    %v5464 = vpop.f32.mrf.mxu0
    %v5465 = vadd.f32 %v1499, %v5464
    %5466 = vmatprep.mubr.bf16.mxu0 %v899
    %5467 = vmatmul.mubr.bf16.gmra.mxu0 %v898
    %v5468 = vpop.f32.mrf.mxu0
    %v5469 = vadd.f32 %v1495, %v5468
    %v5470 = vpop.f32.mrf.mxu0
    %v5471 = vadd.f32 %v1499, %v5470
    %v5472 = vpop.f32.mrf.mxu0
    %v5473 = vadd.f32 %v1495, %v5472
    %v5474 = vpop.f32.mrf.mxu0
    %v5475 = vadd.f32 %v1499, %v5474
    %5476 = vmatprep.mubr.bf16.mxu0 %v907
    %5477 = vmatmul.mubr.bf16.gmra.mxu0 %v906
    %v5478 = vpop.f32.mrf.mxu0
    %v5479 = vadd.f32 %v1495, %v5478
    %v5480 = vpop.f32.mrf.mxu0
    %v5481 = vadd.f32 %v1499, %v5480
    %v5482 = vpop.f32.mrf.mxu0
    %v5483 = vadd.f32 %v1495, %v5482
    %v5484 = vpop.f32.mrf.mxu0
    %v5485 = vadd.f32 %v1499, %v5484
    %5486 = vmatprep.mubr.bf16.mxu0 %v915
    %5487 = vmatmul.mubr.bf16.gmra.mxu0 %v914
    %v5488 = vpop.f32.mrf.mxu0
    %v5489 = vadd.f32 %v1495, %v5488
    %v5490 = vpop.f32.mrf.mxu0
    %v5491 = vadd.f32 %v1499, %v5490
    %v5492 = vpop.f32.mrf.mxu0
    %v5493 = vadd.f32 %v1495, %v5492
    %v5494 = vpop.f32.mrf.mxu0
    %v5495 = vadd.f32 %v1499, %v5494
    %5496 = vmatprep.mubr.bf16.mxu0 %v923
    %5497 = vmatmul.mubr.bf16.gmra.mxu0 %v922
    %v5498 = vpop.f32.mrf.mxu0
    %v5499 = vadd.f32 %v1495, %v5498
    %v5500 = vpop.f32.mrf.mxu0
    %v5501 = vadd.f32 %v1499, %v5500
    %v5502 = vpop.f32.mrf.mxu0
    %v5503 = vadd.f32 %v1495, %v5502
    %v5504 = vpop.f32.mrf.mxu0
    %v5505 = vadd.f32 %v1499, %v5504
    %5506 = vmatprep.mubr.bf16.mxu0 %v931
    %5507 = vmatmul.mubr.bf16.gmra.mxu0 %v930
    %v5508 = vpop.f32.mrf.mxu0
    %v5509 = vadd.f32 %v1495, %v5508
    %v5510 = vpop.f32.mrf.mxu0
    %v5511 = vadd.f32 %v1499, %v5510
    %v5512 = vpop.f32.mrf.mxu0
    %v5513 = vadd.f32 %v1495, %v5512
    %v5514 = vpop.f32.mrf.mxu0
    %v5515 = vadd.f32 %v1499, %v5514
    %5516 = vmatprep.mubr.bf16.mxu0 %v939
    %5517 = vmatmul.mubr.bf16.gmra.mxu0 %v938
    %v5518 = vpop.f32.mrf.mxu0
    %v5519 = vadd.f32 %v1495, %v5518
    %v5520 = vpop.f32.mrf.mxu0
    %v5521 = vadd.f32 %v1499, %v5520
    %v5522 = vpop.f32.mrf.mxu0
    %v5523 = vadd.f32 %v1495, %v5522
    %v5524 = vpop.f32.mrf.mxu0
    %v5525 = vadd.f32 %v1499, %v5524
    %5526 = vmatprep.mubr.bf16.mxu0 %v947
    %5527 = vmatmul.mubr.bf16.gmra.mxu0 %v946
    %v5528 = vpop.f32.mrf.mxu0
    %v5529 = vadd.f32 %v1495, %v5528
    %v5530 = vpop.f32.mrf.mxu0
    %v5531 = vadd.f32 %v1499, %v5530
    %v5532 = vpop.f32.mrf.mxu0
    %v5533 = vadd.f32 %v1495, %v5532
    %v5534 = vpop.f32.mrf.mxu0
    %v5535 = vadd.f32 %v1499, %v5534
    %5536 = vdwg.mxu0
    %5537 = vmatprep.subr.bf16.mxu0 %v3235
    %5538 = vmatpush1.bf16.msra.mxu0 %v3234
    %5539 = vmatprep.subr.bf16.mxu0 %v3227
    %5540 = vmatpush1.bf16.msra.mxu0 %v3226
    %5541 = vmatprep.subr.bf16.mxu0 %v3219
    %5542 = vmatpush1.bf16.msra.mxu0 %v3218
    %5543 = vmatprep.subr.bf16.mxu0 %v3211
    %5544 = vmatpush1.bf16.msra.mxu0 %v3210
    %5545 = vmatprep.subr.bf16.mxu0 %v3203
    %5546 = vmatpush1.bf16.msra.mxu0 %v3202
    %5547 = vmatprep.subr.bf16.mxu0 %v3195
    %5548 = vmatpush1.bf16.msra.mxu0 %v3194
    %5549 = vmatprep.subr.bf16.mxu0 %v3187
    %5550 = vmatpush1.bf16.msra.mxu0 %v3186
    %5551 = vmatprep.subr.bf16.mxu0 %v3179
    %5552 = vmatpush1.bf16.msra.mxu0 %v3178
    %5553 = vmatprep.subr.bf16.mxu0 %v3299
    %5554 = vmatpush2.bf16.msra.mxu0 %v3298
    %5555 = vmatprep.subr.bf16.mxu0 %v3291
    %5556 = vmatpush2.bf16.msra.mxu0 %v3290
    %5557 = vmatprep.subr.bf16.mxu0 %v3283
    %5558 = vmatpush2.bf16.msra.mxu0 %v3282
    %5559 = vmatprep.subr.bf16.mxu0 %v3275
    %5560 = vmatpush2.bf16.msra.mxu0 %v3274
    %5561 = vmatprep.subr.bf16.mxu0 %v3267
    %5562 = vmatpush2.bf16.msra.mxu0 %v3266
    %5563 = vmatprep.subr.bf16.mxu0 %v3259
    %5564 = vmatpush2.bf16.msra.mxu0 %v3258
    %5565 = vmatprep.subr.bf16.mxu0 %v3251
    %5566 = vmatpush2.bf16.msra.mxu0 %v3250
    %5567 = vmatprep.subr.bf16.mxu0 %v3243
    %5568 = vmatpush2.bf16.msra.mxu0 %v3242
    %5569 = vmatprep.mubr.bf16.mxu0 %v893
    %5570 = vmatmul.mubr.bf16.gmra.mxu0 %v892
    %v5571 = vpop.f32.mrf.mxu0
    %v5572 = vadd.f32 %v5459, %v5571
    %v5573 = vpop.f32.mrf.mxu0
    %v5574 = vadd.f32 %v5461, %v5573
    %v5575 = vpop.f32.mrf.mxu0
    %v5576 = vadd.f32 %v5463, %v5575
    %v5577 = vpop.f32.mrf.mxu0
    %v5578 = vadd.f32 %v5465, %v5577
    %5579 = vmatprep.mubr.bf16.mxu0 %v901
    %5580 = vmatmul.mubr.bf16.gmra.mxu0 %v900
    %v5581 = vpop.f32.mrf.mxu0
    %v5582 = vadd.f32 %v5469, %v5581
    %v5583 = vpop.f32.mrf.mxu0
    %v5584 = vadd.f32 %v5471, %v5583
    %v5585 = vpop.f32.mrf.mxu0
    %v5586 = vadd.f32 %v5473, %v5585
    %v5587 = vpop.f32.mrf.mxu0
    %v5588 = vadd.f32 %v5475, %v5587
    %5589 = vmatprep.mubr.bf16.mxu0 %v909
    %5590 = vmatmul.mubr.bf16.gmra.mxu0 %v908
    %v5591 = vpop.f32.mrf.mxu0
    %v5592 = vadd.f32 %v5479, %v5591
    %v5593 = vpop.f32.mrf.mxu0
    %v5594 = vadd.f32 %v5481, %v5593
    %v5595 = vpop.f32.mrf.mxu0
    %v5596 = vadd.f32 %v5483, %v5595
    %v5597 = vpop.f32.mrf.mxu0
    %v5598 = vadd.f32 %v5485, %v5597
    %5599 = vmatprep.mubr.bf16.mxu0 %v917
    %5600 = vmatmul.mubr.bf16.gmra.mxu0 %v916
    %v5601 = vpop.f32.mrf.mxu0
    %v5602 = vadd.f32 %v5489, %v5601
    %v5603 = vpop.f32.mrf.mxu0
    %v5604 = vadd.f32 %v5491, %v5603
    %v5605 = vpop.f32.mrf.mxu0
    %v5606 = vadd.f32 %v5493, %v5605
    %v5607 = vpop.f32.mrf.mxu0
    %v5608 = vadd.f32 %v5495, %v5607
    %5609 = vmatprep.mubr.bf16.mxu0 %v925
    %5610 = vmatmul.mubr.bf16.gmra.mxu0 %v924
    %v5611 = vpop.f32.mrf.mxu0
    %v5612 = vadd.f32 %v5499, %v5611
    %v5613 = vpop.f32.mrf.mxu0
    %v5614 = vadd.f32 %v5501, %v5613
    %v5615 = vpop.f32.mrf.mxu0
    %v5616 = vadd.f32 %v5503, %v5615
    %v5617 = vpop.f32.mrf.mxu0
    %v5618 = vadd.f32 %v5505, %v5617
    %5619 = vmatprep.mubr.bf16.mxu0 %v933
    %5620 = vmatmul.mubr.bf16.gmra.mxu0 %v932
    %v5621 = vpop.f32.mrf.mxu0
    %v5622 = vadd.f32 %v5509, %v5621
    %v5623 = vpop.f32.mrf.mxu0
    %v5624 = vadd.f32 %v5511, %v5623
    %v5625 = vpop.f32.mrf.mxu0
    %v5626 = vadd.f32 %v5513, %v5625
    %v5627 = vpop.f32.mrf.mxu0
    %v5628 = vadd.f32 %v5515, %v5627
    %5629 = vmatprep.mubr.bf16.mxu0 %v941
    %5630 = vmatmul.mubr.bf16.gmra.mxu0 %v940
    %v5631 = vpop.f32.mrf.mxu0
    %v5632 = vadd.f32 %v5519, %v5631
    %v5633 = vpop.f32.mrf.mxu0
    %v5634 = vadd.f32 %v5521, %v5633
    %v5635 = vpop.f32.mrf.mxu0
    %v5636 = vadd.f32 %v5523, %v5635
    %v5637 = vpop.f32.mrf.mxu0
    %v5638 = vadd.f32 %v5525, %v5637
    %5639 = vmatprep.mubr.bf16.mxu0 %v949
    %5640 = vmatmul.mubr.bf16.gmra.mxu0 %v948
    %v5641 = vpop.f32.mrf.mxu0
    %v5642 = vadd.f32 %v5529, %v5641
    %v5643 = vpop.f32.mrf.mxu0
    %v5644 = vadd.f32 %v5531, %v5643
    %v5645 = vpop.f32.mrf.mxu0
    %v5646 = vadd.f32 %v5533, %v5645
    %v5647 = vpop.f32.mrf.mxu0
    %v5648 = vadd.f32 %v5535, %v5647
    %5649 = vdwg.mxu0
    %5650 = vmatprep.subr.bf16.mxu0 %v3363
    %5651 = vmatpush1.bf16.msra.mxu0 %v3362
    %5652 = vmatprep.subr.bf16.mxu0 %v3355
    %5653 = vmatpush1.bf16.msra.mxu0 %v3354
    %5654 = vmatprep.subr.bf16.mxu0 %v3347
    %5655 = vmatpush1.bf16.msra.mxu0 %v3346
    %5656 = vmatprep.subr.bf16.mxu0 %v3339
    %5657 = vmatpush1.bf16.msra.mxu0 %v3338
    %5658 = vmatprep.subr.bf16.mxu0 %v3331
    %5659 = vmatpush1.bf16.msra.mxu0 %v3330
    %5660 = vmatprep.subr.bf16.mxu0 %v3323
    %5661 = vmatpush1.bf16.msra.mxu0 %v3322
    %5662 = vmatprep.subr.bf16.mxu0 %v3315
    %5663 = vmatpush1.bf16.msra.mxu0 %v3314
    %5664 = vmatprep.subr.bf16.mxu0 %v3307
    %5665 = vmatpush1.bf16.msra.mxu0 %v3306
    %5666 = vmatprep.subr.bf16.mxu0 %v3427
    %5667 = vmatpush2.bf16.msra.mxu0 %v3426
    %5668 = vmatprep.subr.bf16.mxu0 %v3419
    %5669 = vmatpush2.bf16.msra.mxu0 %v3418
    %5670 = vmatprep.subr.bf16.mxu0 %v3411
    %5671 = vmatpush2.bf16.msra.mxu0 %v3410
    %5672 = vmatprep.subr.bf16.mxu0 %v3403
    %5673 = vmatpush2.bf16.msra.mxu0 %v3402
    %5674 = vmatprep.subr.bf16.mxu0 %v3395
    %5675 = vmatpush2.bf16.msra.mxu0 %v3394
    %5676 = vmatprep.subr.bf16.mxu0 %v3387
    %5677 = vmatpush2.bf16.msra.mxu0 %v3386
    %5678 = vmatprep.subr.bf16.mxu0 %v3379
    %5679 = vmatpush2.bf16.msra.mxu0 %v3378
    %5680 = vmatprep.subr.bf16.mxu0 %v3371
    %5681 = vmatpush2.bf16.msra.mxu0 %v3370
    %5682 = vmatprep.mubr.bf16.mxu0 %v895
    %5683 = vmatmul.mubr.bf16.gmra.mxu0 %v894
    %v5684 = vpop.f32.mrf.mxu0
    %v5685 = vadd.f32 %v5572, %v5684
    %v5686 = vpop.f32.mrf.mxu0
    %v5687 = vadd.f32 %v5574, %v5686
    %v5688 = vpop.f32.mrf.mxu0
    %v5689 = vadd.f32 %v5576, %v5688
    %v5690 = vpop.f32.mrf.mxu0
    %v5691 = vadd.f32 %v5578, %v5690
    %5692 = vmatprep.mubr.bf16.mxu0 %v903
    %5693 = vmatmul.mubr.bf16.gmra.mxu0 %v902
    %v5694 = vpop.f32.mrf.mxu0
    %v5695 = vadd.f32 %v5582, %v5694
    %v5696 = vpop.f32.mrf.mxu0
    %v5697 = vadd.f32 %v5584, %v5696
    %v5698 = vpop.f32.mrf.mxu0
    %v5699 = vadd.f32 %v5586, %v5698
    %v5700 = vpop.f32.mrf.mxu0
    %v5701 = vadd.f32 %v5588, %v5700
    %5702 = vmatprep.mubr.bf16.mxu0 %v911
    %5703 = vmatmul.mubr.bf16.gmra.mxu0 %v910
    %v5704 = vpop.f32.mrf.mxu0
    %v5705 = vadd.f32 %v5592, %v5704
    %v5706 = vpop.f32.mrf.mxu0
    %v5707 = vadd.f32 %v5594, %v5706
    %v5708 = vpop.f32.mrf.mxu0
    %v5709 = vadd.f32 %v5596, %v5708
    %v5710 = vpop.f32.mrf.mxu0
    %v5711 = vadd.f32 %v5598, %v5710
    %5712 = vmatprep.mubr.bf16.mxu0 %v919
    %5713 = vmatmul.mubr.bf16.gmra.mxu0 %v918
    %v5714 = vpop.f32.mrf.mxu0
    %v5715 = vadd.f32 %v5602, %v5714
    %v5716 = vpop.f32.mrf.mxu0
    %v5717 = vadd.f32 %v5604, %v5716
    %v5718 = vpop.f32.mrf.mxu0
    %v5719 = vadd.f32 %v5606, %v5718
    %v5720 = vpop.f32.mrf.mxu0
    %v5721 = vadd.f32 %v5608, %v5720
    %5722 = vmatprep.mubr.bf16.mxu0 %v927
    %5723 = vmatmul.mubr.bf16.gmra.mxu0 %v926
    %v5724 = vpop.f32.mrf.mxu0
    %v5725 = vadd.f32 %v5612, %v5724
    %v5726 = vpop.f32.mrf.mxu0
    %v5727 = vadd.f32 %v5614, %v5726
    %v5728 = vpop.f32.mrf.mxu0
    %v5729 = vadd.f32 %v5616, %v5728
    %v5730 = vpop.f32.mrf.mxu0
    %v5731 = vadd.f32 %v5618, %v5730
    %5732 = vmatprep.mubr.bf16.mxu0 %v935
    %5733 = vmatmul.mubr.bf16.gmra.mxu0 %v934
    %v5734 = vpop.f32.mrf.mxu0
    %v5735 = vadd.f32 %v5622, %v5734
    %v5736 = vpop.f32.mrf.mxu0
    %v5737 = vadd.f32 %v5624, %v5736
    %v5738 = vpop.f32.mrf.mxu0
    %v5739 = vadd.f32 %v5626, %v5738
    %v5740 = vpop.f32.mrf.mxu0
    %v5741 = vadd.f32 %v5628, %v5740
    %5742 = vmatprep.mubr.bf16.mxu0 %v943
    %5743 = vmatmul.mubr.bf16.gmra.mxu0 %v942
    %v5744 = vpop.f32.mrf.mxu0
    %v5745 = vadd.f32 %v5632, %v5744
    %v5746 = vpop.f32.mrf.mxu0
    %v5747 = vadd.f32 %v5634, %v5746
    %v5748 = vpop.f32.mrf.mxu0
    %v5749 = vadd.f32 %v5636, %v5748
    %v5750 = vpop.f32.mrf.mxu0
    %v5751 = vadd.f32 %v5638, %v5750
    %5752 = vmatprep.mubr.bf16.mxu0 %v951
    %5753 = vmatmul.mubr.bf16.gmra.mxu0 %v950
    %v5754 = vpop.f32.mrf.mxu0
    %v5755 = vadd.f32 %v5642, %v5754
    %v5756 = vpop.f32.mrf.mxu0
    %v5757 = vadd.f32 %v5644, %v5756
    %v5758 = vpop.f32.mrf.mxu0
    %v5759 = vadd.f32 %v5646, %v5758
    %v5760 = vpop.f32.mrf.mxu0
    %v5761 = vadd.f32 %v5648, %v5760
    %5762 = vdwg.mxu0
    %5763 = vmatprep.subr.bf16.mxu0 %v3491
    %5764 = vmatpush1.bf16.msra.mxu0 %v3490
    %5765 = vmatprep.subr.bf16.mxu0 %v3483
    %5766 = vmatpush1.bf16.msra.mxu0 %v3482
    %5767 = vmatprep.subr.bf16.mxu0 %v3475
    %5768 = vmatpush1.bf16.msra.mxu0 %v3474
    %5769 = vmatprep.subr.bf16.mxu0 %v3467
    %5770 = vmatpush1.bf16.msra.mxu0 %v3466
    %5771 = vmatprep.subr.bf16.mxu0 %v3459
    %5772 = vmatpush1.bf16.msra.mxu0 %v3458
    %5773 = vmatprep.subr.bf16.mxu0 %v3451
    %5774 = vmatpush1.bf16.msra.mxu0 %v3450
    %5775 = vmatprep.subr.bf16.mxu0 %v3443
    %5776 = vmatpush1.bf16.msra.mxu0 %v3442
    %5777 = vmatprep.subr.bf16.mxu0 %v3435
    %5778 = vmatpush1.bf16.msra.mxu0 %v3434
    %5779 = vmatprep.subr.bf16.mxu0 %v3555
    %5780 = vmatpush2.bf16.msra.mxu0 %v3554
    %5781 = vmatprep.subr.bf16.mxu0 %v3547
    %5782 = vmatpush2.bf16.msra.mxu0 %v3546
    %5783 = vmatprep.subr.bf16.mxu0 %v3539
    %5784 = vmatpush2.bf16.msra.mxu0 %v3538
    %5785 = vmatprep.subr.bf16.mxu0 %v3531
    %5786 = vmatpush2.bf16.msra.mxu0 %v3530
    %5787 = vmatprep.subr.bf16.mxu0 %v3523
    %5788 = vmatpush2.bf16.msra.mxu0 %v3522
    %5789 = vmatprep.subr.bf16.mxu0 %v3515
    %5790 = vmatpush2.bf16.msra.mxu0 %v3514
    %5791 = vmatprep.subr.bf16.mxu0 %v3507
    %5792 = vmatpush2.bf16.msra.mxu0 %v3506
    %5793 = vmatprep.subr.bf16.mxu0 %v3499
    %5794 = vmatpush2.bf16.msra.mxu0 %v3498
    %5795 = vmatprep.mubr.bf16.mxu0 %v897
    %5796 = vmatmul.mubr.bf16.gmra.mxu0 %v896
    %v5797 = vpop.f32.mrf.mxu0
    %v5798 = vadd.f32 %v5685, %v5797
    %v5799 = vpop.f32.mrf.mxu0
    %v5800 = vadd.f32 %v5687, %v5799
    %v5801 = vpop.f32.mrf.mxu0
    %v5802 = vadd.f32 %v5689, %v5801
    %v5803 = vpop.f32.mrf.mxu0
    %v5804 = vadd.f32 %v5691, %v5803
    %5805 = vmatprep.mubr.bf16.mxu0 %v905
    %5806 = vmatmul.mubr.bf16.gmra.mxu0 %v904
    %v5807 = vpop.f32.mrf.mxu0
    %v5808 = vadd.f32 %v5695, %v5807
    %v5809 = vpop.f32.mrf.mxu0
    %v5810 = vadd.f32 %v5697, %v5809
    %v5811 = vpop.f32.mrf.mxu0
    %v5812 = vadd.f32 %v5699, %v5811
    %v5813 = vpop.f32.mrf.mxu0
    %v5814 = vadd.f32 %v5701, %v5813
    %5815 = vmatprep.mubr.bf16.mxu0 %v913
    %5816 = vmatmul.mubr.bf16.gmra.mxu0 %v912
    %v5817 = vpop.f32.mrf.mxu0
    %v5818 = vadd.f32 %v5705, %v5817
    %v5819 = vpop.f32.mrf.mxu0
    %v5820 = vadd.f32 %v5707, %v5819
    %v5821 = vpop.f32.mrf.mxu0
    %v5822 = vadd.f32 %v5709, %v5821
    %v5823 = vpop.f32.mrf.mxu0
    %v5824 = vadd.f32 %v5711, %v5823
    %5825 = vmatprep.mubr.bf16.mxu0 %v921
    %5826 = vmatmul.mubr.bf16.gmra.mxu0 %v920
    %v5827 = vpop.f32.mrf.mxu0
    %v5828 = vadd.f32 %v5715, %v5827
    %v5829 = vpop.f32.mrf.mxu0
    %v5830 = vadd.f32 %v5717, %v5829
    %v5831 = vpop.f32.mrf.mxu0
    %v5832 = vadd.f32 %v5719, %v5831
    %v5833 = vpop.f32.mrf.mxu0
    %v5834 = vadd.f32 %v5721, %v5833
    %5835 = vmatprep.mubr.bf16.mxu0 %v929
    %5836 = vmatmul.mubr.bf16.gmra.mxu0 %v928
    %v5837 = vpop.f32.mrf.mxu0
    %v5838 = vadd.f32 %v5725, %v5837
    %v5839 = vpop.f32.mrf.mxu0
    %v5840 = vadd.f32 %v5727, %v5839
    %v5841 = vpop.f32.mrf.mxu0
    %v5842 = vadd.f32 %v5729, %v5841
    %v5843 = vpop.f32.mrf.mxu0
    %v5844 = vadd.f32 %v5731, %v5843
    %5845 = vmatprep.mubr.bf16.mxu0 %v937
    %5846 = vmatmul.mubr.bf16.gmra.mxu0 %v936
    %v5847 = vpop.f32.mrf.mxu0
    %v5848 = vadd.f32 %v5735, %v5847
    %v5849 = vpop.f32.mrf.mxu0
    %v5850 = vadd.f32 %v5737, %v5849
    %v5851 = vpop.f32.mrf.mxu0
    %v5852 = vadd.f32 %v5739, %v5851
    %v5853 = vpop.f32.mrf.mxu0
    %v5854 = vadd.f32 %v5741, %v5853
    %5855 = vmatprep.mubr.bf16.mxu0 %v945
    %5856 = vmatmul.mubr.bf16.gmra.mxu0 %v944
    %v5857 = vpop.f32.mrf.mxu0
    %v5858 = vadd.f32 %v5745, %v5857
    %v5859 = vpop.f32.mrf.mxu0
    %v5860 = vadd.f32 %v5747, %v5859
    %v5861 = vpop.f32.mrf.mxu0
    %v5862 = vadd.f32 %v5749, %v5861
    %v5863 = vpop.f32.mrf.mxu0
    %v5864 = vadd.f32 %v5751, %v5863
    %5865 = vmatprep.mubr.bf16.mxu0 %v953
    %5866 = vmatmul.mubr.bf16.gmra.mxu0 %v952
    %v5867 = vpop.f32.mrf.mxu0
    %v5868 = vadd.f32 %v5755, %v5867
    %v5869 = vpop.f32.mrf.mxu0
    %v5870 = vadd.f32 %v5757, %v5869
    %v5871 = vpop.f32.mrf.mxu0
    %v5872 = vadd.f32 %v5759, %v5871
    %v5873 = vpop.f32.mrf.mxu0
    %v5874 = vadd.f32 %v5761, %v5873
    %5875 = vdwg.mxu0
    %v5876 = vmax.f32 %v4442, 0.0
    %v5877 = vmax.f32 %v4444, 0.0
    %v5878 = vmax.f32 %v4894, 0.0
    %v5879 = vmax.f32 %v4896, 0.0
    %v5880 = vmax.f32 %v5346, 0.0
    %v5881 = vmax.f32 %v5348, 0.0
    %v5882 = vmax.f32 %v5798, 0.0
    %v5883 = vmax.f32 %v5800, 0.0
    %v5884 = vmax.f32 %v4446, 0.0
    %v5885 = vmax.f32 %v4448, 0.0
    %v5886 = vmax.f32 %v4898, 0.0
    %v5887 = vmax.f32 %v4900, 0.0
    %v5888 = vmax.f32 %v5350, 0.0
    %v5889 = vmax.f32 %v5352, 0.0
    %v5890 = vmax.f32 %v5802, 0.0
    %v5891 = vmax.f32 %v5804, 0.0
    %v5892 = vmax.f32 %v4452, 0.0
    %v5893 = vmax.f32 %v4454, 0.0
    %v5894 = vmax.f32 %v4904, 0.0
    %v5895 = vmax.f32 %v4906, 0.0
    %v5896 = vmax.f32 %v5356, 0.0
    %v5897 = vmax.f32 %v5358, 0.0
    %v5898 = vmax.f32 %v5808, 0.0
    %v5899 = vmax.f32 %v5810, 0.0
    %v5900 = vmax.f32 %v4456, 0.0
    %v5901 = vmax.f32 %v4458, 0.0
    %v5902 = vmax.f32 %v4908, 0.0
    %v5903 = vmax.f32 %v4910, 0.0
    %v5904 = vmax.f32 %v5360, 0.0
    %v5905 = vmax.f32 %v5362, 0.0
    %v5906 = vmax.f32 %v5812, 0.0
    %v5907 = vmax.f32 %v5814, 0.0
    %v5908 = vmax.f32 %v4462, 0.0
    %v5909 = vmax.f32 %v4464, 0.0
    %v5910 = vmax.f32 %v4914, 0.0
    %v5911 = vmax.f32 %v4916, 0.0
    %v5912 = vmax.f32 %v5366, 0.0
    %v5913 = vmax.f32 %v5368, 0.0
    %v5914 = vmax.f32 %v5818, 0.0
    %v5915 = vmax.f32 %v5820, 0.0
    %v5916 = vmax.f32 %v4466, 0.0
    %v5917 = vmax.f32 %v4468, 0.0
    %v5918 = vmax.f32 %v4918, 0.0
    %v5919 = vmax.f32 %v4920, 0.0
    %v5920 = vmax.f32 %v5370, 0.0
    %v5921 = vmax.f32 %v5372, 0.0
    %v5922 = vmax.f32 %v5822, 0.0
    %v5923 = vmax.f32 %v5824, 0.0
    %v5924 = vmax.f32 %v4472, 0.0
    %v5925 = vmax.f32 %v4474, 0.0
    %v5926 = vmax.f32 %v4924, 0.0
    %v5927 = vmax.f32 %v4926, 0.0
    %v5928 = vmax.f32 %v5376, 0.0
    %v5929 = vmax.f32 %v5378, 0.0
    %v5930 = vmax.f32 %v5828, 0.0
    %v5931 = vmax.f32 %v5830, 0.0
    %v5932 = vmax.f32 %v4476, 0.0
    %v5933 = vmax.f32 %v4478, 0.0
    %v5934 = vmax.f32 %v4928, 0.0
    %v5935 = vmax.f32 %v4930, 0.0
    %v5936 = vmax.f32 %v5380, 0.0
    %v5937 = vmax.f32 %v5382, 0.0
    %v5938 = vmax.f32 %v5832, 0.0
    %v5939 = vmax.f32 %v5834, 0.0
    %v5940 = vmax.f32 %v4482, 0.0
    %v5941 = vmax.f32 %v4484, 0.0
    %v5942 = vmax.f32 %v4934, 0.0
    %v5943 = vmax.f32 %v4936, 0.0
    %v5944 = vmax.f32 %v5386, 0.0
    %v5945 = vmax.f32 %v5388, 0.0
    %v5946 = vmax.f32 %v5838, 0.0
    %v5947 = vmax.f32 %v5840, 0.0
    %v5948 = vmax.f32 %v4486, 0.0
    %v5949 = vmax.f32 %v4488, 0.0
    %v5950 = vmax.f32 %v4938, 0.0
    %v5951 = vmax.f32 %v4940, 0.0
    %v5952 = vmax.f32 %v5390, 0.0
    %v5953 = vmax.f32 %v5392, 0.0
    %v5954 = vmax.f32 %v5842, 0.0
    %v5955 = vmax.f32 %v5844, 0.0
    %v5956 = vmax.f32 %v4492, 0.0
    %v5957 = vmax.f32 %v4494, 0.0
    %v5958 = vmax.f32 %v4944, 0.0
    %v5959 = vmax.f32 %v4946, 0.0
    %v5960 = vmax.f32 %v5396, 0.0
    %v5961 = vmax.f32 %v5398, 0.0
    %v5962 = vmax.f32 %v5848, 0.0
    %v5963 = vmax.f32 %v5850, 0.0
    %v5964 = vmax.f32 %v4496, 0.0
    %v5965 = vmax.f32 %v4498, 0.0
    %v5966 = vmax.f32 %v4948, 0.0
    %v5967 = vmax.f32 %v4950, 0.0
    %v5968 = vmax.f32 %v5400, 0.0
    %v5969 = vmax.f32 %v5402, 0.0
    %v5970 = vmax.f32 %v5852, 0.0
    %v5971 = vmax.f32 %v5854, 0.0
    %v5972 = vmax.f32 %v4502, 0.0
    %v5973 = vmax.f32 %v4504, 0.0
    %v5974 = vmax.f32 %v4954, 0.0
    %v5975 = vmax.f32 %v4956, 0.0
    %v5976 = vmax.f32 %v5406, 0.0
    %v5977 = vmax.f32 %v5408, 0.0
    %v5978 = vmax.f32 %v5858, 0.0
    %v5979 = vmax.f32 %v5860, 0.0
    %v5980 = vmax.f32 %v4506, 0.0
    %v5981 = vmax.f32 %v4508, 0.0
    %v5982 = vmax.f32 %v4958, 0.0
    %v5983 = vmax.f32 %v4960, 0.0
    %v5984 = vmax.f32 %v5410, 0.0
    %v5985 = vmax.f32 %v5412, 0.0
    %v5986 = vmax.f32 %v5862, 0.0
    %v5987 = vmax.f32 %v5864, 0.0
    %v5988 = vmax.f32 %v4512, 0.0
    %v5989 = vmax.f32 %v4514, 0.0
    %v5990 = vmax.f32 %v4964, 0.0
    %v5991 = vmax.f32 %v4966, 0.0
    %v5992 = vmax.f32 %v5416, 0.0
    %v5993 = vmax.f32 %v5418, 0.0
    %v5994 = vmax.f32 %v5868, 0.0
    %v5995 = vmax.f32 %v5870, 0.0
    %v5996 = vmax.f32 %v4516, 0.0
    %v5997 = vmax.f32 %v4518, 0.0
    %v5998 = vmax.f32 %v4968, 0.0
    %v5999 = vmax.f32 %v4970, 0.0
    %v6000 = vmax.f32 %v5420, 0.0
    %v6001 = vmax.f32 %v5422, 0.0
    %v6002 = vmax.f32 %v5872, 0.0
    %v6003 = vmax.f32 %v5874, 0.0
    %v6004 = vld [vmem:[#allocation11] sm:$0xff]
    %v6005 = vunpack.c.l.bf16 %v6004
    %v6006 = vunpack.c.h.bf16 %v6004
    %v6009 = vlaneseq
    %v6010 = vshrl.u32 %v6009, 7
    %v6011 = vsub.s32 0, %v6010
    %v6012 = vrot.slane %v6005, %v6011
    %v6013 = vlaneseq
    %v6014 = vshrl.u32 %v6013, 7
    %v6015 = vsub.s32 2, %v6014
    %v6016 = vrot.slane %v6005, %v6015
    %v6017 = vlaneseq
    %v6018 = vshrl.u32 %v6017, 7
    %v6019 = vsub.s32 4, %v6018
    %v6020 = vrot.slane %v6005, %v6019
    %v6021 = vlaneseq
    %v6022 = vshrl.u32 %v6021, 7
    %v6023 = vsub.s32 6, %v6022
    %v6024 = vrot.slane %v6005, %v6023
    %v6025 = vlaneseq
    %v6026 = vshrl.u32 %v6025, 7
    %v6027 = vsub.s32 0, %v6026
    %v6028 = vrot.slane %v6006, %v6027
    %v6029 = vlaneseq
    %v6030 = vshrl.u32 %v6029, 7
    %v6031 = vsub.s32 2, %v6030
    %v6032 = vrot.slane %v6006, %v6031
    %v6033 = vlaneseq
    %v6034 = vshrl.u32 %v6033, 7
    %v6035 = vsub.s32 4, %v6034
    %v6036 = vrot.slane %v6006, %v6035
    %v6037 = vlaneseq
    %v6038 = vshrl.u32 %v6037, 7
    %v6039 = vsub.s32 6, %v6038
    %v6040 = vrot.slane %v6006, %v6039
    %v6049 = vlaneseq
    %v6050 = vshrl.u32 %v6049, 7
    %v6051 = vsub.s32 0, %v6050
    %v6052 = vrot.slane %v6012, %v6051
    %v6053 = vlaneseq
    %v6054 = vshrl.u32 %v6053, 7
    %v6055 = vsub.s32 0, %v6054
    %v6056 = vrot.slane %v6016, %v6055
    %v6057 = vlaneseq
    %v6058 = vshrl.u32 %v6057, 7
    %v6059 = vsub.s32 0, %v6058
    %v6060 = vrot.slane %v6020, %v6059
    %v6061 = vlaneseq
    %v6062 = vshrl.u32 %v6061, 7
    %v6063 = vsub.s32 0, %v6062
    %v6064 = vrot.slane %v6024, %v6063
    %v6065 = vlaneseq
    %v6066 = vshrl.u32 %v6065, 7
    %v6067 = vsub.s32 0, %v6066
    %v6068 = vrot.slane %v6028, %v6067
    %v6069 = vlaneseq
    %v6070 = vshrl.u32 %v6069, 7
    %v6071 = vsub.s32 0, %v6070
    %v6072 = vrot.slane %v6032, %v6071
    %v6073 = vlaneseq
    %v6074 = vshrl.u32 %v6073, 7
    %v6075 = vsub.s32 0, %v6074
    %v6076 = vrot.slane %v6036, %v6075
    %v6077 = vlaneseq
    %v6078 = vshrl.u32 %v6077, 7
    %v6079 = vsub.s32 0, %v6078
    %v6080 = vrot.slane %v6040, %v6079
    %v6081 = vmul.f32 %v5876, %v6052
    %v6082 = vmul.f32 %v5877, %v6056
    %v6083 = vmul.f32 %v5878, %v6060
    %v6084 = vmul.f32 %v5879, %v6064
    %v6085 = vmul.f32 %v5880, %v6068
    %v6086 = vmul.f32 %v5881, %v6072
    %v6087 = vmul.f32 %v5882, %v6076
    %v6088 = vmul.f32 %v5883, %v6080
    %v6089 = vmul.f32 %v5884, %v6052
    %v6090 = vmul.f32 %v5885, %v6056
    %v6091 = vmul.f32 %v5886, %v6060
    %v6092 = vmul.f32 %v5887, %v6064
    %v6093 = vmul.f32 %v5888, %v6068
    %v6094 = vmul.f32 %v5889, %v6072
    %v6095 = vmul.f32 %v5890, %v6076
    %v6096 = vmul.f32 %v5891, %v6080
    %v6097 = vmul.f32 %v5892, %v6052
    %v6098 = vmul.f32 %v5893, %v6056
    %v6099 = vmul.f32 %v5894, %v6060
    %v6100 = vmul.f32 %v5895, %v6064
    %v6101 = vmul.f32 %v5896, %v6068
    %v6102 = vmul.f32 %v5897, %v6072
    %v6103 = vmul.f32 %v5898, %v6076
    %v6104 = vmul.f32 %v5899, %v6080
    %v6105 = vmul.f32 %v5900, %v6052
    %v6106 = vmul.f32 %v5901, %v6056
    %v6107 = vmul.f32 %v5902, %v6060
    %v6108 = vmul.f32 %v5903, %v6064
    %v6109 = vmul.f32 %v5904, %v6068
    %v6110 = vmul.f32 %v5905, %v6072
    %v6111 = vmul.f32 %v5906, %v6076
    %v6112 = vmul.f32 %v5907, %v6080
    %v6113 = vmul.f32 %v5908, %v6052
    %v6114 = vmul.f32 %v5909, %v6056
    %v6115 = vmul.f32 %v5910, %v6060
    %v6116 = vmul.f32 %v5911, %v6064
    %v6117 = vmul.f32 %v5912, %v6068
    %v6118 = vmul.f32 %v5913, %v6072
    %v6119 = vmul.f32 %v5914, %v6076
    %v6120 = vmul.f32 %v5915, %v6080
    %v6121 = vmul.f32 %v5916, %v6052
    %v6122 = vmul.f32 %v5917, %v6056
    %v6123 = vmul.f32 %v5918, %v6060
    %v6124 = vmul.f32 %v5919, %v6064
    %v6125 = vmul.f32 %v5920, %v6068
    %v6126 = vmul.f32 %v5921, %v6072
    %v6127 = vmul.f32 %v5922, %v6076
    %v6128 = vmul.f32 %v5923, %v6080
    %v6129 = vmul.f32 %v5924, %v6052
    %v6130 = vmul.f32 %v5925, %v6056
    %v6131 = vmul.f32 %v5926, %v6060
    %v6132 = vmul.f32 %v5927, %v6064
    %v6133 = vmul.f32 %v5928, %v6068
    %v6134 = vmul.f32 %v5929, %v6072
    %v6135 = vmul.f32 %v5930, %v6076
    %v6136 = vmul.f32 %v5931, %v6080
    %v6137 = vmul.f32 %v5932, %v6052
    %v6138 = vmul.f32 %v5933, %v6056
    %v6139 = vmul.f32 %v5934, %v6060
    %v6140 = vmul.f32 %v5935, %v6064
    %v6141 = vmul.f32 %v5936, %v6068
    %v6142 = vmul.f32 %v5937, %v6072
    %v6143 = vmul.f32 %v5938, %v6076
    %v6144 = vmul.f32 %v5939, %v6080
    %v6145 = vmul.f32 %v5940, %v6052
    %v6146 = vmul.f32 %v5941, %v6056
    %v6147 = vmul.f32 %v5942, %v6060
    %v6148 = vmul.f32 %v5943, %v6064
    %v6149 = vmul.f32 %v5944, %v6068
    %v6150 = vmul.f32 %v5945, %v6072
    %v6151 = vmul.f32 %v5946, %v6076
    %v6152 = vmul.f32 %v5947, %v6080
    %v6153 = vmul.f32 %v5948, %v6052
    %v6154 = vmul.f32 %v5949, %v6056
    %v6155 = vmul.f32 %v5950, %v6060
    %v6156 = vmul.f32 %v5951, %v6064
    %v6157 = vmul.f32 %v5952, %v6068
    %v6158 = vmul.f32 %v5953, %v6072
    %v6159 = vmul.f32 %v5954, %v6076
    %v6160 = vmul.f32 %v5955, %v6080
    %v6161 = vmul.f32 %v5956, %v6052
    %v6162 = vmul.f32 %v5957, %v6056
    %v6163 = vmul.f32 %v5958, %v6060
    %v6164 = vmul.f32 %v5959, %v6064
    %v6165 = vmul.f32 %v5960, %v6068
    %v6166 = vmul.f32 %v5961, %v6072
    %v6167 = vmul.f32 %v5962, %v6076
    %v6168 = vmul.f32 %v5963, %v6080
    %v6169 = vmul.f32 %v5964, %v6052
    %v6170 = vmul.f32 %v5965, %v6056
    %v6171 = vmul.f32 %v5966, %v6060
    %v6172 = vmul.f32 %v5967, %v6064
    %v6173 = vmul.f32 %v5968, %v6068
    %v6174 = vmul.f32 %v5969, %v6072
    %v6175 = vmul.f32 %v5970, %v6076
    %v6176 = vmul.f32 %v5971, %v6080
    %v6177 = vmul.f32 %v5972, %v6052
    %v6178 = vmul.f32 %v5973, %v6056
    %v6179 = vmul.f32 %v5974, %v6060
    %v6180 = vmul.f32 %v5975, %v6064
    %v6181 = vmul.f32 %v5976, %v6068
    %v6182 = vmul.f32 %v5977, %v6072
    %v6183 = vmul.f32 %v5978, %v6076
    %v6184 = vmul.f32 %v5979, %v6080
    %v6185 = vmul.f32 %v5980, %v6052
    %v6186 = vmul.f32 %v5981, %v6056
    %v6187 = vmul.f32 %v5982, %v6060
    %v6188 = vmul.f32 %v5983, %v6064
    %v6189 = vmul.f32 %v5984, %v6068
    %v6190 = vmul.f32 %v5985, %v6072
    %v6191 = vmul.f32 %v5986, %v6076
    %v6192 = vmul.f32 %v5987, %v6080
    %v6193 = vmul.f32 %v5988, %v6052
    %v6194 = vmul.f32 %v5989, %v6056
    %v6195 = vmul.f32 %v5990, %v6060
    %v6196 = vmul.f32 %v5991, %v6064
    %v6197 = vmul.f32 %v5992, %v6068
    %v6198 = vmul.f32 %v5993, %v6072
    %v6199 = vmul.f32 %v5994, %v6076
    %v6200 = vmul.f32 %v5995, %v6080
    %v6201 = vmul.f32 %v5996, %v6052
    %v6202 = vmul.f32 %v5997, %v6056
    %v6203 = vmul.f32 %v5998, %v6060
    %v6204 = vmul.f32 %v5999, %v6064
    %v6205 = vmul.f32 %v6000, %v6068
    %v6206 = vmul.f32 %v6001, %v6072
    %v6207 = vmul.f32 %v6002, %v6076
    %v6208 = vmul.f32 %v6003, %v6080
    %v6209 = vadd.f32 %v6081, %v6082
    %v6210 = vadd.f32 %v6209, %v6083
    %v6211 = vadd.f32 %v6210, %v6084
    %v6212 = vadd.f32 %v6211, %v6085
    %v6213 = vadd.f32 %v6212, %v6086
    %v6214 = vadd.f32 %v6213, %v6087
    %v6215 = vadd.f32 %v6214, %v6088
    %6216 = vadd.xlane.f32.xlu0 %v6215
    %v6217 = vpop.xlane.xlu0 %6216
    %v6218 = vadd.f32 %v6089, %v6090
    %v6219 = vadd.f32 %v6218, %v6091
    %v6220 = vadd.f32 %v6219, %v6092
    %v6221 = vadd.f32 %v6220, %v6093
    %v6222 = vadd.f32 %v6221, %v6094
    %v6223 = vadd.f32 %v6222, %v6095
    %v6224 = vadd.f32 %v6223, %v6096
    %6225 = vadd.xlane.f32.xlu0 %v6224
    %v6226 = vpop.xlane.xlu0 %6225
    %v6227 = vadd.f32 %v6097, %v6098
    %v6228 = vadd.f32 %v6227, %v6099
    %v6229 = vadd.f32 %v6228, %v6100
    %v6230 = vadd.f32 %v6229, %v6101
    %v6231 = vadd.f32 %v6230, %v6102
    %v6232 = vadd.f32 %v6231, %v6103
    %v6233 = vadd.f32 %v6232, %v6104
    %6234 = vadd.xlane.f32.xlu0 %v6233
    %v6235 = vpop.xlane.xlu0 %6234
    %v6236 = vadd.f32 %v6105, %v6106
    %v6237 = vadd.f32 %v6236, %v6107
    %v6238 = vadd.f32 %v6237, %v6108
    %v6239 = vadd.f32 %v6238, %v6109
    %v6240 = vadd.f32 %v6239, %v6110
    %v6241 = vadd.f32 %v6240, %v6111
    %v6242 = vadd.f32 %v6241, %v6112
    %6243 = vadd.xlane.f32.xlu0 %v6242
    %v6244 = vpop.xlane.xlu0 %6243
    %v6245 = vadd.f32 %v6113, %v6114
    %v6246 = vadd.f32 %v6245, %v6115
    %v6247 = vadd.f32 %v6246, %v6116
    %v6248 = vadd.f32 %v6247, %v6117
    %v6249 = vadd.f32 %v6248, %v6118
    %v6250 = vadd.f32 %v6249, %v6119
    %v6251 = vadd.f32 %v6250, %v6120
    %6252 = vadd.xlane.f32.xlu0 %v6251
    %v6253 = vpop.xlane.xlu0 %6252
    %v6254 = vadd.f32 %v6121, %v6122
    %v6255 = vadd.f32 %v6254, %v6123
    %v6256 = vadd.f32 %v6255, %v6124
    %v6257 = vadd.f32 %v6256, %v6125
    %v6258 = vadd.f32 %v6257, %v6126
    %v6259 = vadd.f32 %v6258, %v6127
    %v6260 = vadd.f32 %v6259, %v6128
    %6261 = vadd.xlane.f32.xlu0 %v6260
    %v6262 = vpop.xlane.xlu0 %6261
    %v6263 = vadd.f32 %v6129, %v6130
    %v6264 = vadd.f32 %v6263, %v6131
    %v6265 = vadd.f32 %v6264, %v6132
    %v6266 = vadd.f32 %v6265, %v6133
    %v6267 = vadd.f32 %v6266, %v6134
    %v6268 = vadd.f32 %v6267, %v6135
    %v6269 = vadd.f32 %v6268, %v6136
    %6270 = vadd.xlane.f32.xlu0 %v6269
    %v6271 = vpop.xlane.xlu0 %6270
    %v6272 = vadd.f32 %v6137, %v6138
    %v6273 = vadd.f32 %v6272, %v6139
    %v6274 = vadd.f32 %v6273, %v6140
    %v6275 = vadd.f32 %v6274, %v6141
    %v6276 = vadd.f32 %v6275, %v6142
    %v6277 = vadd.f32 %v6276, %v6143
    %v6278 = vadd.f32 %v6277, %v6144
    %6279 = vadd.xlane.f32.xlu0 %v6278
    %v6280 = vpop.xlane.xlu0 %6279
    %v6281 = vadd.f32 %v6145, %v6146
    %v6282 = vadd.f32 %v6281, %v6147
    %v6283 = vadd.f32 %v6282, %v6148
    %v6284 = vadd.f32 %v6283, %v6149
    %v6285 = vadd.f32 %v6284, %v6150
    %v6286 = vadd.f32 %v6285, %v6151
    %v6287 = vadd.f32 %v6286, %v6152
    %6288 = vadd.xlane.f32.xlu0 %v6287
    %v6289 = vpop.xlane.xlu0 %6288
    %v6290 = vadd.f32 %v6153, %v6154
    %v6291 = vadd.f32 %v6290, %v6155
    %v6292 = vadd.f32 %v6291, %v6156
    %v6293 = vadd.f32 %v6292, %v6157
    %v6294 = vadd.f32 %v6293, %v6158
    %v6295 = vadd.f32 %v6294, %v6159
    %v6296 = vadd.f32 %v6295, %v6160
    %6297 = vadd.xlane.f32.xlu0 %v6296
    %v6298 = vpop.xlane.xlu0 %6297
    %v6299 = vadd.f32 %v6161, %v6162
    %v6300 = vadd.f32 %v6299, %v6163
    %v6301 = vadd.f32 %v6300, %v6164
    %v6302 = vadd.f32 %v6301, %v6165
    %v6303 = vadd.f32 %v6302, %v6166
    %v6304 = vadd.f32 %v6303, %v6167
    %v6305 = vadd.f32 %v6304, %v6168
    %6306 = vadd.xlane.f32.xlu0 %v6305
    %v6307 = vpop.xlane.xlu0 %6306
    %v6308 = vadd.f32 %v6169, %v6170
    %v6309 = vadd.f32 %v6308, %v6171
    %v6310 = vadd.f32 %v6309, %v6172
    %v6311 = vadd.f32 %v6310, %v6173
    %v6312 = vadd.f32 %v6311, %v6174
    %v6313 = vadd.f32 %v6312, %v6175
    %v6314 = vadd.f32 %v6313, %v6176
    %6315 = vadd.xlane.f32.xlu0 %v6314
    %v6316 = vpop.xlane.xlu0 %6315
    %v6317 = vadd.f32 %v6177, %v6178
    %v6318 = vadd.f32 %v6317, %v6179
    %v6319 = vadd.f32 %v6318, %v6180
    %v6320 = vadd.f32 %v6319, %v6181
    %v6321 = vadd.f32 %v6320, %v6182
    %v6322 = vadd.f32 %v6321, %v6183
    %v6323 = vadd.f32 %v6322, %v6184
    %6324 = vadd.xlane.f32.xlu0 %v6323
    %v6325 = vpop.xlane.xlu0 %6324
    %v6326 = vadd.f32 %v6185, %v6186
    %v6327 = vadd.f32 %v6326, %v6187
    %v6328 = vadd.f32 %v6327, %v6188
    %v6329 = vadd.f32 %v6328, %v6189
    %v6330 = vadd.f32 %v6329, %v6190
    %v6331 = vadd.f32 %v6330, %v6191
    %v6332 = vadd.f32 %v6331, %v6192
    %6333 = vadd.xlane.f32.xlu0 %v6332
    %v6334 = vpop.xlane.xlu0 %6333
    %v6335 = vadd.f32 %v6193, %v6194
    %v6336 = vadd.f32 %v6335, %v6195
    %v6337 = vadd.f32 %v6336, %v6196
    %v6338 = vadd.f32 %v6337, %v6197
    %v6339 = vadd.f32 %v6338, %v6198
    %v6340 = vadd.f32 %v6339, %v6199
    %v6341 = vadd.f32 %v6340, %v6200
    %6342 = vadd.xlane.f32.xlu0 %v6341
    %v6343 = vpop.xlane.xlu0 %6342
    %v6344 = vadd.f32 %v6201, %v6202
    %v6345 = vadd.f32 %v6344, %v6203
    %v6346 = vadd.f32 %v6345, %v6204
    %v6347 = vadd.f32 %v6346, %v6205
    %v6348 = vadd.f32 %v6347, %v6206
    %v6349 = vadd.f32 %v6348, %v6207
    %v6350 = vadd.f32 %v6349, %v6208
    %6351 = vadd.xlane.f32.xlu0 %v6350
    %v6352 = vpop.xlane.xlu0 %6351
    %s6353 = sld [smem:[#allocation2]]
    %v6354 = vstv %s6353
    %v6355 = vadd.f32 %v6217, %v6354
    %v6356 = vadd.f32 %v6226, %v6354
    %v6357 = vadd.f32 %v6235, %v6354
    %v6358 = vadd.f32 %v6244, %v6354
    %v6359 = vadd.f32 %v6253, %v6354
    %v6360 = vadd.f32 %v6262, %v6354
    %v6361 = vadd.f32 %v6271, %v6354
    %v6362 = vadd.f32 %v6280, %v6354
    %v6363 = vadd.f32 %v6289, %v6354
    %v6364 = vadd.f32 %v6298, %v6354
    %v6365 = vadd.f32 %v6307, %v6354
    %v6366 = vadd.f32 %v6316, %v6354
    %v6367 = vadd.f32 %v6325, %v6354
    %v6368 = vadd.f32 %v6334, %v6354
    %v6369 = vadd.f32 %v6343, %v6354
    %v6370 = vadd.f32 %v6352, %v6354
    %v6387 = vlaneseq
    %v6388 = vand.u32 %v6387, 127
    %v6389 = vlaneseq
    %v6390 = vshrl.u32 %v6389, 7
    %v6391 = vsub.s32 %v6388, %v6390
    %v6392 = vrot.slane %v6355, %v6391
    %v6393 = vadd.s32 %v6388, 4294967288
    %v6394 = vlaneseq
    %v6395 = vshrl.u32 %v6394, 7
    %v6396 = vsub.s32 %v6393, %v6395
    %v6397 = vrot.slane %v6356, %v6396
    %vm6398 = vcmask 130112
    %v6399 = vsel %vm6398, %v6397, %v6392
    %v6400 = vadd.s32 %v6388, 4294967280
    %v6401 = vlaneseq
    %v6402 = vshrl.u32 %v6401, 7
    %v6403 = vsub.s32 %v6400, %v6402
    %v6404 = vrot.slane %v6357, %v6403
    %vm6405 = vcmask 195712
    %v6406 = vsel %vm6405, %v6404, %v6399
    %v6407 = vadd.s32 %v6388, 4294967272
    %v6408 = vlaneseq
    %v6409 = vshrl.u32 %v6408, 7
    %v6410 = vsub.s32 %v6407, %v6409
    %v6411 = vrot.slane %v6358, %v6410
    %vm6412 = vcmask 261312
    %v6413 = vsel %vm6412, %v6411, %v6406
    %v6414 = vadd.s32 %v6388, 4294967264
    %v6415 = vlaneseq
    %v6416 = vshrl.u32 %v6415, 7
    %v6417 = vsub.s32 %v6414, %v6416
    %v6418 = vrot.slane %v6359, %v6417
    %vm6419 = vcmask 326912
    %v6420 = vsel %vm6419, %v6418, %v6413
    %v6421 = vadd.s32 %v6388, 4294967256
    %v6422 = vlaneseq
    %v6423 = vshrl.u32 %v6422, 7
    %v6424 = vsub.s32 %v6421, %v6423
    %v6425 = vrot.slane %v6360, %v6424
    %vm6426 = vcmask 392512
    %v6427 = vsel %vm6426, %v6425, %v6420
    %v6428 = vadd.s32 %v6388, 4294967248
    %v6429 = vlaneseq
    %v6430 = vshrl.u32 %v6429, 7
    %v6431 = vsub.s32 %v6428, %v6430
    %v6432 = vrot.slane %v6361, %v6431
    %vm6433 = vcmask 458112
    %v6434 = vsel %vm6433, %v6432, %v6427
    %v6435 = vadd.s32 %v6388, 4294967240
    %v6436 = vlaneseq
    %v6437 = vshrl.u32 %v6436, 7
    %v6438 = vsub.s32 %v6435, %v6437
    %v6439 = vrot.slane %v6362, %v6438
    %vm6440 = vcmask 523712
    %v6441 = vsel %vm6440, %v6439, %v6434
    %v6442 = vadd.s32 %v6388, 4294967232
    %v6443 = vlaneseq
    %v6444 = vshrl.u32 %v6443, 7
    %v6445 = vsub.s32 %v6442, %v6444
    %v6446 = vrot.slane %v6363, %v6445
    %vm6447 = vcmask 589312
    %v6448 = vsel %vm6447, %v6446, %v6441
    %v6449 = vadd.s32 %v6388, 4294967224
    %v6450 = vlaneseq
    %v6451 = vshrl.u32 %v6450, 7
    %v6452 = vsub.s32 %v6449, %v6451
    %v6453 = vrot.slane %v6364, %v6452
    %vm6454 = vcmask 654912
    %v6455 = vsel %vm6454, %v6453, %v6448
    %v6456 = vadd.s32 %v6388, 4294967216
    %v6457 = vlaneseq
    %v6458 = vshrl.u32 %v6457, 7
    %v6459 = vsub.s32 %v6456, %v6458
    %v6460 = vrot.slane %v6365, %v6459
    %vm6461 = vcmask 720512
    %v6462 = vsel %vm6461, %v6460, %v6455
    %v6463 = vadd.s32 %v6388, 4294967208
    %v6464 = vlaneseq
    %v6465 = vshrl.u32 %v6464, 7
    %v6466 = vsub.s32 %v6463, %v6465
    %v6467 = vrot.slane %v6366, %v6466
    %vm6468 = vcmask 786112
    %v6469 = vsel %vm6468, %v6467, %v6462
    %v6470 = vadd.s32 %v6388, 4294967200
    %v6471 = vlaneseq
    %v6472 = vshrl.u32 %v6471, 7
    %v6473 = vsub.s32 %v6470, %v6472
    %v6474 = vrot.slane %v6367, %v6473
    %vm6475 = vcmask 851712
    %v6476 = vsel %vm6475, %v6474, %v6469
    %v6477 = vadd.s32 %v6388, 4294967192
    %v6478 = vlaneseq
    %v6479 = vshrl.u32 %v6478, 7
    %v6480 = vsub.s32 %v6477, %v6479
    %v6481 = vrot.slane %v6368, %v6480
    %vm6482 = vcmask 917312
    %v6483 = vsel %vm6482, %v6481, %v6476
    %v6484 = vadd.s32 %v6388, 4294967184
    %v6485 = vlaneseq
    %v6486 = vshrl.u32 %v6485, 7
    %v6487 = vsub.s32 %v6484, %v6486
    %v6488 = vrot.slane %v6369, %v6487
    %vm6489 = vcmask 982912
    %v6490 = vsel %vm6489, %v6488, %v6483
    %v6491 = vadd.s32 %v6388, 4294967176
    %v6492 = vlaneseq
    %v6493 = vshrl.u32 %v6492, 7
    %v6494 = vsub.s32 %v6491, %v6493
    %v6495 = vrot.slane %v6370, %v6494
    %vm6496 = vcmask 1048512
    %v6497 = vsel %vm6496, %v6495, %v6490
    %6499 = vst [vmem:[#allocation12] sm:$0x1] %v6497
    // Predicated region
    $region50: #{tpu_custom_call.1} parent=1 // pred_check
      _
    $region51: #{tpu_custom_call.1} parent=1 // pred_check_branch
      %6501 = sbr.rel (0) target = $region53
    $region52: #{tpu_custom_call.1} parent=1 // pred_region
      %s6503 = ssub.s32 16, 16
      %6504 = vsyncadd [#allocation5], %s6503
      %s6506 = sshll.u32 [#allocation12], 4
      %s6507 = int_to_ptr.vmem [resolvable:$true] %s6506
      %6509 = dma.vmem_to_hbm [thread:$0]  %s6507, 16, %s7, [#allocation5]
    $region53: #{tpu_custom_call.1} parent=1 // pred_fallthru
      _
    // Predicated region
    $region54: #{tpu_custom_call.1} parent=1 // pred_check
      _
    $region55: #{tpu_custom_call.1} parent=1 // pred_check_branch
      %6511 = sbr.rel (0) target = $region57
    $region56: #{tpu_custom_call.1} parent=1 // pred_region
      %6512 = dma.done [#allocation5], 16
    $region57: #{tpu_custom_call.1} parent=1 // pred_fallthru
      _
    %6513 = vsyncpa [#allocation4], 1
    %6514 = vsyncpa [#allocation7], 1
    %6515 = vsyncpa [#allocation10], 1
    %6516 = vsyncpa [#allocation5], 1

</llo_original>
